<compile_context>
chip_gen: v6e
topology: v6e:2x2x1
jax: 0.10.0
libtpu: 0.0.40
codegen_flags: <defaults>
</compile_context>

<pallas_src>
import numpy as np
import jax
import jax.numpy as jnp
from jax.experimental import pallas as pl
from jax.experimental.pallas import tpu as pltpu


def _build_pool_count_matrix(C, H, W):
    """AvgPool2d(kernel=3, stride=2, padding=1, count_include_pad=True) expressed
    as a dense 0/1 counting matrix [C*H*W, C*Ho*Wo] acting on the UNPADDED,
    flattened image (padded taps are zero and contribute nothing; the divisor is
    always 9).  Output ordering matches PyTorch .view(T, N, -1) on [N, C, Ho, Wo]."""
    Ho = (H + 2 - 3) // 2 + 1
    Wo = (W + 2 - 3) // 2 + 1
    M = np.zeros((C * H * W, C * Ho * Wo), np.float32)
    for c in range(C):
        for i in range(Ho):
            for j in range(Wo):
                f = c * Ho * Wo + i * Wo + j
                for di in range(3):
                    for dj in range(3):
                        hi = 2 * i + di - 1
                        wj = 2 * j + dj - 1
                        if 0 <= hi < H and 0 <= wj < W:
                            M[c * H * W + hi * W + wj, f] = 1.0
    return jnp.asarray(M, jnp.bfloat16), (Ho, Wo)  # 0/1 entries: exact in bf16


def _make_kernel(T, N, F0, out_pad, num_hidden, inv_T, inv_pool,
                 v_threshold=1.0, v_reset=0.0):
    def kernel(x_ref, pool_ref, *rest):
        layer_refs = rest[:2 * num_hidden]            # (W_folded, shift) per hidden layer
        wo_ref = rest[2 * num_hidden]
        bo_ref = rest[2 * num_hidden + 1]
        out_ref = rest[2 * num_hidden + 2]

        # --- AvgPool for ALL T time steps at once (state-free, so batched over T) ---
        # [T*N, C*H*W] (bf16 spikes) @ [C*H*W, F0] (bf16 0/1 counts) -> f32 counts / 9
        pooled_all = jnp.dot(x_ref[...], pool_ref[...],
                             preferred_element_type=jnp.float32) * inv_pool

        def if_step(v, inp):
            # IFNode: charge -> fire (v >= v_th) -> hard reset to v_reset.
            v = v + inp
            spike = v >= v_threshold
            v = jnp.where(spike, v_reset, v)
            return v, spike

        # Membrane potentials & temporal accumulator carried as traced values
        # through the (fully unrolled, T is small & static) time loop.
        v_pool = jnp.zeros((N, F0), jnp.float32)
        v_hidden = [jnp.zeros((N, layer_refs[2 * i].shape[1]), jnp.float32)
                    for i in range(num_hidden)]
        acc = jnp.zeros((N, out_pad), jnp.float32)

        for t in range(T):
            v_pool, spike = if_step(v_pool, pooled_all[t * N:(t + 1) * N, :])
            h = spike.astype(jnp.bfloat16)            # spikes are 0/1 -> lossless bf16
            for i in range(num_hidden):
                w_ref = layer_refs[2 * i]             # bf16 [in, out], BN scale folded in
                s_ref = layer_refs[2 * i + 1]         # f32  [1, out],  bias+BN shift folded
                z = jnp.dot(h, w_ref[...],
                            preferred_element_type=jnp.float32) + s_ref[...]
                v_hidden[i], spike = if_step(v_hidden[i], z)
                h = spike.astype(jnp.bfloat16)
            logits = jnp.dot(h, wo_ref[...],
                             preferred_element_type=jnp.float32) + bo_ref[...]
            acc = acc + logits                        # running sum over time steps

        out_ref[...] = acc * inv_T                    # x.mean(dim=0), lane-dense write

    return kernel


def spiking_mlp_forward(x, params):
    T, N, C, H, W = x.shape
    pool_mask = params["pool_mask"]                   # [C*H*W, F0] bf16 counting matrix
    hidden = params["hidden"]                         # list of (W_folded bf16, shift f32)
    w_out, b_out = params["w_out"], params["b_out"]   # [512, out_pad] bf16, [1, out_pad] f32
    num_classes = params["num_classes"]
    num_hidden = len(hidden)
    F_in = C * H * W
    F0 = pool_mask.shape[1]
    out_pad = w_out.shape[1]

    # Spikes are exactly 0/1 -> lossless bf16 cast; no spatial padding needed.
    x_flat = x.reshape(T * N, F_in).astype(jnp.bfloat16)

    in_arrays = [x_flat, pool_mask]
    for (wf, sh) in hidden:
        in_arrays += [wf, sh]
    in_arrays += [w_out, b_out]

    kernel = _make_kernel(T=T, N=N, F0=F0, out_pad=out_pad, num_hidden=num_hidden,
                          inv_T=1.0 / T, inv_pool=1.0 / 9.0)

    # Single invocation, everything resident in VMEM (< 1 MiB total at these shapes):
    # no grid -> no per-step overhead, no double-buffering of constant weights.
    # (For large batches on v7x, add a leading "parallel" grid axis tiling N —
    #  membrane state is independent per sample.)
    vmem = pltpu.MemorySpace.VMEM
    out = pl.pallas_call(
        kernel,
        out_shape=jax.ShapeDtypeStruct((N, out_pad), jnp.float32),
        in_specs=[pl.BlockSpec(memory_space=vmem)] * len(in_arrays),
        out_specs=pl.BlockSpec(memory_space=vmem),
    )(*in_arrays)

    return out[:, :num_classes]


def init_params(key, num_layers, C, H, W, num_classes, hidden_dim=512):
    pool_mask, (Ho, Wo) = _build_pool_count_matrix(C, H, W)
    f0 = C * Ho * Wo                                  # == in_features // 4
    dims = [f0] + [hidden_dim] * (num_layers - 1)
    eps = 1e-5
    keys = jax.random.split(key, 2 * num_layers)

    hidden = []
    for i in range(num_layers - 1):
        fan_in, fan_out = dims[i], dims[i + 1]
        kw, kb = keys[2 * i], keys[2 * i + 1]
        # kaiming_normal_(mode='fan_out', nonlinearity='relu'): std = sqrt(2/fan_out)
        w = jax.random.normal(kw, (fan_out, fan_in), jnp.float32) * np.sqrt(2.0 / fan_out)
        bound = 1.0 / np.sqrt(fan_in)                 # default nn.Linear bias init
        b = jax.random.uniform(kb, (1, fan_out), jnp.float32, -bound, bound)
        # BatchNorm1d eval mode, default stats: gamma=1, beta=0, mean=0, var=1.
        scale = jnp.full((fan_out,), 1.0 / np.sqrt(1.0 + eps), jnp.float32)
        shift_bn = jnp.zeros((1, fan_out), jnp.float32)
        # Fold bias + BN into the weight / additive shift.
        w_folded = (w.T * scale[None, :]).astype(jnp.bfloat16)      # [in, out]
        shift = (b * scale[None, :] + shift_bn).astype(jnp.float32)  # [1, out]
        hidden.append((w_folded, shift))

    kw, kb = keys[-2], keys[-1]
    w_o = jax.random.normal(kw, (num_classes, hidden_dim), jnp.float32) * np.sqrt(2.0 / num_classes)
    bound = 1.0 / np.sqrt(hidden_dim)
    b_o = jax.random.uniform(kb, (1, num_classes), jnp.float32, -bound, bound)

    # Lane-dense output: pad num_classes up to a multiple of 128 with zero columns.
    out_pad = ((num_classes + 127) // 128) * 128
    w_out = jnp.zeros((hidden_dim, out_pad), jnp.float32).at[:, :num_classes].set(w_o.T)
    b_out = jnp.zeros((1, out_pad), jnp.float32).at[:, :num_classes].set(b_o)

    return {"pool_mask": pool_mask, "hidden": hidden,
            "w_out": w_out.astype(jnp.bfloat16), "b_out": b_out,
            "num_classes": num_classes}


if __name__ == "__main__":
    # Small shapes consistent with the module: T=8 time steps, batch=2,
    # 2 DVS channels, 16x16 spatial, 3 layers, 16 classes.
    T, N, C, H, W = 8, 2, 2, 16, 16
    num_layers, num_classes = 3, 16

    key = jax.random.PRNGKey(0)
    kx, kp = jax.random.split(key)
    # DVS-like binary spike input.
    x = jax.random.bernoulli(kx, 0.5, (T, N, C, H, W)).astype(jnp.float32)

    params = init_params(kp, num_layers, C, H, W, num_classes)
    out = spiking_mlp_forward(x, params)
    out = jax.block_until_ready(out)

    assert out.shape == (N, num_classes), out.shape
    assert bool(jnp.all(jnp.isfinite(out)))
    print("KERNEL_OK")
</pallas_src>

<mosaic_0001>
module attributes {stable_mosaic.version = 11 : i64} {
  func.func @kernel(%arg0: memref<16x512xbf16, #tpu.memory_space<vmem>>, %arg1: memref<512x128xbf16, #tpu.memory_space<vmem>>, %arg2: memref<128x512xbf16, #tpu.memory_space<vmem>>, %arg3: memref<1x512xf32, #tpu.memory_space<vmem>>, %arg4: memref<512x512xbf16, #tpu.memory_space<vmem>>, %arg5: memref<1x512xf32, #tpu.memory_space<vmem>>, %arg6: memref<512x128xbf16, #tpu.memory_space<vmem>>, %arg7: memref<1x128xf32, #tpu.memory_space<vmem>>, %arg8: memref<2x128xf32, #tpu.memory_space<vmem>>) attributes {dimension_semantics = [], scalar_prefetch = 0 : i64, scratch_operands = 0 : i64, tpu.core_type = #tpu.core_type<tc>} {
    %c0 = arith.constant 0 : index
    %c0_0 = arith.constant 0 : index
    %0 = vector.load %arg0[%c0, %c0_0] : memref<16x512xbf16, #tpu.memory_space<vmem>>, vector<16x512xbf16>
    %c0_1 = arith.constant 0 : index
    %c0_2 = arith.constant 0 : index
    %1 = vector.load %arg1[%c0_1, %c0_2] : memref<512x128xbf16, #tpu.memory_space<vmem>>, vector<512x128xbf16>
    %cst = arith.constant dense<0.000000e+00> : vector<16x128xf32>
    %2 = tpu.matmul %0, %1, %cst {dimension_numbers = #tpu.dot_dimension_numbers<[1], [0], [0], [1], [0, 0, 1, 1], [], []>} : vector<16x512xbf16>, vector<512x128xbf16>, vector<16x128xf32> -> vector<16x128xf32>
    %cst_3 = arith.constant 0.111111112 : f32
    %3 = vector.broadcast %cst_3 : f32 to vector<16x128xf32>
    %4 = arith.mulf %2, %3 : vector<16x128xf32>
    %cst_4 = arith.constant 0.000000e+00 : f32
    %5 = vector.broadcast %cst_4 : f32 to vector<2x128xf32>
    %cst_5 = arith.constant 0.000000e+00 : f32
    %6 = vector.broadcast %cst_5 : f32 to vector<2x512xf32>
    %cst_6 = arith.constant 0.000000e+00 : f32
    %7 = vector.broadcast %cst_6 : f32 to vector<2x512xf32>
    %cst_7 = arith.constant 0.000000e+00 : f32
    %8 = vector.broadcast %cst_7 : f32 to vector<2x128xf32>
    %9 = vector.extract_strided_slice %4 {offsets = [0, 0], sizes = [2, 128], strides = [1, 1]} : vector<16x128xf32> to vector<2x128xf32>
    %10 = arith.addf %5, %9 : vector<2x128xf32>
    %cst_8 = arith.constant 1.000000e+00 : f32
    %11 = vector.broadcast %cst_8 : f32 to vector<2x128xf32>
    %12 = arith.cmpf oge, %10, %11 : vector<2x128xf32>
    %cst_9 = arith.constant 0.000000e+00 : f32
    %13 = vector.broadcast %cst_9 : f32 to vector<2x128xf32>
    %14 = arith.select %12, %13, %10 : vector<2x128xi1>, vector<2x128xf32>
    %15 = arith.extui %12 : vector<2x128xi1> to vector<2x128xi32>
    %16 = arith.sitofp %15 : vector<2x128xi32> to vector<2x128xf32>
    %17 = arith.truncf %16 : vector<2x128xf32> to vector<2x128xbf16>
    %c0_10 = arith.constant 0 : index
    %c0_11 = arith.constant 0 : index
    %18 = vector.load %arg2[%c0_10, %c0_11] : memref<128x512xbf16, #tpu.memory_space<vmem>>, vector<128x512xbf16>
    %cst_12 = arith.constant dense<0.000000e+00> : vector<2x512xf32>
    %19 = tpu.matmul %17, %18, %cst_12 {dimension_numbers = #tpu.dot_dimension_numbers<[1], [0], [0], [1], [0, 0, 1, 1], [], []>} : vector<2x128xbf16>, vector<128x512xbf16>, vector<2x512xf32> -> vector<2x512xf32>
    %c0_13 = arith.constant 0 : index
    %c0_14 = arith.constant 0 : index
    %20 = vector.load %arg3[%c0_13, %c0_14] : memref<1x512xf32, #tpu.memory_space<vmem>>, vector<1x512xf32>
    %21 = vector.broadcast %20 : vector<1x512xf32> to vector<2x512xf32>
    %22 = arith.addf %19, %21 : vector<2x512xf32>
    %23 = arith.addf %6, %22 : vector<2x512xf32>
    %cst_15 = arith.constant 1.000000e+00 : f32
    %24 = vector.broadcast %cst_15 : f32 to vector<2x512xf32>
    %25 = arith.cmpf oge, %23, %24 : vector<2x512xf32>
    %cst_16 = arith.constant 0.000000e+00 : f32
    %26 = vector.broadcast %cst_16 : f32 to vector<2x512xf32>
    %27 = arith.select %25, %26, %23 : vector<2x512xi1>, vector<2x512xf32>
    %28 = arith.extui %25 : vector<2x512xi1> to vector<2x512xi32>
    %29 = arith.sitofp %28 : vector<2x512xi32> to vector<2x512xf32>
    %30 = arith.truncf %29 : vector<2x512xf32> to vector<2x512xbf16>
    %c0_17 = arith.constant 0 : index
    %c0_18 = arith.constant 0 : index
    %31 = vector.load %arg4[%c0_17, %c0_18] : memref<512x512xbf16, #tpu.memory_space<vmem>>, vector<512x512xbf16>
    %cst_19 = arith.constant dense<0.000000e+00> : vector<2x512xf32>
    %32 = tpu.matmul %30, %31, %cst_19 {dimension_numbers = #tpu.dot_dimension_numbers<[1], [0], [0], [1], [0, 0, 1, 1], [], []>} : vector<2x512xbf16>, vector<512x512xbf16>, vector<2x512xf32> -> vector<2x512xf32>
    %c0_20 = arith.constant 0 : index
    %c0_21 = arith.constant 0 : index
    %33 = vector.load %arg5[%c0_20, %c0_21] : memref<1x512xf32, #tpu.memory_space<vmem>>, vector<1x512xf32>
    %34 = vector.broadcast %33 : vector<1x512xf32> to vector<2x512xf32>
    %35 = arith.addf %32, %34 : vector<2x512xf32>
    %36 = arith.addf %7, %35 : vector<2x512xf32>
    %cst_22 = arith.constant 1.000000e+00 : f32
    %37 = vector.broadcast %cst_22 : f32 to vector<2x512xf32>
    %38 = arith.cmpf oge, %36, %37 : vector<2x512xf32>
    %cst_23 = arith.constant 0.000000e+00 : f32
    %39 = vector.broadcast %cst_23 : f32 to vector<2x512xf32>
    %40 = arith.select %38, %39, %36 : vector<2x512xi1>, vector<2x512xf32>
    %41 = arith.extui %38 : vector<2x512xi1> to vector<2x512xi32>
    %42 = arith.sitofp %41 : vector<2x512xi32> to vector<2x512xf32>
    %43 = arith.truncf %42 : vector<2x512xf32> to vector<2x512xbf16>
    %c0_24 = arith.constant 0 : index
    %c0_25 = arith.constant 0 : index
    %44 = vector.load %arg6[%c0_24, %c0_25] : memref<512x128xbf16, #tpu.memory_space<vmem>>, vector<512x128xbf16>
    %cst_26 = arith.constant dense<0.000000e+00> : vector<2x128xf32>
    %45 = tpu.matmul %43, %44, %cst_26 {dimension_numbers = #tpu.dot_dimension_numbers<[1], [0], [0], [1], [0, 0, 1, 1], [], []>} : vector<2x512xbf16>, vector<512x128xbf16>, vector<2x128xf32> -> vector<2x128xf32>
    %c0_27 = arith.constant 0 : index
    %c0_28 = arith.constant 0 : index
    %46 = vector.load %arg7[%c0_27, %c0_28] : memref<1x128xf32, #tpu.memory_space<vmem>>, vector<1x128xf32>
    %47 = vector.broadcast %46 : vector<1x128xf32> to vector<2x128xf32>
    %48 = arith.addf %45, %47 : vector<2x128xf32>
    %49 = arith.addf %8, %48 : vector<2x128xf32>
    %50 = vector.extract_strided_slice %4 {offsets = [2, 0], sizes = [2, 128], strides = [1, 1]} : vector<16x128xf32> to vector<2x128xf32>
    %51 = arith.addf %14, %50 : vector<2x128xf32>
    %cst_29 = arith.constant 1.000000e+00 : f32
    %52 = vector.broadcast %cst_29 : f32 to vector<2x128xf32>
    %53 = arith.cmpf oge, %51, %52 : vector<2x128xf32>
    %cst_30 = arith.constant 0.000000e+00 : f32
    %54 = vector.broadcast %cst_30 : f32 to vector<2x128xf32>
    %55 = arith.select %53, %54, %51 : vector<2x128xi1>, vector<2x128xf32>
    %56 = arith.extui %53 : vector<2x128xi1> to vector<2x128xi32>
    %57 = arith.sitofp %56 : vector<2x128xi32> to vector<2x128xf32>
    %58 = arith.truncf %57 : vector<2x128xf32> to vector<2x128xbf16>
    %c0_31 = arith.constant 0 : index
    %c0_32 = arith.constant 0 : index
    %59 = vector.load %arg2[%c0_31, %c0_32] : memref<128x512xbf16, #tpu.memory_space<vmem>>, vector<128x512xbf16>
    %cst_33 = arith.constant dense<0.000000e+00> : vector<2x512xf32>
    %60 = tpu.matmul %58, %59, %cst_33 {dimension_numbers = #tpu.dot_dimension_numbers<[1], [0], [0], [1], [0, 0, 1, 1], [], []>} : vector<2x128xbf16>, vector<128x512xbf16>, vector<2x512xf32> -> vector<2x512xf32>
    %c0_34 = arith.constant 0 : index
    %c0_35 = arith.constant 0 : index
    %61 = vector.load %arg3[%c0_34, %c0_35] : memref<1x512xf32, #tpu.memory_space<vmem>>, vector<1x512xf32>
    %62 = vector.broadcast %61 : vector<1x512xf32> to vector<2x512xf32>
    %63 = arith.addf %60, %62 : vector<2x512xf32>
    %64 = arith.addf %27, %63 : vector<2x512xf32>
    %cst_36 = arith.constant 1.000000e+00 : f32
    %65 = vector.broadcast %cst_36 : f32 to vector<2x512xf32>
    %66 = arith.cmpf oge, %64, %65 : vector<2x512xf32>
    %cst_37 = arith.constant 0.000000e+00 : f32
    %67 = vector.broadcast %cst_37 : f32 to vector<2x512xf32>
    %68 = arith.select %66, %67, %64 : vector<2x512xi1>, vector<2x512xf32>
    %69 = arith.extui %66 : vector<2x512xi1> to vector<2x512xi32>
    %70 = arith.sitofp %69 : vector<2x512xi32> to vector<2x512xf32>
    %71 = arith.truncf %70 : vector<2x512xf32> to vector<2x512xbf16>
    %c0_38 = arith.constant 0 : index
    %c0_39 = arith.constant 0 : index
    %72 = vector.load %arg4[%c0_38, %c0_39] : memref<512x512xbf16, #tpu.memory_space<vmem>>, vector<512x512xbf16>
    %cst_40 = arith.constant dense<0.000000e+00> : vector<2x512xf32>
    %73 = tpu.matmul %71, %72, %cst_40 {dimension_numbers = #tpu.dot_dimension_numbers<[1], [0], [0], [1], [0, 0, 1, 1], [], []>} : vector<2x512xbf16>, vector<512x512xbf16>, vector<2x512xf32> -> vector<2x512xf32>
    %c0_41 = arith.constant 0 : index
    %c0_42 = arith.constant 0 : index
    %74 = vector.load %arg5[%c0_41, %c0_42] : memref<1x512xf32, #tpu.memory_space<vmem>>, vector<1x512xf32>
    %75 = vector.broadcast %74 : vector<1x512xf32> to vector<2x512xf32>
    %76 = arith.addf %73, %75 : vector<2x512xf32>
    %77 = arith.addf %40, %76 : vector<2x512xf32>
    %cst_43 = arith.constant 1.000000e+00 : f32
    %78 = vector.broadcast %cst_43 : f32 to vector<2x512xf32>
    %79 = arith.cmpf oge, %77, %78 : vector<2x512xf32>
    %cst_44 = arith.constant 0.000000e+00 : f32
    %80 = vector.broadcast %cst_44 : f32 to vector<2x512xf32>
    %81 = arith.select %79, %80, %77 : vector<2x512xi1>, vector<2x512xf32>
    %82 = arith.extui %79 : vector<2x512xi1> to vector<2x512xi32>
    %83 = arith.sitofp %82 : vector<2x512xi32> to vector<2x512xf32>
    %84 = arith.truncf %83 : vector<2x512xf32> to vector<2x512xbf16>
    %c0_45 = arith.constant 0 : index
    %c0_46 = arith.constant 0 : index
    %85 = vector.load %arg6[%c0_45, %c0_46] : memref<512x128xbf16, #tpu.memory_space<vmem>>, vector<512x128xbf16>
    %cst_47 = arith.constant dense<0.000000e+00> : vector<2x128xf32>
    %86 = tpu.matmul %84, %85, %cst_47 {dimension_numbers = #tpu.dot_dimension_numbers<[1], [0], [0], [1], [0, 0, 1, 1], [], []>} : vector<2x512xbf16>, vector<512x128xbf16>, vector<2x128xf32> -> vector<2x128xf32>
    %c0_48 = arith.constant 0 : index
    %c0_49 = arith.constant 0 : index
    %87 = vector.load %arg7[%c0_48, %c0_49] : memref<1x128xf32, #tpu.memory_space<vmem>>, vector<1x128xf32>
    %88 = vector.broadcast %87 : vector<1x128xf32> to vector<2x128xf32>
    %89 = arith.addf %86, %88 : vector<2x128xf32>
    %90 = arith.addf %49, %89 : vector<2x128xf32>
    %91 = vector.extract_strided_slice %4 {offsets = [4, 0], sizes = [2, 128], strides = [1, 1]} : vector<16x128xf32> to vector<2x128xf32>
    %92 = arith.addf %55, %91 : vector<2x128xf32>
    %cst_50 = arith.constant 1.000000e+00 : f32
    %93 = vector.broadcast %cst_50 : f32 to vector<2x128xf32>
    %94 = arith.cmpf oge, %92, %93 : vector<2x128xf32>
    %cst_51 = arith.constant 0.000000e+00 : f32
    %95 = vector.broadcast %cst_51 : f32 to vector<2x128xf32>
    %96 = arith.select %94, %95, %92 : vector<2x128xi1>, vector<2x128xf32>
    %97 = arith.extui %94 : vector<2x128xi1> to vector<2x128xi32>
    %98 = arith.sitofp %97 : vector<2x128xi32> to vector<2x128xf32>
    %99 = arith.truncf %98 : vector<2x128xf32> to vector<2x128xbf16>
    %c0_52 = arith.constant 0 : index
    %c0_53 = arith.constant 0 : index
    %100 = vector.load %arg2[%c0_52, %c0_53] : memref<128x512xbf16, #tpu.memory_space<vmem>>, vector<128x512xbf16>
    %cst_54 = arith.constant dense<0.000000e+00> : vector<2x512xf32>
    %101 = tpu.matmul %99, %100, %cst_54 {dimension_numbers = #tpu.dot_dimension_numbers<[1], [0], [0], [1], [0, 0, 1, 1], [], []>} : vector<2x128xbf16>, vector<128x512xbf16>, vector<2x512xf32> -> vector<2x512xf32>
    %c0_55 = arith.constant 0 : index
    %c0_56 = arith.constant 0 : index
    %102 = vector.load %arg3[%c0_55, %c0_56] : memref<1x512xf32, #tpu.memory_space<vmem>>, vector<1x512xf32>
    %103 = vector.broadcast %102 : vector<1x512xf32> to vector<2x512xf32>
    %104 = arith.addf %101, %103 : vector<2x512xf32>
    %105 = arith.addf %68, %104 : vector<2x512xf32>
    %cst_57 = arith.constant 1.000000e+00 : f32
    %106 = vector.broadcast %cst_57 : f32 to vector<2x512xf32>
    %107 = arith.cmpf oge, %105, %106 : vector<2x512xf32>
    %cst_58 = arith.constant 0.000000e+00 : f32
    %108 = vector.broadcast %cst_58 : f32 to vector<2x512xf32>
    %109 = arith.select %107, %108, %105 : vector<2x512xi1>, vector<2x512xf32>
    %110 = arith.extui %107 : vector<2x512xi1> to vector<2x512xi32>
    %111 = arith.sitofp %110 : vector<2x512xi32> to vector<2x512xf32>
    %112 = arith.truncf %111 : vector<2x512xf32> to vector<2x512xbf16>
    %c0_59 = arith.constant 0 : index
    %c0_60 = arith.constant 0 : index
    %113 = vector.load %arg4[%c0_59, %c0_60] : memref<512x512xbf16, #tpu.memory_space<vmem>>, vector<512x512xbf16>
    %cst_61 = arith.constant dense<0.000000e+00> : vector<2x512xf32>
    %114 = tpu.matmul %112, %113, %cst_61 {dimension_numbers = #tpu.dot_dimension_numbers<[1], [0], [0], [1], [0, 0, 1, 1], [], []>} : vector<2x512xbf16>, vector<512x512xbf16>, vector<2x512xf32> -> vector<2x512xf32>
    %c0_62 = arith.constant 0 : index
    %c0_63 = arith.constant 0 : index
    %115 = vector.load %arg5[%c0_62, %c0_63] : memref<1x512xf32, #tpu.memory_space<vmem>>, vector<1x512xf32>
    %116 = vector.broadcast %115 : vector<1x512xf32> to vector<2x512xf32>
    %117 = arith.addf %114, %116 : vector<2x512xf32>
    %118 = arith.addf %81, %117 : vector<2x512xf32>
    %cst_64 = arith.constant 1.000000e+00 : f32
    %119 = vector.broadcast %cst_64 : f32 to vector<2x512xf32>
    %120 = arith.cmpf oge, %118, %119 : vector<2x512xf32>
    %cst_65 = arith.constant 0.000000e+00 : f32
    %121 = vector.broadcast %cst_65 : f32 to vector<2x512xf32>
    %122 = arith.select %120, %121, %118 : vector<2x512xi1>, vector<2x512xf32>
    %123 = arith.extui %120 : vector<2x512xi1> to vector<2x512xi32>
    %124 = arith.sitofp %123 : vector<2x512xi32> to vector<2x512xf32>
    %125 = arith.truncf %124 : vector<2x512xf32> to vector<2x512xbf16>
    %c0_66 = arith.constant 0 : index
    %c0_67 = arith.constant 0 : index
    %126 = vector.load %arg6[%c0_66, %c0_67] : memref<512x128xbf16, #tpu.memory_space<vmem>>, vector<512x128xbf16>
    %cst_68 = arith.constant dense<0.000000e+00> : vector<2x128xf32>
    %127 = tpu.matmul %125, %126, %cst_68 {dimension_numbers = #tpu.dot_dimension_numbers<[1], [0], [0], [1], [0, 0, 1, 1], [], []>} : vector<2x512xbf16>, vector<512x128xbf16>, vector<2x128xf32> -> vector<2x128xf32>
    %c0_69 = arith.constant 0 : index
    %c0_70 = arith.constant 0 : index
    %128 = vector.load %arg7[%c0_69, %c0_70] : memref<1x128xf32, #tpu.memory_space<vmem>>, vector<1x128xf32>
    %129 = vector.broadcast %128 : vector<1x128xf32> to vector<2x128xf32>
    %130 = arith.addf %127, %129 : vector<2x128xf32>
    %131 = arith.addf %90, %130 : vector<2x128xf32>
    %132 = vector.extract_strided_slice %4 {offsets = [6, 0], sizes = [2, 128], strides = [1, 1]} : vector<16x128xf32> to vector<2x128xf32>
    %133 = arith.addf %96, %132 : vector<2x128xf32>
    %cst_71 = arith.constant 1.000000e+00 : f32
    %134 = vector.broadcast %cst_71 : f32 to vector<2x128xf32>
    %135 = arith.cmpf oge, %133, %134 : vector<2x128xf32>
    %cst_72 = arith.constant 0.000000e+00 : f32
    %136 = vector.broadcast %cst_72 : f32 to vector<2x128xf32>
    %137 = arith.select %135, %136, %133 : vector<2x128xi1>, vector<2x128xf32>
    %138 = arith.extui %135 : vector<2x128xi1> to vector<2x128xi32>
    %139 = arith.sitofp %138 : vector<2x128xi32> to vector<2x128xf32>
    %140 = arith.truncf %139 : vector<2x128xf32> to vector<2x128xbf16>
    %c0_73 = arith.constant 0 : index
    %c0_74 = arith.constant 0 : index
    %141 = vector.load %arg2[%c0_73, %c0_74] : memref<128x512xbf16, #tpu.memory_space<vmem>>, vector<128x512xbf16>
    %cst_75 = arith.constant dense<0.000000e+00> : vector<2x512xf32>
    %142 = tpu.matmul %140, %141, %cst_75 {dimension_numbers = #tpu.dot_dimension_numbers<[1], [0], [0], [1], [0, 0, 1, 1], [], []>} : vector<2x128xbf16>, vector<128x512xbf16>, vector<2x512xf32> -> vector<2x512xf32>
    %c0_76 = arith.constant 0 : index
    %c0_77 = arith.constant 0 : index
    %143 = vector.load %arg3[%c0_76, %c0_77] : memref<1x512xf32, #tpu.memory_space<vmem>>, vector<1x512xf32>
    %144 = vector.broadcast %143 : vector<1x512xf32> to vector<2x512xf32>
    %145 = arith.addf %142, %144 : vector<2x512xf32>
    %146 = arith.addf %109, %145 : vector<2x512xf32>
    %cst_78 = arith.constant 1.000000e+00 : f32
    %147 = vector.broadcast %cst_78 : f32 to vector<2x512xf32>
    %148 = arith.cmpf oge, %146, %147 : vector<2x512xf32>
    %cst_79 = arith.constant 0.000000e+00 : f32
    %149 = vector.broadcast %cst_79 : f32 to vector<2x512xf32>
    %150 = arith.select %148, %149, %146 : vector<2x512xi1>, vector<2x512xf32>
    %151 = arith.extui %148 : vector<2x512xi1> to vector<2x512xi32>
    %152 = arith.sitofp %151 : vector<2x512xi32> to vector<2x512xf32>
    %153 = arith.truncf %152 : vector<2x512xf32> to vector<2x512xbf16>
    %c0_80 = arith.constant 0 : index
    %c0_81 = arith.constant 0 : index
    %154 = vector.load %arg4[%c0_80, %c0_81] : memref<512x512xbf16, #tpu.memory_space<vmem>>, vector<512x512xbf16>
    %cst_82 = arith.constant dense<0.000000e+00> : vector<2x512xf32>
    %155 = tpu.matmul %153, %154, %cst_82 {dimension_numbers = #tpu.dot_dimension_numbers<[1], [0], [0], [1], [0, 0, 1, 1], [], []>} : vector<2x512xbf16>, vector<512x512xbf16>, vector<2x512xf32> -> vector<2x512xf32>
    %c0_83 = arith.constant 0 : index
    %c0_84 = arith.constant 0 : index
    %156 = vector.load %arg5[%c0_83, %c0_84] : memref<1x512xf32, #tpu.memory_space<vmem>>, vector<1x512xf32>
    %157 = vector.broadcast %156 : vector<1x512xf32> to vector<2x512xf32>
    %158 = arith.addf %155, %157 : vector<2x512xf32>
    %159 = arith.addf %122, %158 : vector<2x512xf32>
    %cst_85 = arith.constant 1.000000e+00 : f32
    %160 = vector.broadcast %cst_85 : f32 to vector<2x512xf32>
    %161 = arith.cmpf oge, %159, %160 : vector<2x512xf32>
    %cst_86 = arith.constant 0.000000e+00 : f32
    %162 = vector.broadcast %cst_86 : f32 to vector<2x512xf32>
    %163 = arith.select %161, %162, %159 : vector<2x512xi1>, vector<2x512xf32>
    %164 = arith.extui %161 : vector<2x512xi1> to vector<2x512xi32>
    %165 = arith.sitofp %164 : vector<2x512xi32> to vector<2x512xf32>
    %166 = arith.truncf %165 : vector<2x512xf32> to vector<2x512xbf16>
    %c0_87 = arith.constant 0 : index
    %c0_88 = arith.constant 0 : index
    %167 = vector.load %arg6[%c0_87, %c0_88] : memref<512x128xbf16, #tpu.memory_space<vmem>>, vector<512x128xbf16>
    %cst_89 = arith.constant dense<0.000000e+00> : vector<2x128xf32>
    %168 = tpu.matmul %166, %167, %cst_89 {dimension_numbers = #tpu.dot_dimension_numbers<[1], [0], [0], [1], [0, 0, 1, 1], [], []>} : vector<2x512xbf16>, vector<512x128xbf16>, vector<2x128xf32> -> vector<2x128xf32>
    %c0_90 = arith.constant 0 : index
    %c0_91 = arith.constant 0 : index
    %169 = vector.load %arg7[%c0_90, %c0_91] : memref<1x128xf32, #tpu.memory_space<vmem>>, vector<1x128xf32>
    %170 = vector.broadcast %169 : vector<1x128xf32> to vector<2x128xf32>
    %171 = arith.addf %168, %170 : vector<2x128xf32>
    %172 = arith.addf %131, %171 : vector<2x128xf32>
    %173 = vector.extract_strided_slice %4 {offsets = [8, 0], sizes = [2, 128], strides = [1, 1]} : vector<16x128xf32> to vector<2x128xf32>
    %174 = arith.addf %137, %173 : vector<2x128xf32>
    %cst_92 = arith.constant 1.000000e+00 : f32
    %175 = vector.broadcast %cst_92 : f32 to vector<2x128xf32>
    %176 = arith.cmpf oge, %174, %175 : vector<2x128xf32>
    %cst_93 = arith.constant 0.000000e+00 : f32
    %177 = vector.broadcast %cst_93 : f32 to vector<2x128xf32>
    %178 = arith.select %176, %177, %174 : vector<2x128xi1>, vector<2x128xf32>
    %179 = arith.extui %176 : vector<2x128xi1> to vector<2x128xi32>
    %180 = arith.sitofp %179 : vector<2x128xi32> to vector<2x128xf32>
    %181 = arith.truncf %180 : vector<2x128xf32> to vector<2x128xbf16>
    %c0_94 = arith.constant 0 : index
    %c0_95 = arith.constant 0 : index
    %182 = vector.load %arg2[%c0_94, %c0_95] : memref<128x512xbf16, #tpu.memory_space<vmem>>, vector<128x512xbf16>
    %cst_96 = arith.constant dense<0.000000e+00> : vector<2x512xf32>
    %183 = tpu.matmul %181, %182, %cst_96 {dimension_numbers = #tpu.dot_dimension_numbers<[1], [0], [0], [1], [0, 0, 1, 1], [], []>} : vector<2x128xbf16>, vector<128x512xbf16>, vector<2x512xf32> -> vector<2x512xf32>
    %c0_97 = arith.constant 0 : index
    %c0_98 = arith.constant 0 : index
    %184 = vector.load %arg3[%c0_97, %c0_98] : memref<1x512xf32, #tpu.memory_space<vmem>>, vector<1x512xf32>
    %185 = vector.broadcast %184 : vector<1x512xf32> to vector<2x512xf32>
    %186 = arith.addf %183, %185 : vector<2x512xf32>
    %187 = arith.addf %150, %186 : vector<2x512xf32>
    %cst_99 = arith.constant 1.000000e+00 : f32
    %188 = vector.broadcast %cst_99 : f32 to vector<2x512xf32>
    %189 = arith.cmpf oge, %187, %188 : vector<2x512xf32>
    %cst_100 = arith.constant 0.000000e+00 : f32
    %190 = vector.broadcast %cst_100 : f32 to vector<2x512xf32>
    %191 = arith.select %189, %190, %187 : vector<2x512xi1>, vector<2x512xf32>
    %192 = arith.extui %189 : vector<2x512xi1> to vector<2x512xi32>
    %193 = arith.sitofp %192 : vector<2x512xi32> to vector<2x512xf32>
    %194 = arith.truncf %193 : vector<2x512xf32> to vector<2x512xbf16>
    %c0_101 = arith.constant 0 : index
    %c0_102 = arith.constant 0 : index
    %195 = vector.load %arg4[%c0_101, %c0_102] : memref<512x512xbf16, #tpu.memory_space<vmem>>, vector<512x512xbf16>
    %cst_103 = arith.constant dense<0.000000e+00> : vector<2x512xf32>
    %196 = tpu.matmul %194, %195, %cst_103 {dimension_numbers = #tpu.dot_dimension_numbers<[1], [0], [0], [1], [0, 0, 1, 1], [], []>} : vector<2x512xbf16>, vector<512x512xbf16>, vector<2x512xf32> -> vector<2x512xf32>
    %c0_104 = arith.constant 0 : index
    %c0_105 = arith.constant 0 : index
    %197 = vector.load %arg5[%c0_104, %c0_105] : memref<1x512xf32, #tpu.memory_space<vmem>>, vector<1x512xf32>
    %198 = vector.broadcast %197 : vector<1x512xf32> to vector<2x512xf32>
    %199 = arith.addf %196, %198 : vector<2x512xf32>
    %200 = arith.addf %163, %199 : vector<2x512xf32>
    %cst_106 = arith.constant 1.000000e+00 : f32
    %201 = vector.broadcast %cst_106 : f32 to vector<2x512xf32>
    %202 = arith.cmpf oge, %200, %201 : vector<2x512xf32>
    %cst_107 = arith.constant 0.000000e+00 : f32
    %203 = vector.broadcast %cst_107 : f32 to vector<2x512xf32>
    %204 = arith.select %202, %203, %200 : vector<2x512xi1>, vector<2x512xf32>
    %205 = arith.extui %202 : vector<2x512xi1> to vector<2x512xi32>
    %206 = arith.sitofp %205 : vector<2x512xi32> to vector<2x512xf32>
    %207 = arith.truncf %206 : vector<2x512xf32> to vector<2x512xbf16>
    %c0_108 = arith.constant 0 : index
    %c0_109 = arith.constant 0 : index
    %208 = vector.load %arg6[%c0_108, %c0_109] : memref<512x128xbf16, #tpu.memory_space<vmem>>, vector<512x128xbf16>
    %cst_110 = arith.constant dense<0.000000e+00> : vector<2x128xf32>
    %209 = tpu.matmul %207, %208, %cst_110 {dimension_numbers = #tpu.dot_dimension_numbers<[1], [0], [0], [1], [0, 0, 1, 1], [], []>} : vector<2x512xbf16>, vector<512x128xbf16>, vector<2x128xf32> -> vector<2x128xf32>
    %c0_111 = arith.constant 0 : index
    %c0_112 = arith.constant 0 : index
    %210 = vector.load %arg7[%c0_111, %c0_112] : memref<1x128xf32, #tpu.memory_space<vmem>>, vector<1x128xf32>
    %211 = vector.broadcast %210 : vector<1x128xf32> to vector<2x128xf32>
    %212 = arith.addf %209, %211 : vector<2x128xf32>
    %213 = arith.addf %172, %212 : vector<2x128xf32>
    %214 = vector.extract_strided_slice %4 {offsets = [10, 0], sizes = [2, 128], strides = [1, 1]} : vector<16x128xf32> to vector<2x128xf32>
    %215 = arith.addf %178, %214 : vector<2x128xf32>
    %cst_113 = arith.constant 1.000000e+00 : f32
    %216 = vector.broadcast %cst_113 : f32 to vector<2x128xf32>
    %217 = arith.cmpf oge, %215, %216 : vector<2x128xf32>
    %cst_114 = arith.constant 0.000000e+00 : f32
    %218 = vector.broadcast %cst_114 : f32 to vector<2x128xf32>
    %219 = arith.select %217, %218, %215 : vector<2x128xi1>, vector<2x128xf32>
    %220 = arith.extui %217 : vector<2x128xi1> to vector<2x128xi32>
    %221 = arith.sitofp %220 : vector<2x128xi32> to vector<2x128xf32>
    %222 = arith.truncf %221 : vector<2x128xf32> to vector<2x128xbf16>
    %c0_115 = arith.constant 0 : index
    %c0_116 = arith.constant 0 : index
    %223 = vector.load %arg2[%c0_115, %c0_116] : memref<128x512xbf16, #tpu.memory_space<vmem>>, vector<128x512xbf16>
    %cst_117 = arith.constant dense<0.000000e+00> : vector<2x512xf32>
    %224 = tpu.matmul %222, %223, %cst_117 {dimension_numbers = #tpu.dot_dimension_numbers<[1], [0], [0], [1], [0, 0, 1, 1], [], []>} : vector<2x128xbf16>, vector<128x512xbf16>, vector<2x512xf32> -> vector<2x512xf32>
    %c0_118 = arith.constant 0 : index
    %c0_119 = arith.constant 0 : index
    %225 = vector.load %arg3[%c0_118, %c0_119] : memref<1x512xf32, #tpu.memory_space<vmem>>, vector<1x512xf32>
    %226 = vector.broadcast %225 : vector<1x512xf32> to vector<2x512xf32>
    %227 = arith.addf %224, %226 : vector<2x512xf32>
    %228 = arith.addf %191, %227 : vector<2x512xf32>
    %cst_120 = arith.constant 1.000000e+00 : f32
    %229 = vector.broadcast %cst_120 : f32 to vector<2x512xf32>
    %230 = arith.cmpf oge, %228, %229 : vector<2x512xf32>
    %cst_121 = arith.constant 0.000000e+00 : f32
    %231 = vector.broadcast %cst_121 : f32 to vector<2x512xf32>
    %232 = arith.select %230, %231, %228 : vector<2x512xi1>, vector<2x512xf32>
    %233 = arith.extui %230 : vector<2x512xi1> to vector<2x512xi32>
    %234 = arith.sitofp %233 : vector<2x512xi32> to vector<2x512xf32>
    %235 = arith.truncf %234 : vector<2x512xf32> to vector<2x512xbf16>
    %c0_122 = arith.constant 0 : index
    %c0_123 = arith.constant 0 : index
    %236 = vector.load %arg4[%c0_122, %c0_123] : memref<512x512xbf16, #tpu.memory_space<vmem>>, vector<512x512xbf16>
    %cst_124 = arith.constant dense<0.000000e+00> : vector<2x512xf32>
    %237 = tpu.matmul %235, %236, %cst_124 {dimension_numbers = #tpu.dot_dimension_numbers<[1], [0], [0], [1], [0, 0, 1, 1], [], []>} : vector<2x512xbf16>, vector<512x512xbf16>, vector<2x512xf32> -> vector<2x512xf32>
    %c0_125 = arith.constant 0 : index
    %c0_126 = arith.constant 0 : index
    %238 = vector.load %arg5[%c0_125, %c0_126] : memref<1x512xf32, #tpu.memory_space<vmem>>, vector<1x512xf32>
    %239 = vector.broadcast %238 : vector<1x512xf32> to vector<2x512xf32>
    %240 = arith.addf %237, %239 : vector<2x512xf32>
    %241 = arith.addf %204, %240 : vector<2x512xf32>
    %cst_127 = arith.constant 1.000000e+00 : f32
    %242 = vector.broadcast %cst_127 : f32 to vector<2x512xf32>
    %243 = arith.cmpf oge, %241, %242 : vector<2x512xf32>
    %cst_128 = arith.constant 0.000000e+00 : f32
    %244 = vector.broadcast %cst_128 : f32 to vector<2x512xf32>
    %245 = arith.select %243, %244, %241 : vector<2x512xi1>, vector<2x512xf32>
    %246 = arith.extui %243 : vector<2x512xi1> to vector<2x512xi32>
    %247 = arith.sitofp %246 : vector<2x512xi32> to vector<2x512xf32>
    %248 = arith.truncf %247 : vector<2x512xf32> to vector<2x512xbf16>
    %c0_129 = arith.constant 0 : index
    %c0_130 = arith.constant 0 : index
    %249 = vector.load %arg6[%c0_129, %c0_130] : memref<512x128xbf16, #tpu.memory_space<vmem>>, vector<512x128xbf16>
    %cst_131 = arith.constant dense<0.000000e+00> : vector<2x128xf32>
    %250 = tpu.matmul %248, %249, %cst_131 {dimension_numbers = #tpu.dot_dimension_numbers<[1], [0], [0], [1], [0, 0, 1, 1], [], []>} : vector<2x512xbf16>, vector<512x128xbf16>, vector<2x128xf32> -> vector<2x128xf32>
    %c0_132 = arith.constant 0 : index
    %c0_133 = arith.constant 0 : index
    %251 = vector.load %arg7[%c0_132, %c0_133] : memref<1x128xf32, #tpu.memory_space<vmem>>, vector<1x128xf32>
    %252 = vector.broadcast %251 : vector<1x128xf32> to vector<2x128xf32>
    %253 = arith.addf %250, %252 : vector<2x128xf32>
    %254 = arith.addf %213, %253 : vector<2x128xf32>
    %255 = vector.extract_strided_slice %4 {offsets = [12, 0], sizes = [2, 128], strides = [1, 1]} : vector<16x128xf32> to vector<2x128xf32>
    %256 = arith.addf %219, %255 : vector<2x128xf32>
    %cst_134 = arith.constant 1.000000e+00 : f32
    %257 = vector.broadcast %cst_134 : f32 to vector<2x128xf32>
    %258 = arith.cmpf oge, %256, %257 : vector<2x128xf32>
    %cst_135 = arith.constant 0.000000e+00 : f32
    %259 = vector.broadcast %cst_135 : f32 to vector<2x128xf32>
    %260 = arith.select %258, %259, %256 : vector<2x128xi1>, vector<2x128xf32>
    %261 = arith.extui %258 : vector<2x128xi1> to vector<2x128xi32>
    %262 = arith.sitofp %261 : vector<2x128xi32> to vector<2x128xf32>
    %263 = arith.truncf %262 : vector<2x128xf32> to vector<2x128xbf16>
    %c0_136 = arith.constant 0 : index
    %c0_137 = arith.constant 0 : index
    %264 = vector.load %arg2[%c0_136, %c0_137] : memref<128x512xbf16, #tpu.memory_space<vmem>>, vector<128x512xbf16>
    %cst_138 = arith.constant dense<0.000000e+00> : vector<2x512xf32>
    %265 = tpu.matmul %263, %264, %cst_138 {dimension_numbers = #tpu.dot_dimension_numbers<[1], [0], [0], [1], [0, 0, 1, 1], [], []>} : vector<2x128xbf16>, vector<128x512xbf16>, vector<2x512xf32> -> vector<2x512xf32>
    %c0_139 = arith.constant 0 : index
    %c0_140 = arith.constant 0 : index
    %266 = vector.load %arg3[%c0_139, %c0_140] : memref<1x512xf32, #tpu.memory_space<vmem>>, vector<1x512xf32>
    %267 = vector.broadcast %266 : vector<1x512xf32> to vector<2x512xf32>
    %268 = arith.addf %265, %267 : vector<2x512xf32>
    %269 = arith.addf %232, %268 : vector<2x512xf32>
    %cst_141 = arith.constant 1.000000e+00 : f32
    %270 = vector.broadcast %cst_141 : f32 to vector<2x512xf32>
    %271 = arith.cmpf oge, %269, %270 : vector<2x512xf32>
    %cst_142 = arith.constant 0.000000e+00 : f32
    %272 = vector.broadcast %cst_142 : f32 to vector<2x512xf32>
    %273 = arith.select %271, %272, %269 : vector<2x512xi1>, vector<2x512xf32>
    %274 = arith.extui %271 : vector<2x512xi1> to vector<2x512xi32>
    %275 = arith.sitofp %274 : vector<2x512xi32> to vector<2x512xf32>
    %276 = arith.truncf %275 : vector<2x512xf32> to vector<2x512xbf16>
    %c0_143 = arith.constant 0 : index
    %c0_144 = arith.constant 0 : index
    %277 = vector.load %arg4[%c0_143, %c0_144] : memref<512x512xbf16, #tpu.memory_space<vmem>>, vector<512x512xbf16>
    %cst_145 = arith.constant dense<0.000000e+00> : vector<2x512xf32>
    %278 = tpu.matmul %276, %277, %cst_145 {dimension_numbers = #tpu.dot_dimension_numbers<[1], [0], [0], [1], [0, 0, 1, 1], [], []>} : vector<2x512xbf16>, vector<512x512xbf16>, vector<2x512xf32> -> vector<2x512xf32>
    %c0_146 = arith.constant 0 : index
    %c0_147 = arith.constant 0 : index
    %279 = vector.load %arg5[%c0_146, %c0_147] : memref<1x512xf32, #tpu.memory_space<vmem>>, vector<1x512xf32>
    %280 = vector.broadcast %279 : vector<1x512xf32> to vector<2x512xf32>
    %281 = arith.addf %278, %280 : vector<2x512xf32>
    %282 = arith.addf %245, %281 : vector<2x512xf32>
    %cst_148 = arith.constant 1.000000e+00 : f32
    %283 = vector.broadcast %cst_148 : f32 to vector<2x512xf32>
    %284 = arith.cmpf oge, %282, %283 : vector<2x512xf32>
    %cst_149 = arith.constant 0.000000e+00 : f32
    %285 = vector.broadcast %cst_149 : f32 to vector<2x512xf32>
    %286 = arith.select %284, %285, %282 : vector<2x512xi1>, vector<2x512xf32>
    %287 = arith.extui %284 : vector<2x512xi1> to vector<2x512xi32>
    %288 = arith.sitofp %287 : vector<2x512xi32> to vector<2x512xf32>
    %289 = arith.truncf %288 : vector<2x512xf32> to vector<2x512xbf16>
    %c0_150 = arith.constant 0 : index
    %c0_151 = arith.constant 0 : index
    %290 = vector.load %arg6[%c0_150, %c0_151] : memref<512x128xbf16, #tpu.memory_space<vmem>>, vector<512x128xbf16>
    %cst_152 = arith.constant dense<0.000000e+00> : vector<2x128xf32>
    %291 = tpu.matmul %289, %290, %cst_152 {dimension_numbers = #tpu.dot_dimension_numbers<[1], [0], [0], [1], [0, 0, 1, 1], [], []>} : vector<2x512xbf16>, vector<512x128xbf16>, vector<2x128xf32> -> vector<2x128xf32>
    %c0_153 = arith.constant 0 : index
    %c0_154 = arith.constant 0 : index
    %292 = vector.load %arg7[%c0_153, %c0_154] : memref<1x128xf32, #tpu.memory_space<vmem>>, vector<1x128xf32>
    %293 = vector.broadcast %292 : vector<1x128xf32> to vector<2x128xf32>
    %294 = arith.addf %291, %293 : vector<2x128xf32>
    %295 = arith.addf %254, %294 : vector<2x128xf32>
    %296 = vector.extract_strided_slice %4 {offsets = [14, 0], sizes = [2, 128], strides = [1, 1]} : vector<16x128xf32> to vector<2x128xf32>
    %297 = arith.addf %260, %296 : vector<2x128xf32>
    %cst_155 = arith.constant 1.000000e+00 : f32
    %298 = vector.broadcast %cst_155 : f32 to vector<2x128xf32>
    %299 = arith.cmpf oge, %297, %298 : vector<2x128xf32>
    %300 = arith.extui %299 : vector<2x128xi1> to vector<2x128xi32>
    %301 = arith.sitofp %300 : vector<2x128xi32> to vector<2x128xf32>
    %302 = arith.truncf %301 : vector<2x128xf32> to vector<2x128xbf16>
    %c0_156 = arith.constant 0 : index
    %c0_157 = arith.constant 0 : index
    %303 = vector.load %arg2[%c0_156, %c0_157] : memref<128x512xbf16, #tpu.memory_space<vmem>>, vector<128x512xbf16>
    %cst_158 = arith.constant dense<0.000000e+00> : vector<2x512xf32>
    %304 = tpu.matmul %302, %303, %cst_158 {dimension_numbers = #tpu.dot_dimension_numbers<[1], [0], [0], [1], [0, 0, 1, 1], [], []>} : vector<2x128xbf16>, vector<128x512xbf16>, vector<2x512xf32> -> vector<2x512xf32>
    %c0_159 = arith.constant 0 : index
    %c0_160 = arith.constant 0 : index
    %305 = vector.load %arg3[%c0_159, %c0_160] : memref<1x512xf32, #tpu.memory_space<vmem>>, vector<1x512xf32>
    %306 = vector.broadcast %305 : vector<1x512xf32> to vector<2x512xf32>
    %307 = arith.addf %304, %306 : vector<2x512xf32>
    %308 = arith.addf %273, %307 : vector<2x512xf32>
    %cst_161 = arith.constant 1.000000e+00 : f32
    %309 = vector.broadcast %cst_161 : f32 to vector<2x512xf32>
    %310 = arith.cmpf oge, %308, %309 : vector<2x512xf32>
    %311 = arith.extui %310 : vector<2x512xi1> to vector<2x512xi32>
    %312 = arith.sitofp %311 : vector<2x512xi32> to vector<2x512xf32>
    %313 = arith.truncf %312 : vector<2x512xf32> to vector<2x512xbf16>
    %c0_162 = arith.constant 0 : index
    %c0_163 = arith.constant 0 : index
    %314 = vector.load %arg4[%c0_162, %c0_163] : memref<512x512xbf16, #tpu.memory_space<vmem>>, vector<512x512xbf16>
    %cst_164 = arith.constant dense<0.000000e+00> : vector<2x512xf32>
    %315 = tpu.matmul %313, %314, %cst_164 {dimension_numbers = #tpu.dot_dimension_numbers<[1], [0], [0], [1], [0, 0, 1, 1], [], []>} : vector<2x512xbf16>, vector<512x512xbf16>, vector<2x512xf32> -> vector<2x512xf32>
    %c0_165 = arith.constant 0 : index
    %c0_166 = arith.constant 0 : index
    %316 = vector.load %arg5[%c0_165, %c0_166] : memref<1x512xf32, #tpu.memory_space<vmem>>, vector<1x512xf32>
    %317 = vector.broadcast %316 : vector<1x512xf32> to vector<2x512xf32>
    %318 = arith.addf %315, %317 : vector<2x512xf32>
    %319 = arith.addf %286, %318 : vector<2x512xf32>
    %cst_167 = arith.constant 1.000000e+00 : f32
    %320 = vector.broadcast %cst_167 : f32 to vector<2x512xf32>
    %321 = arith.cmpf oge, %319, %320 : vector<2x512xf32>
    %322 = arith.extui %321 : vector<2x512xi1> to vector<2x512xi32>
    %323 = arith.sitofp %322 : vector<2x512xi32> to vector<2x512xf32>
    %324 = arith.truncf %323 : vector<2x512xf32> to vector<2x512xbf16>
    %c0_168 = arith.constant 0 : index
    %c0_169 = arith.constant 0 : index
    %325 = vector.load %arg6[%c0_168, %c0_169] : memref<512x128xbf16, #tpu.memory_space<vmem>>, vector<512x128xbf16>
    %cst_170 = arith.constant dense<0.000000e+00> : vector<2x128xf32>
    %326 = tpu.matmul %324, %325, %cst_170 {dimension_numbers = #tpu.dot_dimension_numbers<[1], [0], [0], [1], [0, 0, 1, 1], [], []>} : vector<2x512xbf16>, vector<512x128xbf16>, vector<2x128xf32> -> vector<2x128xf32>
    %c0_171 = arith.constant 0 : index
    %c0_172 = arith.constant 0 : index
    %327 = vector.load %arg7[%c0_171, %c0_172] : memref<1x128xf32, #tpu.memory_space<vmem>>, vector<1x128xf32>
    %328 = vector.broadcast %327 : vector<1x128xf32> to vector<2x128xf32>
    %329 = arith.addf %326, %328 : vector<2x128xf32>
    %330 = arith.addf %295, %329 : vector<2x128xf32>
    %cst_173 = arith.constant 1.250000e-01 : f32
    %331 = vector.broadcast %cst_173 : f32 to vector<2x128xf32>
    %332 = arith.mulf %330, %331 : vector<2x128xf32>
    %c0_174 = arith.constant 0 : index
    %c0_175 = arith.constant 0 : index
    %333 = vector.load %arg8[%c0_174, %c0_175] : memref<2x128xf32, #tpu.memory_space<vmem>>, vector<2x128xf32>
    tpu.vector_store %arg8[%c0_174, %c0_175], %332 {strides = array<i32>} : memref<2x128xf32, #tpu.memory_space<vmem>>, vector<2x128xf32>,
    return
  }
}

</mosaic_0001>

<llo_original>
// kernel: tpu_custom_call.1
$region0: #{tpu_custom_call.1}
  #allocation0 [shape = 'u32[]', space=smem, size = 0x4, offset = 0x4, fixed_abs, tag = 'smem constant byte address 0x4 - core index']
  #allocation1 [shape = 'u32[144,128]{1,0:T(1,128)}', space=vmem, size = 0x12000, scoped, tag = 'internal scratch']
  %s0 = inlined_call_operand.hbm [shape: bf16[16,512], index: 0, kind: input, shape index: {}]
  %s1 = inlined_call_operand.hbm [shape: bf16[512,128], index: 1, kind: input, shape index: {}]
  %s2 = inlined_call_operand.hbm [shape: bf16[128,512], index: 2, kind: input, shape index: {}]
  %s3 = inlined_call_operand.vmem [shape: f32[1,512], index: 3, kind: input, shape index: {}]
  %s4 = inlined_call_operand.hbm [shape: bf16[512,512], index: 4, kind: input, shape index: {}]
  %s5 = inlined_call_operand.vmem [shape: f32[1,512], index: 5, kind: input, shape index: {}]
  %s6 = inlined_call_operand.hbm [shape: bf16[512,128], index: 6, kind: input, shape index: {}]
  %s7 = inlined_call_operand.vmem [shape: f32[1,128], index: 7, kind: input, shape index: {}]
  %s8 = inlined_call_operand.hbm [shape: f32[2,128], index: 8, kind: output, shape index: {}]
  %s9 = sld [smem:[#allocation0]]
  $region62: #{tpu_custom_call.1} parent=0
    _
  %s11 = ssub.s32 1, %s9
  %s12 = scalar_select 0, %s11, %s9
  $region1: #{tpu_custom_call.1} parent=0
    #allocation2 [shape = 'u8[16384]{0}', space=vmem, size = 0x4000, scoped, tag = 'input window, operand 0, single buffered']
    #allocation3 [shape = 's32[1]{0}', space=sflag, size = 0x4, scoped, tag = 'scoped memory for tpu_custom_call.1']
    #allocation4 [shape = 's32[1]{0}', space=sflag, size = 0x4, scoped, tag = 'scoped memory for tpu_custom_call.1']
    #allocation5 [shape = 'u8[131072]{0}', space=vmem, size = 0x20000, scoped, tag = 'input window, operand 1, single buffered']
    #allocation6 [shape = 's32[1]{0}', space=sflag, size = 0x4, scoped, tag = 'scoped memory for tpu_custom_call.1']
    #allocation7 [shape = 'u8[131072]{0}', space=vmem, size = 0x20000, scoped, tag = 'input window, operand 2, single buffered']
    #allocation8 [shape = 'u8[524288]{0}', space=vmem, size = 0x80000, scoped, tag = 'input window, operand 4, single buffered']
    #allocation9 [shape = 's32[1]{0}', space=sflag, size = 0x4, scoped, tag = 'scoped memory for tpu_custom_call.1']
    #allocation10 [shape = 'u8[131072]{0}', space=vmem, size = 0x20000, scoped, tag = 'input window, operand 6, single buffered']
    #allocation11 [shape = 'u8[1024]{0}', space=vmem, size = 0x400, scoped, tag = 'output window, operand 0, single buffered']
    %13 = vsyncpa [#allocation3], 0
    %14 = vsyncpa [#allocation6], 0
    %15 = vsyncpa [#allocation9], 0
    %16 = vsyncpa [#allocation4], 0
    // Predicated region
    $region2: #{tpu_custom_call.1} parent=1 // pred_check
      _
    $region3: #{tpu_custom_call.1} parent=1 // pred_check_branch
      %18 = sbr.rel (0) target = $region5
    $region4: #{tpu_custom_call.1} parent=1 // pred_region
      %s20 = ssub.s32 512, 512
      %21 = vsyncadd [#allocation3], %s20
      %s22 = sshll.u32 [#allocation2], 4
      %s23 = int_to_ptr.vmem [resolvable:$true] %s22
      %28 = dma.hbm_to_vmem [thread:$0]  %s0, 512, %s23, [#allocation3], 256, 256, 16
    $region5: #{tpu_custom_call.1} parent=1 // pred_fallthru
      _
    // Predicated region
    $region6: #{tpu_custom_call.1} parent=1 // pred_check
      _
    $region7: #{tpu_custom_call.1} parent=1 // pred_check_branch
      %30 = sbr.rel (0) target = $region9
    $region8: #{tpu_custom_call.1} parent=1 // pred_region
      %s32 = ssub.s32 4096, 4096
      %33 = vsyncadd [#allocation6], %s32
      %s34 = sshll.u32 [#allocation5], 4
      %s35 = int_to_ptr.vmem [resolvable:$true] %s34
      %40 = dma.hbm_to_vmem [thread:$0]  %s1, 4096, %s35, [#allocation6], 64, 64, 4
    $region9: #{tpu_custom_call.1} parent=1 // pred_fallthru
      _
    // Predicated region
    $region10: #{tpu_custom_call.1} parent=1 // pred_check
      _
    $region11: #{tpu_custom_call.1} parent=1 // pred_check_branch
      %42 = sbr.rel (0) target = $region13
    $region12: #{tpu_custom_call.1} parent=1 // pred_region
      %s44 = ssub.s32 4096, 4096
      %45 = vsyncadd [#allocation6], %s44
      %s46 = sshll.u32 [#allocation7], 4
      %s47 = int_to_ptr.vmem [resolvable:$true] %s46
      %52 = dma.hbm_to_vmem [thread:$0]  %s2, 4096, %s47, [#allocation6], 256, 256, 16
    $region13: #{tpu_custom_call.1} parent=1 // pred_fallthru
      _
    // Predicated region
    $region14: #{tpu_custom_call.1} parent=1 // pred_check
      _
    $region15: #{tpu_custom_call.1} parent=1 // pred_check_branch
      %54 = sbr.rel (0) target = $region17
    $region16: #{tpu_custom_call.1} parent=1 // pred_region
      _
    $region17: #{tpu_custom_call.1} parent=1 // pred_fallthru
      _
    // Predicated region
    $region18: #{tpu_custom_call.1} parent=1 // pred_check
      _
    $region19: #{tpu_custom_call.1} parent=1 // pred_check_branch
      %56 = sbr.rel (0) target = $region21
    $region20: #{tpu_custom_call.1} parent=1 // pred_region
      %s58 = ssub.s32 16384, 16384
      %59 = vsyncadd [#allocation9], %s58
      %s60 = sshll.u32 [#allocation8], 4
      %s61 = int_to_ptr.vmem [resolvable:$true] %s60
      %66 = dma.hbm_to_vmem [thread:$0]  %s4, 16384, %s61, [#allocation9], 256, 256, 16
    $region21: #{tpu_custom_call.1} parent=1 // pred_fallthru
      _
    // Predicated region
    $region22: #{tpu_custom_call.1} parent=1 // pred_check
      _
    $region23: #{tpu_custom_call.1} parent=1 // pred_check_branch
      %68 = sbr.rel (0) target = $region25
    $region24: #{tpu_custom_call.1} parent=1 // pred_region
      _
    $region25: #{tpu_custom_call.1} parent=1 // pred_fallthru
      _
    // Predicated region
    $region26: #{tpu_custom_call.1} parent=1 // pred_check
      _
    $region27: #{tpu_custom_call.1} parent=1 // pred_check_branch
      %70 = sbr.rel (0) target = $region29
    $region28: #{tpu_custom_call.1} parent=1 // pred_region
      %s72 = ssub.s32 4096, 4096
      %73 = vsyncadd [#allocation9], %s72
      %s74 = sshll.u32 [#allocation10], 4
      %s75 = int_to_ptr.vmem [resolvable:$true] %s74
      %80 = dma.hbm_to_vmem [thread:$0]  %s6, 4096, %s75, [#allocation9], 64, 64, 4
    $region29: #{tpu_custom_call.1} parent=1 // pred_fallthru
      _
    // Predicated region
    $region30: #{tpu_custom_call.1} parent=1 // pred_check
      _
    $region31: #{tpu_custom_call.1} parent=1 // pred_check_branch
      %82 = sbr.rel (0) target = $region33
    $region32: #{tpu_custom_call.1} parent=1 // pred_region
      _
    $region33: #{tpu_custom_call.1} parent=1 // pred_fallthru
      _
    // Predicated region
    $region34: #{tpu_custom_call.1} parent=1 // pred_check
      _
    $region35: #{tpu_custom_call.1} parent=1 // pred_check_branch
      %84 = sbr.rel (0) target = $region37
    $region36: #{tpu_custom_call.1} parent=1 // pred_region
      %85 = dma.done [#allocation3], 512
    $region37: #{tpu_custom_call.1} parent=1 // pred_fallthru
      _
    // Predicated region
    $region38: #{tpu_custom_call.1} parent=1 // pred_check
      _
    $region39: #{tpu_custom_call.1} parent=1 // pred_check_branch
      %87 = sbr.rel (0) target = $region41
    $region40: #{tpu_custom_call.1} parent=1 // pred_region
      %88 = dma.done [#allocation6], 4096
    $region41: #{tpu_custom_call.1} parent=1 // pred_fallthru
      _
    // Predicated region
    $region42: #{tpu_custom_call.1} parent=1 // pred_check
      _
    $region43: #{tpu_custom_call.1} parent=1 // pred_check_branch
      %90 = sbr.rel (0) target = $region45
    $region44: #{tpu_custom_call.1} parent=1 // pred_region
      %91 = dma.done [#allocation6], 4096
    $region45: #{tpu_custom_call.1} parent=1 // pred_fallthru
      _
    // Predicated region
    $region46: #{tpu_custom_call.1} parent=1 // pred_check
      _
    $region47: #{tpu_custom_call.1} parent=1 // pred_check_branch
      %93 = sbr.rel (0) target = $region49
    $region48: #{tpu_custom_call.1} parent=1 // pred_region
      %94 = dma.done [#allocation9], 16384
    $region49: #{tpu_custom_call.1} parent=1 // pred_fallthru
      _
    // Predicated region
    $region50: #{tpu_custom_call.1} parent=1 // pred_check
      _
    $region51: #{tpu_custom_call.1} parent=1 // pred_check_branch
      %96 = sbr.rel (0) target = $region53
    $region52: #{tpu_custom_call.1} parent=1 // pred_region
      %97 = dma.done [#allocation9], 4096
    $region53: #{tpu_custom_call.1} parent=1 // pred_fallthru
      _
    %v99 = vld [vmem:[#allocation2] sm:$0xff]
    %v100 = vld [vmem:[#allocation2 + $0x8] sm:$0xff]
    %v101 = vld [vmem:[#allocation2 + $0x10] sm:$0xff]
    %v102 = vld [vmem:[#allocation2 + $0x18] sm:$0xff]
    %v103 = vld [vmem:[#allocation5] sm:$0xf]
    %v104 = vld [vmem:[#allocation5 + $0x4] sm:$0xf]
    %v105 = vld [vmem:[#allocation5 + $0x8] sm:$0xf]
    %v106 = vld [vmem:[#allocation5 + $0xc] sm:$0xf]
    %v107 = vld [vmem:[#allocation5 + $0x10] sm:$0xf]
    %v108 = vld [vmem:[#allocation5 + $0x14] sm:$0xf]
    %v109 = vld [vmem:[#allocation5 + $0x18] sm:$0xf]
    %v110 = vld [vmem:[#allocation5 + $0x1c] sm:$0xf]
    %v111 = vld [vmem:[#allocation5 + $0x20] sm:$0xf]
    %v112 = vld [vmem:[#allocation5 + $0x24] sm:$0xf]
    %v113 = vld [vmem:[#allocation5 + $0x28] sm:$0xf]
    %v114 = vld [vmem:[#allocation5 + $0x2c] sm:$0xf]
    %v115 = vld [vmem:[#allocation5 + $0x30] sm:$0xf]
    %v116 = vld [vmem:[#allocation5 + $0x34] sm:$0xf]
    %v117 = vld [vmem:[#allocation5 + $0x38] sm:$0xf]
    %v118 = vld [vmem:[#allocation5 + $0x3c] sm:$0xf]
    %v119 = vld [vmem:[#allocation5 + $0x40] sm:$0xf]
    %v120 = vld [vmem:[#allocation5 + $0x44] sm:$0xf]
    %v121 = vld [vmem:[#allocation5 + $0x48] sm:$0xf]
    %v122 = vld [vmem:[#allocation5 + $0x4c] sm:$0xf]
    %v123 = vld [vmem:[#allocation5 + $0x50] sm:$0xf]
    %v124 = vld [vmem:[#allocation5 + $0x54] sm:$0xf]
    %v125 = vld [vmem:[#allocation5 + $0x58] sm:$0xf]
    %v126 = vld [vmem:[#allocation5 + $0x5c] sm:$0xf]
    %v127 = vld [vmem:[#allocation5 + $0x60] sm:$0xf]
    %v128 = vld [vmem:[#allocation5 + $0x64] sm:$0xf]
    %v129 = vld [vmem:[#allocation5 + $0x68] sm:$0xf]
    %v130 = vld [vmem:[#allocation5 + $0x6c] sm:$0xf]
    %v131 = vld [vmem:[#allocation5 + $0x70] sm:$0xf]
    %v132 = vld [vmem:[#allocation5 + $0x74] sm:$0xf]
    %v133 = vld [vmem:[#allocation5 + $0x78] sm:$0xf]
    %v134 = vld [vmem:[#allocation5 + $0x7c] sm:$0xf]
    %v135 = vld [vmem:[#allocation5 + $0x80] sm:$0xf]
    %v136 = vld [vmem:[#allocation5 + $0x84] sm:$0xf]
    %v137 = vld [vmem:[#allocation5 + $0x88] sm:$0xf]
    %v138 = vld [vmem:[#allocation5 + $0x8c] sm:$0xf]
    %v139 = vld [vmem:[#allocation5 + $0x90] sm:$0xf]
    %v140 = vld [vmem:[#allocation5 + $0x94] sm:$0xf]
    %v141 = vld [vmem:[#allocation5 + $0x98] sm:$0xf]
    %v142 = vld [vmem:[#allocation5 + $0x9c] sm:$0xf]
    %v143 = vld [vmem:[#allocation5 + $0xa0] sm:$0xf]
    %v144 = vld [vmem:[#allocation5 + $0xa4] sm:$0xf]
    %v145 = vld [vmem:[#allocation5 + $0xa8] sm:$0xf]
    %v146 = vld [vmem:[#allocation5 + $0xac] sm:$0xf]
    %v147 = vld [vmem:[#allocation5 + $0xb0] sm:$0xf]
    %v148 = vld [vmem:[#allocation5 + $0xb4] sm:$0xf]
    %v149 = vld [vmem:[#allocation5 + $0xb8] sm:$0xf]
    %v150 = vld [vmem:[#allocation5 + $0xbc] sm:$0xf]
    %v151 = vld [vmem:[#allocation5 + $0xc0] sm:$0xf]
    %v152 = vld [vmem:[#allocation5 + $0xc4] sm:$0xf]
    %v153 = vld [vmem:[#allocation5 + $0xc8] sm:$0xf]
    %v154 = vld [vmem:[#allocation5 + $0xcc] sm:$0xf]
    %v155 = vld [vmem:[#allocation5 + $0xd0] sm:$0xf]
    %v156 = vld [vmem:[#allocation5 + $0xd4] sm:$0xf]
    %v157 = vld [vmem:[#allocation5 + $0xd8] sm:$0xf]
    %v158 = vld [vmem:[#allocation5 + $0xdc] sm:$0xf]
    %v159 = vld [vmem:[#allocation5 + $0xe0] sm:$0xf]
    %v160 = vld [vmem:[#allocation5 + $0xe4] sm:$0xf]
    %v161 = vld [vmem:[#allocation5 + $0xe8] sm:$0xf]
    %v162 = vld [vmem:[#allocation5 + $0xec] sm:$0xf]
    %v163 = vld [vmem:[#allocation5 + $0xf0] sm:$0xf]
    %v164 = vld [vmem:[#allocation5 + $0xf4] sm:$0xf]
    %v165 = vld [vmem:[#allocation5 + $0xf8] sm:$0xf]
    %v166 = vld [vmem:[#allocation5 + $0xfc] sm:$0xf]
    %v171 = vunpack.c.l.b16 %v99
    %v172 = vunpack.c.h.b16 %v99
    %v173 = vunpack.c.l.b16 %v100
    %v174 = vunpack.c.h.b16 %v100
    %v175 = vunpack.c.l.b16 %v101
    %v176 = vunpack.c.h.b16 %v101
    %v177 = vunpack.c.l.b16 %v102
    %v178 = vunpack.c.h.b16 %v102
    %v179 = vpack.c.b16 %v175, %v171
    %v180 = vpack.c.b16 %v176, %v172
    %v181 = vpack.c.b16 %v177, %v173
    %v182 = vpack.c.b16 %v178, %v174
    %v251 = vunpack.c.l.b16 %v103
    %v252 = vunpack.c.l.b16 %v104
    %v253 = vunpack.c.l.b16 %v105
    %v254 = vunpack.c.l.b16 %v106
    %v255 = vunpack.c.l.b16 %v107
    %v256 = vunpack.c.l.b16 %v108
    %v257 = vunpack.c.l.b16 %v109
    %v258 = vunpack.c.l.b16 %v110
    %v259 = vunpack.c.l.b16 %v111
    %v260 = vunpack.c.l.b16 %v112
    %v261 = vunpack.c.l.b16 %v113
    %v262 = vunpack.c.l.b16 %v114
    %v263 = vunpack.c.l.b16 %v115
    %v264 = vunpack.c.l.b16 %v116
    %v265 = vunpack.c.l.b16 %v117
    %v266 = vunpack.c.l.b16 %v118
    %v267 = vunpack.c.l.b16 %v119
    %v268 = vunpack.c.l.b16 %v120
    %v269 = vunpack.c.l.b16 %v121
    %v270 = vunpack.c.l.b16 %v122
    %v271 = vunpack.c.l.b16 %v123
    %v272 = vunpack.c.l.b16 %v124
    %v273 = vunpack.c.l.b16 %v125
    %v274 = vunpack.c.l.b16 %v126
    %v275 = vunpack.c.l.b16 %v127
    %v276 = vunpack.c.l.b16 %v128
    %v277 = vunpack.c.l.b16 %v129
    %v278 = vunpack.c.l.b16 %v130
    %v279 = vunpack.c.l.b16 %v131
    %v280 = vunpack.c.l.b16 %v132
    %v281 = vunpack.c.l.b16 %v133
    %v282 = vunpack.c.l.b16 %v134
    %v283 = vunpack.c.l.b16 %v135
    %v284 = vunpack.c.l.b16 %v136
    %v285 = vunpack.c.l.b16 %v137
    %v286 = vunpack.c.l.b16 %v138
    %v287 = vunpack.c.l.b16 %v139
    %v288 = vunpack.c.l.b16 %v140
    %v289 = vunpack.c.l.b16 %v141
    %v290 = vunpack.c.l.b16 %v142
    %v291 = vunpack.c.l.b16 %v143
    %v292 = vunpack.c.l.b16 %v144
    %v293 = vunpack.c.l.b16 %v145
    %v294 = vunpack.c.l.b16 %v146
    %v295 = vunpack.c.l.b16 %v147
    %v296 = vunpack.c.l.b16 %v148
    %v297 = vunpack.c.l.b16 %v149
    %v298 = vunpack.c.l.b16 %v150
    %v299 = vunpack.c.l.b16 %v151
    %v300 = vunpack.c.l.b16 %v152
    %v301 = vunpack.c.l.b16 %v153
    %v302 = vunpack.c.l.b16 %v154
    %v303 = vunpack.c.l.b16 %v155
    %v304 = vunpack.c.l.b16 %v156
    %v305 = vunpack.c.l.b16 %v157
    %v306 = vunpack.c.l.b16 %v158
    %v307 = vunpack.c.l.b16 %v159
    %v308 = vunpack.c.l.b16 %v160
    %v309 = vunpack.c.l.b16 %v161
    %v310 = vunpack.c.l.b16 %v162
    %v311 = vunpack.c.l.b16 %v163
    %v312 = vunpack.c.l.b16 %v164
    %v313 = vunpack.c.l.b16 %v165
    %v314 = vunpack.c.l.b16 %v166
    %v315 = vpack.c.b16 %v252, %v251
    %v316 = vpack.c.b16 %v254, %v253
    %v317 = vpack.c.b16 %v256, %v255
    %v318 = vpack.c.b16 %v258, %v257
    %v319 = vpack.c.b16 %v260, %v259
    %v320 = vpack.c.b16 %v262, %v261
    %v321 = vpack.c.b16 %v264, %v263
    %v322 = vpack.c.b16 %v266, %v265
    %v323 = vpack.c.b16 %v268, %v267
    %v324 = vpack.c.b16 %v270, %v269
    %v325 = vpack.c.b16 %v272, %v271
    %v326 = vpack.c.b16 %v274, %v273
    %v327 = vpack.c.b16 %v276, %v275
    %v328 = vpack.c.b16 %v278, %v277
    %v329 = vpack.c.b16 %v280, %v279
    %v330 = vpack.c.b16 %v282, %v281
    %v331 = vpack.c.b16 %v284, %v283
    %v332 = vpack.c.b16 %v286, %v285
    %v333 = vpack.c.b16 %v288, %v287
    %v334 = vpack.c.b16 %v290, %v289
    %v335 = vpack.c.b16 %v292, %v291
    %v336 = vpack.c.b16 %v294, %v293
    %v337 = vpack.c.b16 %v296, %v295
    %v338 = vpack.c.b16 %v298, %v297
    %v339 = vpack.c.b16 %v300, %v299
    %v340 = vpack.c.b16 %v302, %v301
    %v341 = vpack.c.b16 %v304, %v303
    %v342 = vpack.c.b16 %v306, %v305
    %v343 = vpack.c.b16 %v308, %v307
    %v344 = vpack.c.b16 %v310, %v309
    %v345 = vpack.c.b16 %v312, %v311
    %v346 = vpack.c.b16 %v314, %v313
    %379 = vmatprep.subr.bf16.mxu0 0
    %380 = vmatpush1.bf16.msra.mxu0 %v322
    %381 = vmatprep.subr.bf16.mxu0 0
    %382 = vmatpush1.bf16.msra.mxu0 %v321
    %383 = vmatprep.subr.bf16.mxu0 0
    %384 = vmatpush1.bf16.msra.mxu0 %v320
    %385 = vmatprep.subr.bf16.mxu0 0
    %386 = vmatpush1.bf16.msra.mxu0 %v319
    %387 = vmatprep.subr.bf16.mxu0 0
    %388 = vmatpush1.bf16.msra.mxu0 %v318
    %389 = vmatprep.subr.bf16.mxu0 0
    %390 = vmatpush1.bf16.msra.mxu0 %v317
    %391 = vmatprep.subr.bf16.mxu0 0
    %392 = vmatpush1.bf16.msra.mxu0 %v316
    %393 = vmatprep.subr.bf16.mxu0 0
    %394 = vmatpush1.bf16.msra.mxu0 %v315
    %395 = vmatprep.subr.bf16.mxu0 0
    %396 = vmatpush2.bf16.msra.mxu0 %v330
    %397 = vmatprep.subr.bf16.mxu0 0
    %398 = vmatpush2.bf16.msra.mxu0 %v329
    %399 = vmatprep.subr.bf16.mxu0 0
    %400 = vmatpush2.bf16.msra.mxu0 %v328
    %401 = vmatprep.subr.bf16.mxu0 0
    %402 = vmatpush2.bf16.msra.mxu0 %v327
    %403 = vmatprep.subr.bf16.mxu0 0
    %404 = vmatpush2.bf16.msra.mxu0 %v326
    %405 = vmatprep.subr.bf16.mxu0 0
    %406 = vmatpush2.bf16.msra.mxu0 %v325
    %407 = vmatprep.subr.bf16.mxu0 0
    %408 = vmatpush2.bf16.msra.mxu0 %v324
    %409 = vmatprep.subr.bf16.mxu0 0
    %410 = vmatpush2.bf16.msra.mxu0 %v323
    %411 = vmatprep.mubr.bf16.mxu0 %v180
    %412 = vmatmul.mubr.bf16.gmra.mxu0 %v179
    %v413 = vpop.f32.mrf.mxu0
    %v414 = vadd.f32 0.0, %v413
    %v415 = vpop.f32.mrf.mxu0
    %v416 = vpop.f32.mrf.mxu0
    %v417 = vadd.f32 0.0, %v416
    %v418 = vpop.f32.mrf.mxu0
    %419 = vdwg.mxu0
    %420 = vmatprep.subr.bf16.mxu0 0
    %421 = vmatpush1.bf16.msra.mxu0 %v338
    %422 = vmatprep.subr.bf16.mxu0 0
    %423 = vmatpush1.bf16.msra.mxu0 %v337
    %424 = vmatprep.subr.bf16.mxu0 0
    %425 = vmatpush1.bf16.msra.mxu0 %v336
    %426 = vmatprep.subr.bf16.mxu0 0
    %427 = vmatpush1.bf16.msra.mxu0 %v335
    %428 = vmatprep.subr.bf16.mxu0 0
    %429 = vmatpush1.bf16.msra.mxu0 %v334
    %430 = vmatprep.subr.bf16.mxu0 0
    %431 = vmatpush1.bf16.msra.mxu0 %v333
    %432 = vmatprep.subr.bf16.mxu0 0
    %433 = vmatpush1.bf16.msra.mxu0 %v332
    %434 = vmatprep.subr.bf16.mxu0 0
    %435 = vmatpush1.bf16.msra.mxu0 %v331
    %436 = vmatprep.subr.bf16.mxu0 0
    %437 = vmatpush2.bf16.msra.mxu0 %v346
    %438 = vmatprep.subr.bf16.mxu0 0
    %439 = vmatpush2.bf16.msra.mxu0 %v345
    %440 = vmatprep.subr.bf16.mxu0 0
    %441 = vmatpush2.bf16.msra.mxu0 %v344
    %442 = vmatprep.subr.bf16.mxu0 0
    %443 = vmatpush2.bf16.msra.mxu0 %v343
    %444 = vmatprep.subr.bf16.mxu0 0
    %445 = vmatpush2.bf16.msra.mxu0 %v342
    %446 = vmatprep.subr.bf16.mxu0 0
    %447 = vmatpush2.bf16.msra.mxu0 %v341
    %448 = vmatprep.subr.bf16.mxu0 0
    %449 = vmatpush2.bf16.msra.mxu0 %v340
    %450 = vmatprep.subr.bf16.mxu0 0
    %451 = vmatpush2.bf16.msra.mxu0 %v339
    %452 = vmatprep.mubr.bf16.mxu0 %v182
    %453 = vmatmul.mubr.bf16.gmra.mxu0 %v181
    %v454 = vpop.f32.mrf.mxu0
    %v455 = vadd.f32 %v414, %v454
    %v456 = vpop.f32.mrf.mxu0
    %v457 = vpop.f32.mrf.mxu0
    %v458 = vadd.f32 %v417, %v457
    %v459 = vpop.f32.mrf.mxu0
    %460 = vdwg.mxu0
    %v461 = vmul.f32 %v455, 0.11111111
    %v462 = vmul.f32 %v458, 0.11111111
    %v463 = vadd.f32 %v461, 0.0
    %vm464 = vcmp.ge.f32.partialorder %v463, 1.0
    %v465 = vsel %vm464, 0.0, %v463
    %v466 = vsel %vm464, 1, 0
    %v467 = vcvt.s32.f32 %v466
    %v468 = vpack.c.bf16 %v467, %v467
    %v469 = vld [vmem:[#allocation7] sm:$0xff]
    %v470 = vld [vmem:[#allocation7 + $0x8] sm:$0xff]
    %v471 = vld [vmem:[#allocation7 + $0x10] sm:$0xff]
    %v472 = vld [vmem:[#allocation7 + $0x18] sm:$0xff]
    %v473 = vld [vmem:[#allocation7 + $0x20] sm:$0xff]
    %v474 = vld [vmem:[#allocation7 + $0x28] sm:$0xff]
    %v475 = vld [vmem:[#allocation7 + $0x30] sm:$0xff]
    %v476 = vld [vmem:[#allocation7 + $0x38] sm:$0xff]
    %v477 = vld [vmem:[#allocation7 + $0x40] sm:$0xff]
    %v478 = vld [vmem:[#allocation7 + $0x48] sm:$0xff]
    %v479 = vld [vmem:[#allocation7 + $0x50] sm:$0xff]
    %v480 = vld [vmem:[#allocation7 + $0x58] sm:$0xff]
    %v481 = vld [vmem:[#allocation7 + $0x60] sm:$0xff]
    %v482 = vld [vmem:[#allocation7 + $0x68] sm:$0xff]
    %v483 = vld [vmem:[#allocation7 + $0x70] sm:$0xff]
    %v484 = vld [vmem:[#allocation7 + $0x78] sm:$0xff]
    %v485 = vld [vmem:[#allocation7 + $0x80] sm:$0xff]
    %v486 = vld [vmem:[#allocation7 + $0x88] sm:$0xff]
    %v487 = vld [vmem:[#allocation7 + $0x90] sm:$0xff]
    %v488 = vld [vmem:[#allocation7 + $0x98] sm:$0xff]
    %v489 = vld [vmem:[#allocation7 + $0xa0] sm:$0xff]
    %v490 = vld [vmem:[#allocation7 + $0xa8] sm:$0xff]
    %v491 = vld [vmem:[#allocation7 + $0xb0] sm:$0xff]
    %v492 = vld [vmem:[#allocation7 + $0xb8] sm:$0xff]
    %v493 = vld [vmem:[#allocation7 + $0xc0] sm:$0xff]
    %v494 = vld [vmem:[#allocation7 + $0xc8] sm:$0xff]
    %v495 = vld [vmem:[#allocation7 + $0xd0] sm:$0xff]
    %v496 = vld [vmem:[#allocation7 + $0xd8] sm:$0xff]
    %v497 = vld [vmem:[#allocation7 + $0xe0] sm:$0xff]
    %v498 = vld [vmem:[#allocation7 + $0xe8] sm:$0xff]
    %v499 = vld [vmem:[#allocation7 + $0xf0] sm:$0xff]
    %v500 = vld [vmem:[#allocation7 + $0xf8] sm:$0xff]
    %v501 = vld [vmem:[%s3] sm:$0xf]
    %v503 = vlaneseq
    %v504 = vshrl.u32 %v503, 7
    %v505 = vsub.s32 0, %v504
    %v506 = vrot.slane %v501, %v505
    %v507 = vlaneseq
    %v508 = vshrl.u32 %v507, 7
    %v509 = vsub.s32 1, %v508
    %v510 = vrot.slane %v501, %v509
    %v511 = vlaneseq
    %v512 = vshrl.u32 %v511, 7
    %v513 = vsub.s32 2, %v512
    %v514 = vrot.slane %v501, %v513
    %v515 = vlaneseq
    %v516 = vshrl.u32 %v515, 7
    %v517 = vsub.s32 3, %v516
    %v518 = vrot.slane %v501, %v517
    %v555 = vunpack.c.l.b16 %v469
    %v556 = vunpack.c.h.b16 %v469
    %v557 = vunpack.c.l.b16 %v470
    %v558 = vunpack.c.h.b16 %v470
    %v559 = vunpack.c.l.b16 %v471
    %v560 = vunpack.c.h.b16 %v471
    %v561 = vunpack.c.l.b16 %v472
    %v562 = vunpack.c.h.b16 %v472
    %v563 = vunpack.c.l.b16 %v473
    %v564 = vunpack.c.h.b16 %v473
    %v565 = vunpack.c.l.b16 %v474
    %v566 = vunpack.c.h.b16 %v474
    %v567 = vunpack.c.l.b16 %v475
    %v568 = vunpack.c.h.b16 %v475
    %v569 = vunpack.c.l.b16 %v476
    %v570 = vunpack.c.h.b16 %v476
    %v571 = vunpack.c.l.b16 %v477
    %v572 = vunpack.c.h.b16 %v477
    %v573 = vunpack.c.l.b16 %v478
    %v574 = vunpack.c.h.b16 %v478
    %v575 = vunpack.c.l.b16 %v479
    %v576 = vunpack.c.h.b16 %v479
    %v577 = vunpack.c.l.b16 %v480
    %v578 = vunpack.c.h.b16 %v480
    %v579 = vunpack.c.l.b16 %v481
    %v580 = vunpack.c.h.b16 %v481
    %v581 = vunpack.c.l.b16 %v482
    %v582 = vunpack.c.h.b16 %v482
    %v583 = vunpack.c.l.b16 %v483
    %v584 = vunpack.c.h.b16 %v483
    %v585 = vunpack.c.l.b16 %v484
    %v586 = vunpack.c.h.b16 %v484
    %v587 = vunpack.c.l.b16 %v485
    %v588 = vunpack.c.h.b16 %v485
    %v589 = vunpack.c.l.b16 %v486
    %v590 = vunpack.c.h.b16 %v486
    %v591 = vunpack.c.l.b16 %v487
    %v592 = vunpack.c.h.b16 %v487
    %v593 = vunpack.c.l.b16 %v488
    %v594 = vunpack.c.h.b16 %v488
    %v595 = vunpack.c.l.b16 %v489
    %v596 = vunpack.c.h.b16 %v489
    %v597 = vunpack.c.l.b16 %v490
    %v598 = vunpack.c.h.b16 %v490
    %v599 = vunpack.c.l.b16 %v491
    %v600 = vunpack.c.h.b16 %v491
    %v601 = vunpack.c.l.b16 %v492
    %v602 = vunpack.c.h.b16 %v492
    %v603 = vunpack.c.l.b16 %v493
    %v604 = vunpack.c.h.b16 %v493
    %v605 = vunpack.c.l.b16 %v494
    %v606 = vunpack.c.h.b16 %v494
    %v607 = vunpack.c.l.b16 %v495
    %v608 = vunpack.c.h.b16 %v495
    %v609 = vunpack.c.l.b16 %v496
    %v610 = vunpack.c.h.b16 %v496
    %v611 = vunpack.c.l.b16 %v497
    %v612 = vunpack.c.h.b16 %v497
    %v613 = vunpack.c.l.b16 %v498
    %v614 = vunpack.c.h.b16 %v498
    %v615 = vunpack.c.l.b16 %v499
    %v616 = vunpack.c.h.b16 %v499
    %v617 = vunpack.c.l.b16 %v500
    %v618 = vunpack.c.h.b16 %v500
    %v619 = vpack.c.b16 %v559, %v555
    %v620 = vpack.c.b16 %v560, %v556
    %v621 = vpack.c.b16 %v561, %v557
    %v622 = vpack.c.b16 %v562, %v558
    %v623 = vpack.c.b16 %v567, %v563
    %v624 = vpack.c.b16 %v568, %v564
    %v625 = vpack.c.b16 %v569, %v565
    %v626 = vpack.c.b16 %v570, %v566
    %v627 = vpack.c.b16 %v575, %v571
    %v628 = vpack.c.b16 %v576, %v572
    %v629 = vpack.c.b16 %v577, %v573
    %v630 = vpack.c.b16 %v578, %v574
    %v631 = vpack.c.b16 %v583, %v579
    %v632 = vpack.c.b16 %v584, %v580
    %v633 = vpack.c.b16 %v585, %v581
    %v634 = vpack.c.b16 %v586, %v582
    %v635 = vpack.c.b16 %v591, %v587
    %v636 = vpack.c.b16 %v592, %v588
    %v637 = vpack.c.b16 %v593, %v589
    %v638 = vpack.c.b16 %v594, %v590
    %v639 = vpack.c.b16 %v599, %v595
    %v640 = vpack.c.b16 %v600, %v596
    %v641 = vpack.c.b16 %v601, %v597
    %v642 = vpack.c.b16 %v602, %v598
    %v643 = vpack.c.b16 %v607, %v603
    %v644 = vpack.c.b16 %v608, %v604
    %v645 = vpack.c.b16 %v609, %v605
    %v646 = vpack.c.b16 %v610, %v606
    %v647 = vpack.c.b16 %v615, %v611
    %v648 = vpack.c.b16 %v616, %v612
    %v649 = vpack.c.b16 %v617, %v613
    %v650 = vpack.c.b16 %v618, %v614
    %683 = vmatprep.subr.bf16.mxu0 %v648
    %684 = vmatpush1.bf16.msra.mxu0 %v647
    %685 = vmatprep.subr.bf16.mxu0 %v644
    %686 = vmatpush1.bf16.msra.mxu0 %v643
    %687 = vmatprep.subr.bf16.mxu0 %v640
    %688 = vmatpush1.bf16.msra.mxu0 %v639
    %689 = vmatprep.subr.bf16.mxu0 %v636
    %690 = vmatpush1.bf16.msra.mxu0 %v635
    %691 = vmatprep.subr.bf16.mxu0 %v632
    %692 = vmatpush1.bf16.msra.mxu0 %v631
    %693 = vmatprep.subr.bf16.mxu0 %v628
    %694 = vmatpush1.bf16.msra.mxu0 %v627
    %695 = vmatprep.subr.bf16.mxu0 %v624
    %696 = vmatpush1.bf16.msra.mxu0 %v623
    %697 = vmatprep.subr.bf16.mxu0 %v620
    %698 = vmatpush1.bf16.msra.mxu0 %v619
    %699 = vmatprep.subr.bf16.mxu0 0
    %700 = vmatpush2.bf16.msra.mxu0 0
    %701 = vmatprep.subr.bf16.mxu0 0
    %702 = vmatpush2.bf16.msra.mxu0 0
    %703 = vmatprep.subr.bf16.mxu0 0
    %704 = vmatpush2.bf16.msra.mxu0 0
    %705 = vmatprep.subr.bf16.mxu0 0
    %706 = vmatpush2.bf16.msra.mxu0 0
    %707 = vmatprep.subr.bf16.mxu0 0
    %708 = vmatpush2.bf16.msra.mxu0 0
    %709 = vmatprep.subr.bf16.mxu0 0
    %710 = vmatpush2.bf16.msra.mxu0 0
    %711 = vmatprep.subr.bf16.mxu0 0
    %712 = vmatpush2.bf16.msra.mxu0 0
    %713 = vmatprep.subr.bf16.mxu0 0
    %714 = vmatpush2.bf16.msra.mxu0 0
    %715 = vmatprep.mubr.bf16.mxu0 0
    %716 = vmatmul.mubr.bf16.gmra.mxu0 %v468
    %v717 = vpop.f32.mrf.mxu0
    %v718 = vadd.f32 %v506, %v717
    %v719 = vpop.f32.mrf.mxu0
    %v720 = vadd.f32 %v510, %v719
    %v721 = vpop.f32.mrf.mxu0
    %v722 = vpop.f32.mrf.mxu0
    %723 = vdwg.mxu0
    %724 = vmatprep.subr.bf16.mxu0 %v650
    %725 = vmatpush1.bf16.msra.mxu0 %v649
    %726 = vmatprep.subr.bf16.mxu0 %v646
    %727 = vmatpush1.bf16.msra.mxu0 %v645
    %728 = vmatprep.subr.bf16.mxu0 %v642
    %729 = vmatpush1.bf16.msra.mxu0 %v641
    %730 = vmatprep.subr.bf16.mxu0 %v638
    %731 = vmatpush1.bf16.msra.mxu0 %v637
    %732 = vmatprep.subr.bf16.mxu0 %v634
    %733 = vmatpush1.bf16.msra.mxu0 %v633
    %734 = vmatprep.subr.bf16.mxu0 %v630
    %735 = vmatpush1.bf16.msra.mxu0 %v629
    %736 = vmatprep.subr.bf16.mxu0 %v626
    %737 = vmatpush1.bf16.msra.mxu0 %v625
    %738 = vmatprep.subr.bf16.mxu0 %v622
    %739 = vmatpush1.bf16.msra.mxu0 %v621
    %740 = vmatprep.subr.bf16.mxu0 0
    %741 = vmatpush2.bf16.msra.mxu0 0
    %742 = vmatprep.subr.bf16.mxu0 0
    %743 = vmatpush2.bf16.msra.mxu0 0
    %744 = vmatprep.subr.bf16.mxu0 0
    %745 = vmatpush2.bf16.msra.mxu0 0
    %746 = vmatprep.subr.bf16.mxu0 0
    %747 = vmatpush2.bf16.msra.mxu0 0
    %748 = vmatprep.subr.bf16.mxu0 0
    %749 = vmatpush2.bf16.msra.mxu0 0
    %750 = vmatprep.subr.bf16.mxu0 0
    %751 = vmatpush2.bf16.msra.mxu0 0
    %752 = vmatprep.subr.bf16.mxu0 0
    %753 = vmatpush2.bf16.msra.mxu0 0
    %754 = vmatprep.subr.bf16.mxu0 0
    %755 = vmatpush2.bf16.msra.mxu0 0
    %756 = vmatprep.mubr.bf16.mxu0 0
    %757 = vmatmul.mubr.bf16.gmra.mxu0 %v468
    %v758 = vpop.f32.mrf.mxu0
    %v759 = vadd.f32 %v514, %v758
    %v760 = vpop.f32.mrf.mxu0
    %v761 = vadd.f32 %v518, %v760
    %v762 = vpop.f32.mrf.mxu0
    %v763 = vpop.f32.mrf.mxu0
    %764 = vdwg.mxu0
    %v765 = vadd.f32 %v718, 0.0
    %v766 = vadd.f32 %v720, 0.0
    %v767 = vadd.f32 %v759, 0.0
    %v768 = vadd.f32 %v761, 0.0
    %vm769 = vcmp.ge.f32.partialorder %v765, 1.0
    %vm770 = vcmp.ge.f32.partialorder %v766, 1.0
    %vm771 = vcmp.ge.f32.partialorder %v767, 1.0
    %vm772 = vcmp.ge.f32.partialorder %v768, 1.0
    %v773 = vsel %vm769, 0.0, %v765
    %v774 = vsel %vm770, 0.0, %v766
    %v775 = vsel %vm771, 0.0, %v767
    %v776 = vsel %vm772, 0.0, %v768
    %v777 = vsel %vm769, 1, 0
    %v778 = vsel %vm770, 1, 0
    %v779 = vsel %vm771, 1, 0
    %v780 = vsel %vm772, 1, 0
    %v781 = vcvt.s32.f32 %v777
    %v782 = vcvt.s32.f32 %v778
    %v783 = vcvt.s32.f32 %v779
    %v784 = vcvt.s32.f32 %v780
    %v785 = vpack.c.bf16 %v781, %v781
    %v786 = vpack.c.bf16 %v782, %v782
    %v787 = vpack.c.bf16 %v783, %v783
    %v788 = vpack.c.bf16 %v784, %v784
    %v789 = vld [vmem:[#allocation8] sm:$0xff]
    %v790 = vld [vmem:[#allocation8 + $0x8] sm:$0xff]
    %v791 = vld [vmem:[#allocation8 + $0x10] sm:$0xff]
    %v792 = vld [vmem:[#allocation8 + $0x18] sm:$0xff]
    %v793 = vld [vmem:[#allocation8 + $0x20] sm:$0xff]
    %v794 = vld [vmem:[#allocation8 + $0x28] sm:$0xff]
    %v795 = vld [vmem:[#allocation8 + $0x30] sm:$0xff]
    %v796 = vld [vmem:[#allocation8 + $0x38] sm:$0xff]
    %v797 = vld [vmem:[#allocation8 + $0x40] sm:$0xff]
    %v798 = vld [vmem:[#allocation8 + $0x48] sm:$0xff]
    %v799 = vld [vmem:[#allocation8 + $0x50] sm:$0xff]
    %v800 = vld [vmem:[#allocation8 + $0x58] sm:$0xff]
    %v801 = vld [vmem:[#allocation8 + $0x60] sm:$0xff]
    %v802 = vld [vmem:[#allocation8 + $0x68] sm:$0xff]
    %v803 = vld [vmem:[#allocation8 + $0x70] sm:$0xff]
    %v804 = vld [vmem:[#allocation8 + $0x78] sm:$0xff]
    %v805 = vld [vmem:[#allocation8 + $0x80] sm:$0xff]
    %v806 = vld [vmem:[#allocation8 + $0x88] sm:$0xff]
    %v807 = vld [vmem:[#allocation8 + $0x90] sm:$0xff]
    %v808 = vld [vmem:[#allocation8 + $0x98] sm:$0xff]
    %v809 = vld [vmem:[#allocation8 + $0xa0] sm:$0xff]
    %v810 = vld [vmem:[#allocation8 + $0xa8] sm:$0xff]
    %v811 = vld [vmem:[#allocation8 + $0xb0] sm:$0xff]
    %v812 = vld [vmem:[#allocation8 + $0xb8] sm:$0xff]
    %v813 = vld [vmem:[#allocation8 + $0xc0] sm:$0xff]
    %v814 = vld [vmem:[#allocation8 + $0xc8] sm:$0xff]
    %v815 = vld [vmem:[#allocation8 + $0xd0] sm:$0xff]
    %v816 = vld [vmem:[#allocation8 + $0xd8] sm:$0xff]
    %v817 = vld [vmem:[#allocation8 + $0xe0] sm:$0xff]
    %v818 = vld [vmem:[#allocation8 + $0xe8] sm:$0xff]
    %v819 = vld [vmem:[#allocation8 + $0xf0] sm:$0xff]
    %v820 = vld [vmem:[#allocation8 + $0xf8] sm:$0xff]
    %v821 = vld [vmem:[#allocation8 + $0x100] sm:$0xff]
    %v822 = vld [vmem:[#allocation8 + $0x108] sm:$0xff]
    %v823 = vld [vmem:[#allocation8 + $0x110] sm:$0xff]
    %v824 = vld [vmem:[#allocation8 + $0x118] sm:$0xff]
    %v825 = vld [vmem:[#allocation8 + $0x120] sm:$0xff]
    %v826 = vld [vmem:[#allocation8 + $0x128] sm:$0xff]
    %v827 = vld [vmem:[#allocation8 + $0x130] sm:$0xff]
    %v828 = vld [vmem:[#allocation8 + $0x138] sm:$0xff]
    %v829 = vld [vmem:[#allocation8 + $0x140] sm:$0xff]
    %v830 = vld [vmem:[#allocation8 + $0x148] sm:$0xff]
    %v831 = vld [vmem:[#allocation8 + $0x150] sm:$0xff]
    %v832 = vld [vmem:[#allocation8 + $0x158] sm:$0xff]
    %v833 = vld [vmem:[#allocation8 + $0x160] sm:$0xff]
    %v834 = vld [vmem:[#allocation8 + $0x168] sm:$0xff]
    %v835 = vld [vmem:[#allocation8 + $0x170] sm:$0xff]
    %v836 = vld [vmem:[#allocation8 + $0x178] sm:$0xff]
    %v837 = vld [vmem:[#allocation8 + $0x180] sm:$0xff]
    %v838 = vld [vmem:[#allocation8 + $0x188] sm:$0xff]
    %v839 = vld [vmem:[#allocation8 + $0x190] sm:$0xff]
    %v840 = vld [vmem:[#allocation8 + $0x198] sm:$0xff]
    %v841 = vld [vmem:[#allocation8 + $0x1a0] sm:$0xff]
    %v842 = vld [vmem:[#allocation8 + $0x1a8] sm:$0xff]
    %v843 = vld [vmem:[#allocation8 + $0x1b0] sm:$0xff]
    %v844 = vld [vmem:[#allocation8 + $0x1b8] sm:$0xff]
    %v845 = vld [vmem:[#allocation8 + $0x1c0] sm:$0xff]
    %v846 = vld [vmem:[#allocation8 + $0x1c8] sm:$0xff]
    %v847 = vld [vmem:[#allocation8 + $0x1d0] sm:$0xff]
    %v848 = vld [vmem:[#allocation8 + $0x1d8] sm:$0xff]
    %v849 = vld [vmem:[#allocation8 + $0x1e0] sm:$0xff]
    %v850 = vld [vmem:[#allocation8 + $0x1e8] sm:$0xff]
    %v851 = vld [vmem:[#allocation8 + $0x1f0] sm:$0xff]
    %v852 = vld [vmem:[#allocation8 + $0x1f8] sm:$0xff]
    %v853 = vld [vmem:[#allocation8 + $0x200] sm:$0xff]
    %v854 = vld [vmem:[#allocation8 + $0x208] sm:$0xff]
    %v855 = vld [vmem:[#allocation8 + $0x210] sm:$0xff]
    %v856 = vld [vmem:[#allocation8 + $0x218] sm:$0xff]
    %v857 = vld [vmem:[#allocation8 + $0x220] sm:$0xff]
    %v858 = vld [vmem:[#allocation8 + $0x228] sm:$0xff]
    %v859 = vld [vmem:[#allocation8 + $0x230] sm:$0xff]
    %v860 = vld [vmem:[#allocation8 + $0x238] sm:$0xff]
    %v861 = vld [vmem:[#allocation8 + $0x240] sm:$0xff]
    %v862 = vld [vmem:[#allocation8 + $0x248] sm:$0xff]
    %v863 = vld [vmem:[#allocation8 + $0x250] sm:$0xff]
    %v864 = vld [vmem:[#allocation8 + $0x258] sm:$0xff]
    %v865 = vld [vmem:[#allocation8 + $0x260] sm:$0xff]
    %v866 = vld [vmem:[#allocation8 + $0x268] sm:$0xff]
    %v867 = vld [vmem:[#allocation8 + $0x270] sm:$0xff]
    %v868 = vld [vmem:[#allocation8 + $0x278] sm:$0xff]
    %v869 = vld [vmem:[#allocation8 + $0x280] sm:$0xff]
    %v870 = vld [vmem:[#allocation8 + $0x288] sm:$0xff]
    %v871 = vld [vmem:[#allocation8 + $0x290] sm:$0xff]
    %v872 = vld [vmem:[#allocation8 + $0x298] sm:$0xff]
    %v873 = vld [vmem:[#allocation8 + $0x2a0] sm:$0xff]
    %v874 = vld [vmem:[#allocation8 + $0x2a8] sm:$0xff]
    %v875 = vld [vmem:[#allocation8 + $0x2b0] sm:$0xff]
    %v876 = vld [vmem:[#allocation8 + $0x2b8] sm:$0xff]
    %v877 = vld [vmem:[#allocation8 + $0x2c0] sm:$0xff]
    %v878 = vld [vmem:[#allocation8 + $0x2c8] sm:$0xff]
    %v879 = vld [vmem:[#allocation8 + $0x2d0] sm:$0xff]
    %v880 = vld [vmem:[#allocation8 + $0x2d8] sm:$0xff]
    %v881 = vld [vmem:[#allocation8 + $0x2e0] sm:$0xff]
    %v882 = vld [vmem:[#allocation8 + $0x2e8] sm:$0xff]
    %v883 = vld [vmem:[#allocation8 + $0x2f0] sm:$0xff]
    %v884 = vld [vmem:[#allocation8 + $0x2f8] sm:$0xff]
    %v885 = vld [vmem:[#allocation8 + $0x300] sm:$0xff]
    %v886 = vld [vmem:[#allocation8 + $0x308] sm:$0xff]
    %v887 = vld [vmem:[#allocation8 + $0x310] sm:$0xff]
    %v888 = vld [vmem:[#allocation8 + $0x318] sm:$0xff]
    %v889 = vld [vmem:[#allocation8 + $0x320] sm:$0xff]
    %v890 = vld [vmem:[#allocation8 + $0x328] sm:$0xff]
    %v891 = vld [vmem:[#allocation8 + $0x330] sm:$0xff]
    %v892 = vld [vmem:[#allocation8 + $0x338] sm:$0xff]
    %v893 = vld [vmem:[#allocation8 + $0x340] sm:$0xff]
    %v894 = vld [vmem:[#allocation8 + $0x348] sm:$0xff]
    %v895 = vld [vmem:[#allocation8 + $0x350] sm:$0xff]
    %v896 = vld [vmem:[#allocation8 + $0x358] sm:$0xff]
    %v897 = vld [vmem:[#allocation8 + $0x360] sm:$0xff]
    %v898 = vld [vmem:[#allocation8 + $0x368] sm:$0xff]
    %v899 = vld [vmem:[#allocation8 + $0x370] sm:$0xff]
    %v900 = vld [vmem:[#allocation8 + $0x378] sm:$0xff]
    %v901 = vld [vmem:[#allocation8 + $0x380] sm:$0xff]
    %v902 = vld [vmem:[#allocation8 + $0x388] sm:$0xff]
    %v903 = vld [vmem:[#allocation8 + $0x390] sm:$0xff]
    %v904 = vld [vmem:[#allocation8 + $0x398] sm:$0xff]
    %v905 = vld [vmem:[#allocation8 + $0x3a0] sm:$0xff]
    %v906 = vld [vmem:[#allocation8 + $0x3a8] sm:$0xff]
    %v907 = vld [vmem:[#allocation8 + $0x3b0] sm:$0xff]
    %v908 = vld [vmem:[#allocation8 + $0x3b8] sm:$0xff]
    %v909 = vld [vmem:[#allocation8 + $0x3c0] sm:$0xff]
    %v910 = vld [vmem:[#allocation8 + $0x3c8] sm:$0xff]
    %v911 = vld [vmem:[#allocation8 + $0x3d0] sm:$0xff]
    %v912 = vld [vmem:[#allocation8 + $0x3d8] sm:$0xff]
    %v913 = vld [vmem:[#allocation8 + $0x3e0] sm:$0xff]
    %v914 = vld [vmem:[#allocation8 + $0x3e8] sm:$0xff]
    %v915 = vld [vmem:[#allocation8 + $0x3f0] sm:$0xff]
    %v916 = vld [vmem:[#allocation8 + $0x3f8] sm:$0xff]
    %v917 = vld [vmem:[%s5] sm:$0xf]
    %v919 = vlaneseq
    %v920 = vshrl.u32 %v919, 7
    %v921 = vsub.s32 0, %v920
    %v922 = vrot.slane %v917, %v921
    %v923 = vlaneseq
    %v924 = vshrl.u32 %v923, 7
    %v925 = vsub.s32 1, %v924
    %v926 = vrot.slane %v917, %v925
    %v927 = vlaneseq
    %v928 = vshrl.u32 %v927, 7
    %v929 = vsub.s32 2, %v928
    %v930 = vrot.slane %v917, %v929
    %v931 = vlaneseq
    %v932 = vshrl.u32 %v931, 7
    %v933 = vsub.s32 3, %v932
    %v934 = vrot.slane %v917, %v933
    %v1067 = vunpack.c.l.b16 %v789
    %v1068 = vunpack.c.h.b16 %v789
    %v1069 = vunpack.c.l.b16 %v790
    %v1070 = vunpack.c.h.b16 %v790
    %v1071 = vunpack.c.l.b16 %v791
    %v1072 = vunpack.c.h.b16 %v791
    %v1073 = vunpack.c.l.b16 %v792
    %v1074 = vunpack.c.h.b16 %v792
    %v1075 = vunpack.c.l.b16 %v793
    %v1076 = vunpack.c.h.b16 %v793
    %v1077 = vunpack.c.l.b16 %v794
    %v1078 = vunpack.c.h.b16 %v794
    %v1079 = vunpack.c.l.b16 %v795
    %v1080 = vunpack.c.h.b16 %v795
    %v1081 = vunpack.c.l.b16 %v796
    %v1082 = vunpack.c.h.b16 %v796
    %v1083 = vunpack.c.l.b16 %v797
    %v1084 = vunpack.c.h.b16 %v797
    %v1085 = vunpack.c.l.b16 %v798
    %v1086 = vunpack.c.h.b16 %v798
    %v1087 = vunpack.c.l.b16 %v799
    %v1088 = vunpack.c.h.b16 %v799
    %v1089 = vunpack.c.l.b16 %v800
    %v1090 = vunpack.c.h.b16 %v800
    %v1091 = vunpack.c.l.b16 %v801
    %v1092 = vunpack.c.h.b16 %v801
    %v1093 = vunpack.c.l.b16 %v802
    %v1094 = vunpack.c.h.b16 %v802
    %v1095 = vunpack.c.l.b16 %v803
    %v1096 = vunpack.c.h.b16 %v803
    %v1097 = vunpack.c.l.b16 %v804
    %v1098 = vunpack.c.h.b16 %v804
    %v1099 = vunpack.c.l.b16 %v805
    %v1100 = vunpack.c.h.b16 %v805
    %v1101 = vunpack.c.l.b16 %v806
    %v1102 = vunpack.c.h.b16 %v806
    %v1103 = vunpack.c.l.b16 %v807
    %v1104 = vunpack.c.h.b16 %v807
    %v1105 = vunpack.c.l.b16 %v808
    %v1106 = vunpack.c.h.b16 %v808
    %v1107 = vunpack.c.l.b16 %v809
    %v1108 = vunpack.c.h.b16 %v809
    %v1109 = vunpack.c.l.b16 %v810
    %v1110 = vunpack.c.h.b16 %v810
    %v1111 = vunpack.c.l.b16 %v811
    %v1112 = vunpack.c.h.b16 %v811
    %v1113 = vunpack.c.l.b16 %v812
    %v1114 = vunpack.c.h.b16 %v812
    %v1115 = vunpack.c.l.b16 %v813
    %v1116 = vunpack.c.h.b16 %v813
    %v1117 = vunpack.c.l.b16 %v814
    %v1118 = vunpack.c.h.b16 %v814
    %v1119 = vunpack.c.l.b16 %v815
    %v1120 = vunpack.c.h.b16 %v815
    %v1121 = vunpack.c.l.b16 %v816
    %v1122 = vunpack.c.h.b16 %v816
    %v1123 = vunpack.c.l.b16 %v817
    %v1124 = vunpack.c.h.b16 %v817
    %v1125 = vunpack.c.l.b16 %v818
    %v1126 = vunpack.c.h.b16 %v818
    %v1127 = vunpack.c.l.b16 %v819
    %v1128 = vunpack.c.h.b16 %v819
    %v1129 = vunpack.c.l.b16 %v820
    %v1130 = vunpack.c.h.b16 %v820
    %v1131 = vunpack.c.l.b16 %v821
    %v1132 = vunpack.c.h.b16 %v821
    %v1133 = vunpack.c.l.b16 %v822
    %v1134 = vunpack.c.h.b16 %v822
    %v1135 = vunpack.c.l.b16 %v823
    %v1136 = vunpack.c.h.b16 %v823
    %v1137 = vunpack.c.l.b16 %v824
    %v1138 = vunpack.c.h.b16 %v824
    %v1139 = vunpack.c.l.b16 %v825
    %v1140 = vunpack.c.h.b16 %v825
    %v1141 = vunpack.c.l.b16 %v826
    %v1142 = vunpack.c.h.b16 %v826
    %v1143 = vunpack.c.l.b16 %v827
    %v1144 = vunpack.c.h.b16 %v827
    %v1145 = vunpack.c.l.b16 %v828
    %v1146 = vunpack.c.h.b16 %v828
    %v1147 = vunpack.c.l.b16 %v829
    %v1148 = vunpack.c.h.b16 %v829
    %v1149 = vunpack.c.l.b16 %v830
    %v1150 = vunpack.c.h.b16 %v830
    %v1151 = vunpack.c.l.b16 %v831
    %v1152 = vunpack.c.h.b16 %v831
    %v1153 = vunpack.c.l.b16 %v832
    %v1154 = vunpack.c.h.b16 %v832
    %v1155 = vunpack.c.l.b16 %v833
    %v1156 = vunpack.c.h.b16 %v833
    %v1157 = vunpack.c.l.b16 %v834
    %v1158 = vunpack.c.h.b16 %v834
    %v1159 = vunpack.c.l.b16 %v835
    %v1160 = vunpack.c.h.b16 %v835
    %v1161 = vunpack.c.l.b16 %v836
    %v1162 = vunpack.c.h.b16 %v836
    %v1163 = vunpack.c.l.b16 %v837
    %v1164 = vunpack.c.h.b16 %v837
    %v1165 = vunpack.c.l.b16 %v838
    %v1166 = vunpack.c.h.b16 %v838
    %v1167 = vunpack.c.l.b16 %v839
    %v1168 = vunpack.c.h.b16 %v839
    %v1169 = vunpack.c.l.b16 %v840
    %v1170 = vunpack.c.h.b16 %v840
    %v1171 = vunpack.c.l.b16 %v841
    %v1172 = vunpack.c.h.b16 %v841
    %v1173 = vunpack.c.l.b16 %v842
    %v1174 = vunpack.c.h.b16 %v842
    %v1175 = vunpack.c.l.b16 %v843
    %v1176 = vunpack.c.h.b16 %v843
    %v1177 = vunpack.c.l.b16 %v844
    %v1178 = vunpack.c.h.b16 %v844
    %v1179 = vunpack.c.l.b16 %v845
    %v1180 = vunpack.c.h.b16 %v845
    %v1181 = vunpack.c.l.b16 %v846
    %v1182 = vunpack.c.h.b16 %v846
    %v1183 = vunpack.c.l.b16 %v847
    %v1184 = vunpack.c.h.b16 %v847
    %v1185 = vunpack.c.l.b16 %v848
    %v1186 = vunpack.c.h.b16 %v848
    %v1187 = vunpack.c.l.b16 %v849
    %v1188 = vunpack.c.h.b16 %v849
    %v1189 = vunpack.c.l.b16 %v850
    %v1190 = vunpack.c.h.b16 %v850
    %v1191 = vunpack.c.l.b16 %v851
    %v1192 = vunpack.c.h.b16 %v851
    %v1193 = vunpack.c.l.b16 %v852
    %v1194 = vunpack.c.h.b16 %v852
    %v1195 = vunpack.c.l.b16 %v853
    %v1196 = vunpack.c.h.b16 %v853
    %v1197 = vunpack.c.l.b16 %v854
    %v1198 = vunpack.c.h.b16 %v854
    %v1199 = vunpack.c.l.b16 %v855
    %v1200 = vunpack.c.h.b16 %v855
    %v1201 = vunpack.c.l.b16 %v856
    %v1202 = vunpack.c.h.b16 %v856
    %v1203 = vunpack.c.l.b16 %v857
    %v1204 = vunpack.c.h.b16 %v857
    %v1205 = vunpack.c.l.b16 %v858
    %v1206 = vunpack.c.h.b16 %v858
    %v1207 = vunpack.c.l.b16 %v859
    %v1208 = vunpack.c.h.b16 %v859
    %v1209 = vunpack.c.l.b16 %v860
    %v1210 = vunpack.c.h.b16 %v860
    %v1211 = vunpack.c.l.b16 %v861
    %v1212 = vunpack.c.h.b16 %v861
    %v1213 = vunpack.c.l.b16 %v862
    %v1214 = vunpack.c.h.b16 %v862
    %v1215 = vunpack.c.l.b16 %v863
    %v1216 = vunpack.c.h.b16 %v863
    %v1217 = vunpack.c.l.b16 %v864
    %v1218 = vunpack.c.h.b16 %v864
    %v1219 = vunpack.c.l.b16 %v865
    %v1220 = vunpack.c.h.b16 %v865
    %v1221 = vunpack.c.l.b16 %v866
    %v1222 = vunpack.c.h.b16 %v866
    %v1223 = vunpack.c.l.b16 %v867
    %v1224 = vunpack.c.h.b16 %v867
    %v1225 = vunpack.c.l.b16 %v868
    %v1226 = vunpack.c.h.b16 %v868
    %v1227 = vunpack.c.l.b16 %v869
    %v1228 = vunpack.c.h.b16 %v869
    %v1229 = vunpack.c.l.b16 %v870
    %v1230 = vunpack.c.h.b16 %v870
    %v1231 = vunpack.c.l.b16 %v871
    %v1232 = vunpack.c.h.b16 %v871
    %v1233 = vunpack.c.l.b16 %v872
    %v1234 = vunpack.c.h.b16 %v872
    %v1235 = vunpack.c.l.b16 %v873
    %v1236 = vunpack.c.h.b16 %v873
    %v1237 = vunpack.c.l.b16 %v874
    %v1238 = vunpack.c.h.b16 %v874
    %v1239 = vunpack.c.l.b16 %v875
    %v1240 = vunpack.c.h.b16 %v875
    %v1241 = vunpack.c.l.b16 %v876
    %v1242 = vunpack.c.h.b16 %v876
    %v1243 = vunpack.c.l.b16 %v877
    %v1244 = vunpack.c.h.b16 %v877
    %v1245 = vunpack.c.l.b16 %v878
    %v1246 = vunpack.c.h.b16 %v878
    %v1247 = vunpack.c.l.b16 %v879
    %v1248 = vunpack.c.h.b16 %v879
    %v1249 = vunpack.c.l.b16 %v880
    %v1250 = vunpack.c.h.b16 %v880
    %v1251 = vunpack.c.l.b16 %v881
    %v1252 = vunpack.c.h.b16 %v881
    %v1253 = vunpack.c.l.b16 %v882
    %v1254 = vunpack.c.h.b16 %v882
    %v1255 = vunpack.c.l.b16 %v883
    %v1256 = vunpack.c.h.b16 %v883
    %v1257 = vunpack.c.l.b16 %v884
    %v1258 = vunpack.c.h.b16 %v884
    %v1259 = vunpack.c.l.b16 %v885
    %v1260 = vunpack.c.h.b16 %v885
    %v1261 = vunpack.c.l.b16 %v886
    %v1262 = vunpack.c.h.b16 %v886
    %v1263 = vunpack.c.l.b16 %v887
    %v1264 = vunpack.c.h.b16 %v887
    %v1265 = vunpack.c.l.b16 %v888
    %v1266 = vunpack.c.h.b16 %v888
    %v1267 = vunpack.c.l.b16 %v889
    %v1268 = vunpack.c.h.b16 %v889
    %v1269 = vunpack.c.l.b16 %v890
    %v1270 = vunpack.c.h.b16 %v890
    %v1271 = vunpack.c.l.b16 %v891
    %v1272 = vunpack.c.h.b16 %v891
    %v1273 = vunpack.c.l.b16 %v892
    %v1274 = vunpack.c.h.b16 %v892
    %v1275 = vunpack.c.l.b16 %v893
    %v1276 = vunpack.c.h.b16 %v893
    %v1277 = vunpack.c.l.b16 %v894
    %v1278 = vunpack.c.h.b16 %v894
    %v1279 = vunpack.c.l.b16 %v895
    %v1280 = vunpack.c.h.b16 %v895
    %v1281 = vunpack.c.l.b16 %v896
    %v1282 = vunpack.c.h.b16 %v896
    %v1283 = vunpack.c.l.b16 %v897
    %v1284 = vunpack.c.h.b16 %v897
    %v1285 = vunpack.c.l.b16 %v898
    %v1286 = vunpack.c.h.b16 %v898
    %v1287 = vunpack.c.l.b16 %v899
    %v1288 = vunpack.c.h.b16 %v899
    %v1289 = vunpack.c.l.b16 %v900
    %v1290 = vunpack.c.h.b16 %v900
    %v1291 = vunpack.c.l.b16 %v901
    %v1292 = vunpack.c.h.b16 %v901
    %v1293 = vunpack.c.l.b16 %v902
    %v1294 = vunpack.c.h.b16 %v902
    %v1295 = vunpack.c.l.b16 %v903
    %v1296 = vunpack.c.h.b16 %v903
    %v1297 = vunpack.c.l.b16 %v904
    %v1298 = vunpack.c.h.b16 %v904
    %v1299 = vunpack.c.l.b16 %v905
    %v1300 = vunpack.c.h.b16 %v905
    %v1301 = vunpack.c.l.b16 %v906
    %v1302 = vunpack.c.h.b16 %v906
    %v1303 = vunpack.c.l.b16 %v907
    %v1304 = vunpack.c.h.b16 %v907
    %v1305 = vunpack.c.l.b16 %v908
    %v1306 = vunpack.c.h.b16 %v908
    %v1307 = vunpack.c.l.b16 %v909
    %v1308 = vunpack.c.h.b16 %v909
    %v1309 = vunpack.c.l.b16 %v910
    %v1310 = vunpack.c.h.b16 %v910
    %v1311 = vunpack.c.l.b16 %v911
    %v1312 = vunpack.c.h.b16 %v911
    %v1313 = vunpack.c.l.b16 %v912
    %v1314 = vunpack.c.h.b16 %v912
    %v1315 = vunpack.c.l.b16 %v913
    %v1316 = vunpack.c.h.b16 %v913
    %v1317 = vunpack.c.l.b16 %v914
    %v1318 = vunpack.c.h.b16 %v914
    %v1319 = vunpack.c.l.b16 %v915
    %v1320 = vunpack.c.h.b16 %v915
    %v1321 = vunpack.c.l.b16 %v916
    %v1322 = vunpack.c.h.b16 %v916
    %v1323 = vpack.c.b16 %v1071, %v1067
    %v1324 = vpack.c.b16 %v1072, %v1068
    %v1325 = vpack.c.b16 %v1073, %v1069
    %v1326 = vpack.c.b16 %v1074, %v1070
    %v1327 = vpack.c.b16 %v1079, %v1075
    %v1328 = vpack.c.b16 %v1080, %v1076
    %v1329 = vpack.c.b16 %v1081, %v1077
    %v1330 = vpack.c.b16 %v1082, %v1078
    %v1331 = vpack.c.b16 %v1087, %v1083
    %v1332 = vpack.c.b16 %v1088, %v1084
    %v1333 = vpack.c.b16 %v1089, %v1085
    %v1334 = vpack.c.b16 %v1090, %v1086
    %v1335 = vpack.c.b16 %v1095, %v1091
    %v1336 = vpack.c.b16 %v1096, %v1092
    %v1337 = vpack.c.b16 %v1097, %v1093
    %v1338 = vpack.c.b16 %v1098, %v1094
    %v1339 = vpack.c.b16 %v1103, %v1099
    %v1340 = vpack.c.b16 %v1104, %v1100
    %v1341 = vpack.c.b16 %v1105, %v1101
    %v1342 = vpack.c.b16 %v1106, %v1102
    %v1343 = vpack.c.b16 %v1111, %v1107
    %v1344 = vpack.c.b16 %v1112, %v1108
    %v1345 = vpack.c.b16 %v1113, %v1109
    %v1346 = vpack.c.b16 %v1114, %v1110
    %v1347 = vpack.c.b16 %v1119, %v1115
    %v1348 = vpack.c.b16 %v1120, %v1116
    %v1349 = vpack.c.b16 %v1121, %v1117
    %v1350 = vpack.c.b16 %v1122, %v1118
    %v1351 = vpack.c.b16 %v1127, %v1123
    %v1352 = vpack.c.b16 %v1128, %v1124
    %v1353 = vpack.c.b16 %v1129, %v1125
    %v1354 = vpack.c.b16 %v1130, %v1126
    %v1355 = vpack.c.b16 %v1135, %v1131
    %v1356 = vpack.c.b16 %v1136, %v1132
    %v1357 = vpack.c.b16 %v1137, %v1133
    %v1358 = vpack.c.b16 %v1138, %v1134
    %v1359 = vpack.c.b16 %v1143, %v1139
    %v1360 = vpack.c.b16 %v1144, %v1140
    %v1361 = vpack.c.b16 %v1145, %v1141
    %v1362 = vpack.c.b16 %v1146, %v1142
    %v1363 = vpack.c.b16 %v1151, %v1147
    %v1364 = vpack.c.b16 %v1152, %v1148
    %v1365 = vpack.c.b16 %v1153, %v1149
    %v1366 = vpack.c.b16 %v1154, %v1150
    %v1367 = vpack.c.b16 %v1159, %v1155
    %v1368 = vpack.c.b16 %v1160, %v1156
    %v1369 = vpack.c.b16 %v1161, %v1157
    %v1370 = vpack.c.b16 %v1162, %v1158
    %v1371 = vpack.c.b16 %v1167, %v1163
    %v1372 = vpack.c.b16 %v1168, %v1164
    %v1373 = vpack.c.b16 %v1169, %v1165
    %v1374 = vpack.c.b16 %v1170, %v1166
    %v1375 = vpack.c.b16 %v1175, %v1171
    %v1376 = vpack.c.b16 %v1176, %v1172
    %v1377 = vpack.c.b16 %v1177, %v1173
    %v1378 = vpack.c.b16 %v1178, %v1174
    %v1379 = vpack.c.b16 %v1183, %v1179
    %v1380 = vpack.c.b16 %v1184, %v1180
    %v1381 = vpack.c.b16 %v1185, %v1181
    %v1382 = vpack.c.b16 %v1186, %v1182
    %v1383 = vpack.c.b16 %v1191, %v1187
    %v1384 = vpack.c.b16 %v1192, %v1188
    %v1385 = vpack.c.b16 %v1193, %v1189
    %v1386 = vpack.c.b16 %v1194, %v1190
    %v1387 = vpack.c.b16 %v1199, %v1195
    %v1388 = vpack.c.b16 %v1200, %v1196
    %v1389 = vpack.c.b16 %v1201, %v1197
    %v1390 = vpack.c.b16 %v1202, %v1198
    %v1391 = vpack.c.b16 %v1207, %v1203
    %v1392 = vpack.c.b16 %v1208, %v1204
    %v1393 = vpack.c.b16 %v1209, %v1205
    %v1394 = vpack.c.b16 %v1210, %v1206
    %v1395 = vpack.c.b16 %v1215, %v1211
    %v1396 = vpack.c.b16 %v1216, %v1212
    %v1397 = vpack.c.b16 %v1217, %v1213
    %v1398 = vpack.c.b16 %v1218, %v1214
    %v1399 = vpack.c.b16 %v1223, %v1219
    %v1400 = vpack.c.b16 %v1224, %v1220
    %v1401 = vpack.c.b16 %v1225, %v1221
    %v1402 = vpack.c.b16 %v1226, %v1222
    %v1403 = vpack.c.b16 %v1231, %v1227
    %v1404 = vpack.c.b16 %v1232, %v1228
    %v1405 = vpack.c.b16 %v1233, %v1229
    %v1406 = vpack.c.b16 %v1234, %v1230
    %v1407 = vpack.c.b16 %v1239, %v1235
    %v1408 = vpack.c.b16 %v1240, %v1236
    %v1409 = vpack.c.b16 %v1241, %v1237
    %v1410 = vpack.c.b16 %v1242, %v1238
    %v1411 = vpack.c.b16 %v1247, %v1243
    %v1412 = vpack.c.b16 %v1248, %v1244
    %v1413 = vpack.c.b16 %v1249, %v1245
    %v1414 = vpack.c.b16 %v1250, %v1246
    %v1415 = vpack.c.b16 %v1255, %v1251
    %v1416 = vpack.c.b16 %v1256, %v1252
    %v1417 = vpack.c.b16 %v1257, %v1253
    %v1418 = vpack.c.b16 %v1258, %v1254
    %v1419 = vpack.c.b16 %v1263, %v1259
    %v1420 = vpack.c.b16 %v1264, %v1260
    %v1421 = vpack.c.b16 %v1265, %v1261
    %v1422 = vpack.c.b16 %v1266, %v1262
    %v1423 = vpack.c.b16 %v1271, %v1267
    %v1424 = vpack.c.b16 %v1272, %v1268
    %v1425 = vpack.c.b16 %v1273, %v1269
    %v1426 = vpack.c.b16 %v1274, %v1270
    %v1427 = vpack.c.b16 %v1279, %v1275
    %v1428 = vpack.c.b16 %v1280, %v1276
    %v1429 = vpack.c.b16 %v1281, %v1277
    %v1430 = vpack.c.b16 %v1282, %v1278
    %v1431 = vpack.c.b16 %v1287, %v1283
    %v1432 = vpack.c.b16 %v1288, %v1284
    %v1433 = vpack.c.b16 %v1289, %v1285
    %v1434 = vpack.c.b16 %v1290, %v1286
    %v1435 = vpack.c.b16 %v1295, %v1291
    %v1436 = vpack.c.b16 %v1296, %v1292
    %v1437 = vpack.c.b16 %v1297, %v1293
    %v1438 = vpack.c.b16 %v1298, %v1294
    %v1439 = vpack.c.b16 %v1303, %v1299
    %v1440 = vpack.c.b16 %v1304, %v1300
    %v1441 = vpack.c.b16 %v1305, %v1301
    %v1442 = vpack.c.b16 %v1306, %v1302
    %v1443 = vpack.c.b16 %v1311, %v1307
    %v1444 = vpack.c.b16 %v1312, %v1308
    %v1445 = vpack.c.b16 %v1313, %v1309
    %v1446 = vpack.c.b16 %v1314, %v1310
    %v1447 = vpack.c.b16 %v1319, %v1315
    %v1448 = vpack.c.b16 %v1320, %v1316
    %v1449 = vpack.c.b16 %v1321, %v1317
    %v1450 = vpack.c.b16 %v1322, %v1318
    %1579 = vmatprep.subr.bf16.mxu0 %v1352
    %1580 = vmatpush1.bf16.msra.mxu0 %v1351
    %1581 = vmatprep.subr.bf16.mxu0 %v1348
    %1582 = vmatpush1.bf16.msra.mxu0 %v1347
    %1583 = vmatprep.subr.bf16.mxu0 %v1344
    %1584 = vmatpush1.bf16.msra.mxu0 %v1343
    %1585 = vmatprep.subr.bf16.mxu0 %v1340
    %1586 = vmatpush1.bf16.msra.mxu0 %v1339
    %1587 = vmatprep.subr.bf16.mxu0 %v1336
    %1588 = vmatpush1.bf16.msra.mxu0 %v1335
    %1589 = vmatprep.subr.bf16.mxu0 %v1332
    %1590 = vmatpush1.bf16.msra.mxu0 %v1331
    %1591 = vmatprep.subr.bf16.mxu0 %v1328
    %1592 = vmatpush1.bf16.msra.mxu0 %v1327
    %1593 = vmatprep.subr.bf16.mxu0 %v1324
    %1594 = vmatpush1.bf16.msra.mxu0 %v1323
    %1595 = vmatprep.subr.bf16.mxu0 %v1384
    %1596 = vmatpush2.bf16.msra.mxu0 %v1383
    %1597 = vmatprep.subr.bf16.mxu0 %v1380
    %1598 = vmatpush2.bf16.msra.mxu0 %v1379
    %1599 = vmatprep.subr.bf16.mxu0 %v1376
    %1600 = vmatpush2.bf16.msra.mxu0 %v1375
    %1601 = vmatprep.subr.bf16.mxu0 %v1372
    %1602 = vmatpush2.bf16.msra.mxu0 %v1371
    %1603 = vmatprep.subr.bf16.mxu0 %v1368
    %1604 = vmatpush2.bf16.msra.mxu0 %v1367
    %1605 = vmatprep.subr.bf16.mxu0 %v1364
    %1606 = vmatpush2.bf16.msra.mxu0 %v1363
    %1607 = vmatprep.subr.bf16.mxu0 %v1360
    %1608 = vmatpush2.bf16.msra.mxu0 %v1359
    %1609 = vmatprep.subr.bf16.mxu0 %v1356
    %1610 = vmatpush2.bf16.msra.mxu0 %v1355
    %1611 = vmatprep.mubr.bf16.mxu0 %v786
    %1612 = vmatmul.mubr.bf16.gmra.mxu0 %v785
    %v1613 = vpop.f32.mrf.mxu0
    %v1614 = vadd.f32 %v922, %v1613
    %v1615 = vpop.f32.mrf.mxu0
    %v1616 = vadd.f32 %v926, %v1615
    %v1617 = vpop.f32.mrf.mxu0
    %v1618 = vpop.f32.mrf.mxu0
    %1619 = vdwg.mxu0
    %1620 = vmatprep.subr.bf16.mxu0 %v1416
    %1621 = vmatpush1.bf16.msra.mxu0 %v1415
    %1622 = vmatprep.subr.bf16.mxu0 %v1412
    %1623 = vmatpush1.bf16.msra.mxu0 %v1411
    %1624 = vmatprep.subr.bf16.mxu0 %v1408
    %1625 = vmatpush1.bf16.msra.mxu0 %v1407
    %1626 = vmatprep.subr.bf16.mxu0 %v1404
    %1627 = vmatpush1.bf16.msra.mxu0 %v1403
    %1628 = vmatprep.subr.bf16.mxu0 %v1400
    %1629 = vmatpush1.bf16.msra.mxu0 %v1399
    %1630 = vmatprep.subr.bf16.mxu0 %v1396
    %1631 = vmatpush1.bf16.msra.mxu0 %v1395
    %1632 = vmatprep.subr.bf16.mxu0 %v1392
    %1633 = vmatpush1.bf16.msra.mxu0 %v1391
    %1634 = vmatprep.subr.bf16.mxu0 %v1388
    %1635 = vmatpush1.bf16.msra.mxu0 %v1387
    %1636 = vmatprep.subr.bf16.mxu0 %v1448
    %1637 = vmatpush2.bf16.msra.mxu0 %v1447
    %1638 = vmatprep.subr.bf16.mxu0 %v1444
    %1639 = vmatpush2.bf16.msra.mxu0 %v1443
    %1640 = vmatprep.subr.bf16.mxu0 %v1440
    %1641 = vmatpush2.bf16.msra.mxu0 %v1439
    %1642 = vmatprep.subr.bf16.mxu0 %v1436
    %1643 = vmatpush2.bf16.msra.mxu0 %v1435
    %1644 = vmatprep.subr.bf16.mxu0 %v1432
    %1645 = vmatpush2.bf16.msra.mxu0 %v1431
    %1646 = vmatprep.subr.bf16.mxu0 %v1428
    %1647 = vmatpush2.bf16.msra.mxu0 %v1427
    %1648 = vmatprep.subr.bf16.mxu0 %v1424
    %1649 = vmatpush2.bf16.msra.mxu0 %v1423
    %1650 = vmatprep.subr.bf16.mxu0 %v1420
    %1651 = vmatpush2.bf16.msra.mxu0 %v1419
    %1652 = vmatprep.mubr.bf16.mxu0 %v788
    %1653 = vmatmul.mubr.bf16.gmra.mxu0 %v787
    %v1654 = vpop.f32.mrf.mxu0
    %v1655 = vadd.f32 %v1614, %v1654
    %v1656 = vpop.f32.mrf.mxu0
    %v1657 = vadd.f32 %v1616, %v1656
    %v1658 = vpop.f32.mrf.mxu0
    %v1659 = vpop.f32.mrf.mxu0
    %1660 = vdwg.mxu0
    %1661 = vmatprep.subr.bf16.mxu0 %v1354
    %1662 = vmatpush1.bf16.msra.mxu0 %v1353
    %1663 = vmatprep.subr.bf16.mxu0 %v1350
    %1664 = vmatpush1.bf16.msra.mxu0 %v1349
    %1665 = vmatprep.subr.bf16.mxu0 %v1346
    %1666 = vmatpush1.bf16.msra.mxu0 %v1345
    %1667 = vmatprep.subr.bf16.mxu0 %v1342
    %1668 = vmatpush1.bf16.msra.mxu0 %v1341
    %1669 = vmatprep.subr.bf16.mxu0 %v1338
    %1670 = vmatpush1.bf16.msra.mxu0 %v1337
    %1671 = vmatprep.subr.bf16.mxu0 %v1334
    %1672 = vmatpush1.bf16.msra.mxu0 %v1333
    %1673 = vmatprep.subr.bf16.mxu0 %v1330
    %1674 = vmatpush1.bf16.msra.mxu0 %v1329
    %1675 = vmatprep.subr.bf16.mxu0 %v1326
    %1676 = vmatpush1.bf16.msra.mxu0 %v1325
    %1677 = vmatprep.subr.bf16.mxu0 %v1386
    %1678 = vmatpush2.bf16.msra.mxu0 %v1385
    %1679 = vmatprep.subr.bf16.mxu0 %v1382
    %1680 = vmatpush2.bf16.msra.mxu0 %v1381
    %1681 = vmatprep.subr.bf16.mxu0 %v1378
    %1682 = vmatpush2.bf16.msra.mxu0 %v1377
    %1683 = vmatprep.subr.bf16.mxu0 %v1374
    %1684 = vmatpush2.bf16.msra.mxu0 %v1373
    %1685 = vmatprep.subr.bf16.mxu0 %v1370
    %1686 = vmatpush2.bf16.msra.mxu0 %v1369
    %1687 = vmatprep.subr.bf16.mxu0 %v1366
    %1688 = vmatpush2.bf16.msra.mxu0 %v1365
    %1689 = vmatprep.subr.bf16.mxu0 %v1362
    %1690 = vmatpush2.bf16.msra.mxu0 %v1361
    %1691 = vmatprep.subr.bf16.mxu0 %v1358
    %1692 = vmatpush2.bf16.msra.mxu0 %v1357
    %1693 = vmatprep.mubr.bf16.mxu0 %v786
    %1694 = vmatmul.mubr.bf16.gmra.mxu0 %v785
    %v1695 = vpop.f32.mrf.mxu0
    %v1696 = vadd.f32 %v930, %v1695
    %v1697 = vpop.f32.mrf.mxu0
    %v1698 = vadd.f32 %v934, %v1697
    %v1699 = vpop.f32.mrf.mxu0
    %v1700 = vpop.f32.mrf.mxu0
    %1701 = vdwg.mxu0
    %1702 = vmatprep.subr.bf16.mxu0 %v1418
    %1703 = vmatpush1.bf16.msra.mxu0 %v1417
    %1704 = vmatprep.subr.bf16.mxu0 %v1414
    %1705 = vmatpush1.bf16.msra.mxu0 %v1413
    %1706 = vmatprep.subr.bf16.mxu0 %v1410
    %1707 = vmatpush1.bf16.msra.mxu0 %v1409
    %1708 = vmatprep.subr.bf16.mxu0 %v1406
    %1709 = vmatpush1.bf16.msra.mxu0 %v1405
    %1710 = vmatprep.subr.bf16.mxu0 %v1402
    %1711 = vmatpush1.bf16.msra.mxu0 %v1401
    %1712 = vmatprep.subr.bf16.mxu0 %v1398
    %1713 = vmatpush1.bf16.msra.mxu0 %v1397
    %1714 = vmatprep.subr.bf16.mxu0 %v1394
    %1715 = vmatpush1.bf16.msra.mxu0 %v1393
    %1716 = vmatprep.subr.bf16.mxu0 %v1390
    %1717 = vmatpush1.bf16.msra.mxu0 %v1389
    %1718 = vmatprep.subr.bf16.mxu0 %v1450
    %1719 = vmatpush2.bf16.msra.mxu0 %v1449
    %1720 = vmatprep.subr.bf16.mxu0 %v1446
    %1721 = vmatpush2.bf16.msra.mxu0 %v1445
    %1722 = vmatprep.subr.bf16.mxu0 %v1442
    %1723 = vmatpush2.bf16.msra.mxu0 %v1441
    %1724 = vmatprep.subr.bf16.mxu0 %v1438
    %1725 = vmatpush2.bf16.msra.mxu0 %v1437
    %1726 = vmatprep.subr.bf16.mxu0 %v1434
    %1727 = vmatpush2.bf16.msra.mxu0 %v1433
    %1728 = vmatprep.subr.bf16.mxu0 %v1430
    %1729 = vmatpush2.bf16.msra.mxu0 %v1429
    %1730 = vmatprep.subr.bf16.mxu0 %v1426
    %1731 = vmatpush2.bf16.msra.mxu0 %v1425
    %1732 = vmatprep.subr.bf16.mxu0 %v1422
    %1733 = vmatpush2.bf16.msra.mxu0 %v1421
    %1734 = vmatprep.mubr.bf16.mxu0 %v788
    %1735 = vmatmul.mubr.bf16.gmra.mxu0 %v787
    %v1736 = vpop.f32.mrf.mxu0
    %v1737 = vadd.f32 %v1696, %v1736
    %v1738 = vpop.f32.mrf.mxu0
    %v1739 = vadd.f32 %v1698, %v1738
    %v1740 = vpop.f32.mrf.mxu0
    %v1741 = vpop.f32.mrf.mxu0
    %1742 = vdwg.mxu0
    %v1743 = vadd.f32 %v1655, 0.0
    %v1744 = vadd.f32 %v1657, 0.0
    %v1745 = vadd.f32 %v1737, 0.0
    %v1746 = vadd.f32 %v1739, 0.0
    %vm1747 = vcmp.ge.f32.partialorder %v1743, 1.0
    %vm1748 = vcmp.ge.f32.partialorder %v1744, 1.0
    %vm1749 = vcmp.ge.f32.partialorder %v1745, 1.0
    %vm1750 = vcmp.ge.f32.partialorder %v1746, 1.0
    %v1751 = vsel %vm1747, 0.0, %v1743
    %v1752 = vsel %vm1748, 0.0, %v1744
    %v1753 = vsel %vm1749, 0.0, %v1745
    %v1754 = vsel %vm1750, 0.0, %v1746
    %v1755 = vsel %vm1747, 1, 0
    %v1756 = vsel %vm1748, 1, 0
    %v1757 = vsel %vm1749, 1, 0
    %v1758 = vsel %vm1750, 1, 0
    %v1759 = vcvt.s32.f32 %v1755
    %v1760 = vcvt.s32.f32 %v1756
    %v1761 = vcvt.s32.f32 %v1757
    %v1762 = vcvt.s32.f32 %v1758
    %v1763 = vpack.c.bf16 %v1759, %v1759
    %v1764 = vpack.c.bf16 %v1760, %v1760
    %v1765 = vpack.c.bf16 %v1761, %v1761
    %v1766 = vpack.c.bf16 %v1762, %v1762
    %v1767 = vld [vmem:[#allocation10] sm:$0xf]
    %v1768 = vld [vmem:[#allocation10 + $0x4] sm:$0xf]
    %v1769 = vld [vmem:[#allocation10 + $0x8] sm:$0xf]
    %v1770 = vld [vmem:[#allocation10 + $0xc] sm:$0xf]
    %v1771 = vld [vmem:[#allocation10 + $0x10] sm:$0xf]
    %v1772 = vld [vmem:[#allocation10 + $0x14] sm:$0xf]
    %v1773 = vld [vmem:[#allocation10 + $0x18] sm:$0xf]
    %v1774 = vld [vmem:[#allocation10 + $0x1c] sm:$0xf]
    %v1775 = vld [vmem:[#allocation10 + $0x20] sm:$0xf]
    %v1776 = vld [vmem:[#allocation10 + $0x24] sm:$0xf]
    %v1777 = vld [vmem:[#allocation10 + $0x28] sm:$0xf]
    %v1778 = vld [vmem:[#allocation10 + $0x2c] sm:$0xf]
    %v1779 = vld [vmem:[#allocation10 + $0x30] sm:$0xf]
    %v1780 = vld [vmem:[#allocation10 + $0x34] sm:$0xf]
    %v1781 = vld [vmem:[#allocation10 + $0x38] sm:$0xf]
    %v1782 = vld [vmem:[#allocation10 + $0x3c] sm:$0xf]
    %v1783 = vld [vmem:[#allocation10 + $0x40] sm:$0xf]
    %v1784 = vld [vmem:[#allocation10 + $0x44] sm:$0xf]
    %v1785 = vld [vmem:[#allocation10 + $0x48] sm:$0xf]
    %v1786 = vld [vmem:[#allocation10 + $0x4c] sm:$0xf]
    %v1787 = vld [vmem:[#allocation10 + $0x50] sm:$0xf]
    %v1788 = vld [vmem:[#allocation10 + $0x54] sm:$0xf]
    %v1789 = vld [vmem:[#allocation10 + $0x58] sm:$0xf]
    %v1790 = vld [vmem:[#allocation10 + $0x5c] sm:$0xf]
    %v1791 = vld [vmem:[#allocation10 + $0x60] sm:$0xf]
    %v1792 = vld [vmem:[#allocation10 + $0x64] sm:$0xf]
    %v1793 = vld [vmem:[#allocation10 + $0x68] sm:$0xf]
    %v1794 = vld [vmem:[#allocation10 + $0x6c] sm:$0xf]
    %v1795 = vld [vmem:[#allocation10 + $0x70] sm:$0xf]
    %v1796 = vld [vmem:[#allocation10 + $0x74] sm:$0xf]
    %v1797 = vld [vmem:[#allocation10 + $0x78] sm:$0xf]
    %v1798 = vld [vmem:[#allocation10 + $0x7c] sm:$0xf]
    %v1799 = vld [vmem:[#allocation10 + $0x80] sm:$0xf]
    %v1800 = vld [vmem:[#allocation10 + $0x84] sm:$0xf]
    %v1801 = vld [vmem:[#allocation10 + $0x88] sm:$0xf]
    %v1802 = vld [vmem:[#allocation10 + $0x8c] sm:$0xf]
    %v1803 = vld [vmem:[#allocation10 + $0x90] sm:$0xf]
    %v1804 = vld [vmem:[#allocation10 + $0x94] sm:$0xf]
    %v1805 = vld [vmem:[#allocation10 + $0x98] sm:$0xf]
    %v1806 = vld [vmem:[#allocation10 + $0x9c] sm:$0xf]
    %v1807 = vld [vmem:[#allocation10 + $0xa0] sm:$0xf]
    %v1808 = vld [vmem:[#allocation10 + $0xa4] sm:$0xf]
    %v1809 = vld [vmem:[#allocation10 + $0xa8] sm:$0xf]
    %v1810 = vld [vmem:[#allocation10 + $0xac] sm:$0xf]
    %v1811 = vld [vmem:[#allocation10 + $0xb0] sm:$0xf]
    %v1812 = vld [vmem:[#allocation10 + $0xb4] sm:$0xf]
    %v1813 = vld [vmem:[#allocation10 + $0xb8] sm:$0xf]
    %v1814 = vld [vmem:[#allocation10 + $0xbc] sm:$0xf]
    %v1815 = vld [vmem:[#allocation10 + $0xc0] sm:$0xf]
    %v1816 = vld [vmem:[#allocation10 + $0xc4] sm:$0xf]
    %v1817 = vld [vmem:[#allocation10 + $0xc8] sm:$0xf]
    %v1818 = vld [vmem:[#allocation10 + $0xcc] sm:$0xf]
    %v1819 = vld [vmem:[#allocation10 + $0xd0] sm:$0xf]
    %v1820 = vld [vmem:[#allocation10 + $0xd4] sm:$0xf]
    %v1821 = vld [vmem:[#allocation10 + $0xd8] sm:$0xf]
    %v1822 = vld [vmem:[#allocation10 + $0xdc] sm:$0xf]
    %v1823 = vld [vmem:[#allocation10 + $0xe0] sm:$0xf]
    %v1824 = vld [vmem:[#allocation10 + $0xe4] sm:$0xf]
    %v1825 = vld [vmem:[#allocation10 + $0xe8] sm:$0xf]
    %v1826 = vld [vmem:[#allocation10 + $0xec] sm:$0xf]
    %v1827 = vld [vmem:[#allocation10 + $0xf0] sm:$0xf]
    %v1828 = vld [vmem:[#allocation10 + $0xf4] sm:$0xf]
    %v1829 = vld [vmem:[#allocation10 + $0xf8] sm:$0xf]
    %v1830 = vld [vmem:[#allocation10 + $0xfc] sm:$0xf]
    %v1831 = vld [vmem:[%s7] sm:$0x1]
    %v1833 = vlaneseq
    %v1834 = vshrl.u32 %v1833, 7
    %v1835 = vsub.s32 0, %v1834
    %v1836 = vrot.slane %v1831, %v1835
    %v1902 = vunpack.c.l.b16 %v1767
    %v1903 = vunpack.c.l.b16 %v1768
    %v1904 = vunpack.c.l.b16 %v1769
    %v1905 = vunpack.c.l.b16 %v1770
    %v1906 = vunpack.c.l.b16 %v1771
    %v1907 = vunpack.c.l.b16 %v1772
    %v1908 = vunpack.c.l.b16 %v1773
    %v1909 = vunpack.c.l.b16 %v1774
    %v1910 = vunpack.c.l.b16 %v1775
    %v1911 = vunpack.c.l.b16 %v1776
    %v1912 = vunpack.c.l.b16 %v1777
    %v1913 = vunpack.c.l.b16 %v1778
    %v1914 = vunpack.c.l.b16 %v1779
    %v1915 = vunpack.c.l.b16 %v1780
    %v1916 = vunpack.c.l.b16 %v1781
    %v1917 = vunpack.c.l.b16 %v1782
    %v1918 = vunpack.c.l.b16 %v1783
    %v1919 = vunpack.c.l.b16 %v1784
    %v1920 = vunpack.c.l.b16 %v1785
    %v1921 = vunpack.c.l.b16 %v1786
    %v1922 = vunpack.c.l.b16 %v1787
    %v1923 = vunpack.c.l.b16 %v1788
    %v1924 = vunpack.c.l.b16 %v1789
    %v1925 = vunpack.c.l.b16 %v1790
    %v1926 = vunpack.c.l.b16 %v1791
    %v1927 = vunpack.c.l.b16 %v1792
    %v1928 = vunpack.c.l.b16 %v1793
    %v1929 = vunpack.c.l.b16 %v1794
    %v1930 = vunpack.c.l.b16 %v1795
    %v1931 = vunpack.c.l.b16 %v1796
    %v1932 = vunpack.c.l.b16 %v1797
    %v1933 = vunpack.c.l.b16 %v1798
    %v1934 = vunpack.c.l.b16 %v1799
    %v1935 = vunpack.c.l.b16 %v1800
    %v1936 = vunpack.c.l.b16 %v1801
    %v1937 = vunpack.c.l.b16 %v1802
    %v1938 = vunpack.c.l.b16 %v1803
    %v1939 = vunpack.c.l.b16 %v1804
    %v1940 = vunpack.c.l.b16 %v1805
    %v1941 = vunpack.c.l.b16 %v1806
    %v1942 = vunpack.c.l.b16 %v1807
    %v1943 = vunpack.c.l.b16 %v1808
    %v1944 = vunpack.c.l.b16 %v1809
    %v1945 = vunpack.c.l.b16 %v1810
    %v1946 = vunpack.c.l.b16 %v1811
    %v1947 = vunpack.c.l.b16 %v1812
    %v1948 = vunpack.c.l.b16 %v1813
    %v1949 = vunpack.c.l.b16 %v1814
    %v1950 = vunpack.c.l.b16 %v1815
    %v1951 = vunpack.c.l.b16 %v1816
    %v1952 = vunpack.c.l.b16 %v1817
    %v1953 = vunpack.c.l.b16 %v1818
    %v1954 = vunpack.c.l.b16 %v1819
    %v1955 = vunpack.c.l.b16 %v1820
    %v1956 = vunpack.c.l.b16 %v1821
    %v1957 = vunpack.c.l.b16 %v1822
    %v1958 = vunpack.c.l.b16 %v1823
    %v1959 = vunpack.c.l.b16 %v1824
    %v1960 = vunpack.c.l.b16 %v1825
    %v1961 = vunpack.c.l.b16 %v1826
    %v1962 = vunpack.c.l.b16 %v1827
    %v1963 = vunpack.c.l.b16 %v1828
    %v1964 = vunpack.c.l.b16 %v1829
    %v1965 = vunpack.c.l.b16 %v1830
    %v1966 = vpack.c.b16 %v1903, %v1902
    %v1967 = vpack.c.b16 %v1905, %v1904
    %v1968 = vpack.c.b16 %v1907, %v1906
    %v1969 = vpack.c.b16 %v1909, %v1908
    %v1970 = vpack.c.b16 %v1911, %v1910
    %v1971 = vpack.c.b16 %v1913, %v1912
    %v1972 = vpack.c.b16 %v1915, %v1914
    %v1973 = vpack.c.b16 %v1917, %v1916
    %v1974 = vpack.c.b16 %v1919, %v1918
    %v1975 = vpack.c.b16 %v1921, %v1920
    %v1976 = vpack.c.b16 %v1923, %v1922
    %v1977 = vpack.c.b16 %v1925, %v1924
    %v1978 = vpack.c.b16 %v1927, %v1926
    %v1979 = vpack.c.b16 %v1929, %v1928
    %v1980 = vpack.c.b16 %v1931, %v1930
    %v1981 = vpack.c.b16 %v1933, %v1932
    %v1982 = vpack.c.b16 %v1935, %v1934
    %v1983 = vpack.c.b16 %v1937, %v1936
    %v1984 = vpack.c.b16 %v1939, %v1938
    %v1985 = vpack.c.b16 %v1941, %v1940
    %v1986 = vpack.c.b16 %v1943, %v1942
    %v1987 = vpack.c.b16 %v1945, %v1944
    %v1988 = vpack.c.b16 %v1947, %v1946
    %v1989 = vpack.c.b16 %v1949, %v1948
    %v1990 = vpack.c.b16 %v1951, %v1950
    %v1991 = vpack.c.b16 %v1953, %v1952
    %v1992 = vpack.c.b16 %v1955, %v1954
    %v1993 = vpack.c.b16 %v1957, %v1956
    %v1994 = vpack.c.b16 %v1959, %v1958
    %v1995 = vpack.c.b16 %v1961, %v1960
    %v1996 = vpack.c.b16 %v1963, %v1962
    %v1997 = vpack.c.b16 %v1965, %v1964
    %2030 = vmatprep.subr.bf16.mxu0 0
    %2031 = vmatpush1.bf16.msra.mxu0 %v1973
    %2032 = vmatprep.subr.bf16.mxu0 0
    %2033 = vmatpush1.bf16.msra.mxu0 %v1972
    %2034 = vmatprep.subr.bf16.mxu0 0
    %2035 = vmatpush1.bf16.msra.mxu0 %v1971
    %2036 = vmatprep.subr.bf16.mxu0 0
    %2037 = vmatpush1.bf16.msra.mxu0 %v1970
    %2038 = vmatprep.subr.bf16.mxu0 0
    %2039 = vmatpush1.bf16.msra.mxu0 %v1969
    %2040 = vmatprep.subr.bf16.mxu0 0
    %2041 = vmatpush1.bf16.msra.mxu0 %v1968
    %2042 = vmatprep.subr.bf16.mxu0 0
    %2043 = vmatpush1.bf16.msra.mxu0 %v1967
    %2044 = vmatprep.subr.bf16.mxu0 0
    %2045 = vmatpush1.bf16.msra.mxu0 %v1966
    %2046 = vmatprep.subr.bf16.mxu0 0
    %2047 = vmatpush2.bf16.msra.mxu0 %v1981
    %2048 = vmatprep.subr.bf16.mxu0 0
    %2049 = vmatpush2.bf16.msra.mxu0 %v1980
    %2050 = vmatprep.subr.bf16.mxu0 0
    %2051 = vmatpush2.bf16.msra.mxu0 %v1979
    %2052 = vmatprep.subr.bf16.mxu0 0
    %2053 = vmatpush2.bf16.msra.mxu0 %v1978
    %2054 = vmatprep.subr.bf16.mxu0 0
    %2055 = vmatpush2.bf16.msra.mxu0 %v1977
    %2056 = vmatprep.subr.bf16.mxu0 0
    %2057 = vmatpush2.bf16.msra.mxu0 %v1976
    %2058 = vmatprep.subr.bf16.mxu0 0
    %2059 = vmatpush2.bf16.msra.mxu0 %v1975
    %2060 = vmatprep.subr.bf16.mxu0 0
    %2061 = vmatpush2.bf16.msra.mxu0 %v1974
    %2062 = vmatprep.mubr.bf16.mxu0 %v1764
    %2063 = vmatmul.mubr.bf16.gmra.mxu0 %v1763
    %v2064 = vpop.f32.mrf.mxu0
    %v2065 = vadd.f32 %v1836, %v2064
    %v2066 = vpop.f32.mrf.mxu0
    %v2067 = vpop.f32.mrf.mxu0
    %v2068 = vpop.f32.mrf.mxu0
    %2069 = vdwg.mxu0
    %2070 = vmatprep.subr.bf16.mxu0 0
    %2071 = vmatpush1.bf16.msra.mxu0 %v1989
    %2072 = vmatprep.subr.bf16.mxu0 0
    %2073 = vmatpush1.bf16.msra.mxu0 %v1988
    %2074 = vmatprep.subr.bf16.mxu0 0
    %2075 = vmatpush1.bf16.msra.mxu0 %v1987
    %2076 = vmatprep.subr.bf16.mxu0 0
    %2077 = vmatpush1.bf16.msra.mxu0 %v1986
    %2078 = vmatprep.subr.bf16.mxu0 0
    %2079 = vmatpush1.bf16.msra.mxu0 %v1985
    %2080 = vmatprep.subr.bf16.mxu0 0
    %2081 = vmatpush1.bf16.msra.mxu0 %v1984
    %2082 = vmatprep.subr.bf16.mxu0 0
    %2083 = vmatpush1.bf16.msra.mxu0 %v1983
    %2084 = vmatprep.subr.bf16.mxu0 0
    %2085 = vmatpush1.bf16.msra.mxu0 %v1982
    %2086 = vmatprep.subr.bf16.mxu0 0
    %2087 = vmatpush2.bf16.msra.mxu0 %v1997
    %2088 = vmatprep.subr.bf16.mxu0 0
    %2089 = vmatpush2.bf16.msra.mxu0 %v1996
    %2090 = vmatprep.subr.bf16.mxu0 0
    %2091 = vmatpush2.bf16.msra.mxu0 %v1995
    %2092 = vmatprep.subr.bf16.mxu0 0
    %2093 = vmatpush2.bf16.msra.mxu0 %v1994
    %2094 = vmatprep.subr.bf16.mxu0 0
    %2095 = vmatpush2.bf16.msra.mxu0 %v1993
    %2096 = vmatprep.subr.bf16.mxu0 0
    %2097 = vmatpush2.bf16.msra.mxu0 %v1992
    %2098 = vmatprep.subr.bf16.mxu0 0
    %2099 = vmatpush2.bf16.msra.mxu0 %v1991
    %2100 = vmatprep.subr.bf16.mxu0 0
    %2101 = vmatpush2.bf16.msra.mxu0 %v1990
    %2102 = vmatprep.mubr.bf16.mxu0 %v1766
    %2103 = vmatmul.mubr.bf16.gmra.mxu0 %v1765
    %v2104 = vpop.f32.mrf.mxu0
    %v2105 = vadd.f32 %v2065, %v2104
    %v2106 = vpop.f32.mrf.mxu0
    %v2107 = vpop.f32.mrf.mxu0
    %v2108 = vpop.f32.mrf.mxu0
    %2109 = vdwg.mxu0
    %v2110 = vadd.f32 %v2105, 0.0
    %v2112 = vrot.slane %v461, 2
    %v2114 = vadd.f32 %v465, %v2112
    %vm2115 = vcmp.ge.f32.partialorder %v2114, 1.0
    %v2116 = vsel %vm2115, 0.0, %v2114
    %v2117 = vsel %vm2115, 1, 0
    %v2118 = vcvt.s32.f32 %v2117
    %v2119 = vpack.c.bf16 %v2118, %v2118
    %2120 = vmatprep.subr.bf16.mxu0 %v648
    %2121 = vmatpush1.bf16.msra.mxu0 %v647
    %2122 = vmatprep.subr.bf16.mxu0 %v644
    %2123 = vmatpush1.bf16.msra.mxu0 %v643
    %2124 = vmatprep.subr.bf16.mxu0 %v640
    %2125 = vmatpush1.bf16.msra.mxu0 %v639
    %2126 = vmatprep.subr.bf16.mxu0 %v636
    %2127 = vmatpush1.bf16.msra.mxu0 %v635
    %2128 = vmatprep.subr.bf16.mxu0 %v632
    %2129 = vmatpush1.bf16.msra.mxu0 %v631
    %2130 = vmatprep.subr.bf16.mxu0 %v628
    %2131 = vmatpush1.bf16.msra.mxu0 %v627
    %2132 = vmatprep.subr.bf16.mxu0 %v624
    %2133 = vmatpush1.bf16.msra.mxu0 %v623
    %2134 = vmatprep.subr.bf16.mxu0 %v620
    %2135 = vmatpush1.bf16.msra.mxu0 %v619
    %2136 = vmatprep.subr.bf16.mxu0 0
    %2137 = vmatpush2.bf16.msra.mxu0 0
    %2138 = vmatprep.subr.bf16.mxu0 0
    %2139 = vmatpush2.bf16.msra.mxu0 0
    %2140 = vmatprep.subr.bf16.mxu0 0
    %2141 = vmatpush2.bf16.msra.mxu0 0
    %2142 = vmatprep.subr.bf16.mxu0 0
    %2143 = vmatpush2.bf16.msra.mxu0 0
    %2144 = vmatprep.subr.bf16.mxu0 0
    %2145 = vmatpush2.bf16.msra.mxu0 0
    %2146 = vmatprep.subr.bf16.mxu0 0
    %2147 = vmatpush2.bf16.msra.mxu0 0
    %2148 = vmatprep.subr.bf16.mxu0 0
    %2149 = vmatpush2.bf16.msra.mxu0 0
    %2150 = vmatprep.subr.bf16.mxu0 0
    %2151 = vmatpush2.bf16.msra.mxu0 0
    %2152 = vmatprep.mubr.bf16.mxu0 0
    %2153 = vmatmul.mubr.bf16.gmra.mxu0 %v2119
    %v2154 = vpop.f32.mrf.mxu0
    %v2155 = vadd.f32 %v506, %v2154
    %v2156 = vpop.f32.mrf.mxu0
    %v2157 = vadd.f32 %v510, %v2156
    %v2158 = vpop.f32.mrf.mxu0
    %v2159 = vpop.f32.mrf.mxu0
    %2160 = vdwg.mxu0
    %2161 = vmatprep.subr.bf16.mxu0 %v650
    %2162 = vmatpush1.bf16.msra.mxu0 %v649
    %2163 = vmatprep.subr.bf16.mxu0 %v646
    %2164 = vmatpush1.bf16.msra.mxu0 %v645
    %2165 = vmatprep.subr.bf16.mxu0 %v642
    %2166 = vmatpush1.bf16.msra.mxu0 %v641
    %2167 = vmatprep.subr.bf16.mxu0 %v638
    %2168 = vmatpush1.bf16.msra.mxu0 %v637
    %2169 = vmatprep.subr.bf16.mxu0 %v634
    %2170 = vmatpush1.bf16.msra.mxu0 %v633
    %2171 = vmatprep.subr.bf16.mxu0 %v630
    %2172 = vmatpush1.bf16.msra.mxu0 %v629
    %2173 = vmatprep.subr.bf16.mxu0 %v626
    %2174 = vmatpush1.bf16.msra.mxu0 %v625
    %2175 = vmatprep.subr.bf16.mxu0 %v622
    %2176 = vmatpush1.bf16.msra.mxu0 %v621
    %2177 = vmatprep.subr.bf16.mxu0 0
    %2178 = vmatpush2.bf16.msra.mxu0 0
    %2179 = vmatprep.subr.bf16.mxu0 0
    %2180 = vmatpush2.bf16.msra.mxu0 0
    %2181 = vmatprep.subr.bf16.mxu0 0
    %2182 = vmatpush2.bf16.msra.mxu0 0
    %2183 = vmatprep.subr.bf16.mxu0 0
    %2184 = vmatpush2.bf16.msra.mxu0 0
    %2185 = vmatprep.subr.bf16.mxu0 0
    %2186 = vmatpush2.bf16.msra.mxu0 0
    %2187 = vmatprep.subr.bf16.mxu0 0
    %2188 = vmatpush2.bf16.msra.mxu0 0
    %2189 = vmatprep.subr.bf16.mxu0 0
    %2190 = vmatpush2.bf16.msra.mxu0 0
    %2191 = vmatprep.subr.bf16.mxu0 0
    %2192 = vmatpush2.bf16.msra.mxu0 0
    %2193 = vmatprep.mubr.bf16.mxu0 0
    %2194 = vmatmul.mubr.bf16.gmra.mxu0 %v2119
    %v2195 = vpop.f32.mrf.mxu0
    %v2196 = vadd.f32 %v514, %v2195
    %v2197 = vpop.f32.mrf.mxu0
    %v2198 = vadd.f32 %v518, %v2197
    %v2199 = vpop.f32.mrf.mxu0
    %v2200 = vpop.f32.mrf.mxu0
    %2201 = vdwg.mxu0
    %v2202 = vadd.f32 %v773, %v2155
    %v2203 = vadd.f32 %v774, %v2157
    %v2204 = vadd.f32 %v775, %v2196
    %v2205 = vadd.f32 %v776, %v2198
    %vm2206 = vcmp.ge.f32.partialorder %v2202, 1.0
    %vm2207 = vcmp.ge.f32.partialorder %v2203, 1.0
    %vm2208 = vcmp.ge.f32.partialorder %v2204, 1.0
    %vm2209 = vcmp.ge.f32.partialorder %v2205, 1.0
    %v2210 = vsel %vm2206, 0.0, %v2202
    %v2211 = vsel %vm2207, 0.0, %v2203
    %v2212 = vsel %vm2208, 0.0, %v2204
    %v2213 = vsel %vm2209, 0.0, %v2205
    %v2214 = vsel %vm2206, 1, 0
    %v2215 = vsel %vm2207, 1, 0
    %v2216 = vsel %vm2208, 1, 0
    %v2217 = vsel %vm2209, 1, 0
    %v2218 = vcvt.s32.f32 %v2214
    %v2219 = vcvt.s32.f32 %v2215
    %v2220 = vcvt.s32.f32 %v2216
    %v2221 = vcvt.s32.f32 %v2217
    %v2222 = vpack.c.bf16 %v2218, %v2218
    %v2223 = vpack.c.bf16 %v2219, %v2219
    %v2224 = vpack.c.bf16 %v2220, %v2220
    %v2225 = vpack.c.bf16 %v2221, %v2221
    %2226 = vmatprep.subr.bf16.mxu0 %v1352
    %2227 = vmatpush1.bf16.msra.mxu0 %v1351
    %2228 = vmatprep.subr.bf16.mxu0 %v1348
    %2229 = vmatpush1.bf16.msra.mxu0 %v1347
    %2230 = vmatprep.subr.bf16.mxu0 %v1344
    %2231 = vmatpush1.bf16.msra.mxu0 %v1343
    %2232 = vmatprep.subr.bf16.mxu0 %v1340
    %2233 = vmatpush1.bf16.msra.mxu0 %v1339
    %2234 = vmatprep.subr.bf16.mxu0 %v1336
    %2235 = vmatpush1.bf16.msra.mxu0 %v1335
    %2236 = vmatprep.subr.bf16.mxu0 %v1332
    %2237 = vmatpush1.bf16.msra.mxu0 %v1331
    %2238 = vmatprep.subr.bf16.mxu0 %v1328
    %2239 = vmatpush1.bf16.msra.mxu0 %v1327
    %2240 = vmatprep.subr.bf16.mxu0 %v1324
    %2241 = vmatpush1.bf16.msra.mxu0 %v1323
    %2242 = vmatprep.subr.bf16.mxu0 %v1384
    %2243 = vmatpush2.bf16.msra.mxu0 %v1383
    %2244 = vmatprep.subr.bf16.mxu0 %v1380
    %2245 = vmatpush2.bf16.msra.mxu0 %v1379
    %2246 = vmatprep.subr.bf16.mxu0 %v1376
    %2247 = vmatpush2.bf16.msra.mxu0 %v1375
    %2248 = vmatprep.subr.bf16.mxu0 %v1372
    %2249 = vmatpush2.bf16.msra.mxu0 %v1371
    %2250 = vmatprep.subr.bf16.mxu0 %v1368
    %2251 = vmatpush2.bf16.msra.mxu0 %v1367
    %2252 = vmatprep.subr.bf16.mxu0 %v1364
    %2253 = vmatpush2.bf16.msra.mxu0 %v1363
    %2254 = vmatprep.subr.bf16.mxu0 %v1360
    %2255 = vmatpush2.bf16.msra.mxu0 %v1359
    %2256 = vmatprep.subr.bf16.mxu0 %v1356
    %2257 = vmatpush2.bf16.msra.mxu0 %v1355
    %2258 = vmatprep.mubr.bf16.mxu0 %v2223
    %2259 = vmatmul.mubr.bf16.gmra.mxu0 %v2222
    %v2260 = vpop.f32.mrf.mxu0
    %v2261 = vadd.f32 %v922, %v2260
    %v2262 = vpop.f32.mrf.mxu0
    %v2263 = vadd.f32 %v926, %v2262
    %v2264 = vpop.f32.mrf.mxu0
    %v2265 = vpop.f32.mrf.mxu0
    %2266 = vdwg.mxu0
    %2267 = vmatprep.subr.bf16.mxu0 %v1416
    %2268 = vmatpush1.bf16.msra.mxu0 %v1415
    %2269 = vmatprep.subr.bf16.mxu0 %v1412
    %2270 = vmatpush1.bf16.msra.mxu0 %v1411
    %2271 = vmatprep.subr.bf16.mxu0 %v1408
    %2272 = vmatpush1.bf16.msra.mxu0 %v1407
    %2273 = vmatprep.subr.bf16.mxu0 %v1404
    %2274 = vmatpush1.bf16.msra.mxu0 %v1403
    %2275 = vmatprep.subr.bf16.mxu0 %v1400
    %2276 = vmatpush1.bf16.msra.mxu0 %v1399
    %2277 = vmatprep.subr.bf16.mxu0 %v1396
    %2278 = vmatpush1.bf16.msra.mxu0 %v1395
    %2279 = vmatprep.subr.bf16.mxu0 %v1392
    %2280 = vmatpush1.bf16.msra.mxu0 %v1391
    %2281 = vmatprep.subr.bf16.mxu0 %v1388
    %2282 = vmatpush1.bf16.msra.mxu0 %v1387
    %2283 = vmatprep.subr.bf16.mxu0 %v1448
    %2284 = vmatpush2.bf16.msra.mxu0 %v1447
    %2285 = vmatprep.subr.bf16.mxu0 %v1444
    %2286 = vmatpush2.bf16.msra.mxu0 %v1443
    %2287 = vmatprep.subr.bf16.mxu0 %v1440
    %2288 = vmatpush2.bf16.msra.mxu0 %v1439
    %2289 = vmatprep.subr.bf16.mxu0 %v1436
    %2290 = vmatpush2.bf16.msra.mxu0 %v1435
    %2291 = vmatprep.subr.bf16.mxu0 %v1432
    %2292 = vmatpush2.bf16.msra.mxu0 %v1431
    %2293 = vmatprep.subr.bf16.mxu0 %v1428
    %2294 = vmatpush2.bf16.msra.mxu0 %v1427
    %2295 = vmatprep.subr.bf16.mxu0 %v1424
    %2296 = vmatpush2.bf16.msra.mxu0 %v1423
    %2297 = vmatprep.subr.bf16.mxu0 %v1420
    %2298 = vmatpush2.bf16.msra.mxu0 %v1419
    %2299 = vmatprep.mubr.bf16.mxu0 %v2225
    %2300 = vmatmul.mubr.bf16.gmra.mxu0 %v2224
    %v2301 = vpop.f32.mrf.mxu0
    %v2302 = vadd.f32 %v2261, %v2301
    %v2303 = vpop.f32.mrf.mxu0
    %v2304 = vadd.f32 %v2263, %v2303
    %v2305 = vpop.f32.mrf.mxu0
    %v2306 = vpop.f32.mrf.mxu0
    %2307 = vdwg.mxu0
    %2308 = vmatprep.subr.bf16.mxu0 %v1354
    %2309 = vmatpush1.bf16.msra.mxu0 %v1353
    %2310 = vmatprep.subr.bf16.mxu0 %v1350
    %2311 = vmatpush1.bf16.msra.mxu0 %v1349
    %2312 = vmatprep.subr.bf16.mxu0 %v1346
    %2313 = vmatpush1.bf16.msra.mxu0 %v1345
    %2314 = vmatprep.subr.bf16.mxu0 %v1342
    %2315 = vmatpush1.bf16.msra.mxu0 %v1341
    %2316 = vmatprep.subr.bf16.mxu0 %v1338
    %2317 = vmatpush1.bf16.msra.mxu0 %v1337
    %2318 = vmatprep.subr.bf16.mxu0 %v1334
    %2319 = vmatpush1.bf16.msra.mxu0 %v1333
    %2320 = vmatprep.subr.bf16.mxu0 %v1330
    %2321 = vmatpush1.bf16.msra.mxu0 %v1329
    %2322 = vmatprep.subr.bf16.mxu0 %v1326
    %2323 = vmatpush1.bf16.msra.mxu0 %v1325
    %2324 = vmatprep.subr.bf16.mxu0 %v1386
    %2325 = vmatpush2.bf16.msra.mxu0 %v1385
    %2326 = vmatprep.subr.bf16.mxu0 %v1382
    %2327 = vmatpush2.bf16.msra.mxu0 %v1381
    %2328 = vmatprep.subr.bf16.mxu0 %v1378
    %2329 = vmatpush2.bf16.msra.mxu0 %v1377
    %2330 = vmatprep.subr.bf16.mxu0 %v1374
    %2331 = vmatpush2.bf16.msra.mxu0 %v1373
    %2332 = vmatprep.subr.bf16.mxu0 %v1370
    %2333 = vmatpush2.bf16.msra.mxu0 %v1369
    %2334 = vmatprep.subr.bf16.mxu0 %v1366
    %2335 = vmatpush2.bf16.msra.mxu0 %v1365
    %2336 = vmatprep.subr.bf16.mxu0 %v1362
    %2337 = vmatpush2.bf16.msra.mxu0 %v1361
    %2338 = vmatprep.subr.bf16.mxu0 %v1358
    %2339 = vmatpush2.bf16.msra.mxu0 %v1357
    %2340 = vmatprep.mubr.bf16.mxu0 %v2223
    %2341 = vmatmul.mubr.bf16.gmra.mxu0 %v2222
    %v2342 = vpop.f32.mrf.mxu0
    %v2343 = vadd.f32 %v930, %v2342
    %v2344 = vpop.f32.mrf.mxu0
    %v2345 = vadd.f32 %v934, %v2344
    %v2346 = vpop.f32.mrf.mxu0
    %v2347 = vpop.f32.mrf.mxu0
    %2348 = vdwg.mxu0
    %2349 = vmatprep.subr.bf16.mxu0 %v1418
    %2350 = vmatpush1.bf16.msra.mxu0 %v1417
    %2351 = vmatprep.subr.bf16.mxu0 %v1414
    %2352 = vmatpush1.bf16.msra.mxu0 %v1413
    %2353 = vmatprep.subr.bf16.mxu0 %v1410
    %2354 = vmatpush1.bf16.msra.mxu0 %v1409
    %2355 = vmatprep.subr.bf16.mxu0 %v1406
    %2356 = vmatpush1.bf16.msra.mxu0 %v1405
    %2357 = vmatprep.subr.bf16.mxu0 %v1402
    %2358 = vmatpush1.bf16.msra.mxu0 %v1401
    %2359 = vmatprep.subr.bf16.mxu0 %v1398
    %2360 = vmatpush1.bf16.msra.mxu0 %v1397
    %2361 = vmatprep.subr.bf16.mxu0 %v1394
    %2362 = vmatpush1.bf16.msra.mxu0 %v1393
    %2363 = vmatprep.subr.bf16.mxu0 %v1390
    %2364 = vmatpush1.bf16.msra.mxu0 %v1389
    %2365 = vmatprep.subr.bf16.mxu0 %v1450
    %2366 = vmatpush2.bf16.msra.mxu0 %v1449
    %2367 = vmatprep.subr.bf16.mxu0 %v1446
    %2368 = vmatpush2.bf16.msra.mxu0 %v1445
    %2369 = vmatprep.subr.bf16.mxu0 %v1442
    %2370 = vmatpush2.bf16.msra.mxu0 %v1441
    %2371 = vmatprep.subr.bf16.mxu0 %v1438
    %2372 = vmatpush2.bf16.msra.mxu0 %v1437
    %2373 = vmatprep.subr.bf16.mxu0 %v1434
    %2374 = vmatpush2.bf16.msra.mxu0 %v1433
    %2375 = vmatprep.subr.bf16.mxu0 %v1430
    %2376 = vmatpush2.bf16.msra.mxu0 %v1429
    %2377 = vmatprep.subr.bf16.mxu0 %v1426
    %2378 = vmatpush2.bf16.msra.mxu0 %v1425
    %2379 = vmatprep.subr.bf16.mxu0 %v1422
    %2380 = vmatpush2.bf16.msra.mxu0 %v1421
    %2381 = vmatprep.mubr.bf16.mxu0 %v2225
    %2382 = vmatmul.mubr.bf16.gmra.mxu0 %v2224
    %v2383 = vpop.f32.mrf.mxu0
    %v2384 = vadd.f32 %v2343, %v2383
    %v2385 = vpop.f32.mrf.mxu0
    %v2386 = vadd.f32 %v2345, %v2385
    %v2387 = vpop.f32.mrf.mxu0
    %v2388 = vpop.f32.mrf.mxu0
    %2389 = vdwg.mxu0
    %v2390 = vadd.f32 %v1751, %v2302
    %v2391 = vadd.f32 %v1752, %v2304
    %v2392 = vadd.f32 %v1753, %v2384
    %v2393 = vadd.f32 %v1754, %v2386
    %vm2394 = vcmp.ge.f32.partialorder %v2390, 1.0
    %vm2395 = vcmp.ge.f32.partialorder %v2391, 1.0
    %vm2396 = vcmp.ge.f32.partialorder %v2392, 1.0
    %vm2397 = vcmp.ge.f32.partialorder %v2393, 1.0
    %v2398 = vsel %vm2394, 0.0, %v2390
    %v2399 = vsel %vm2395, 0.0, %v2391
    %v2400 = vsel %vm2396, 0.0, %v2392
    %v2401 = vsel %vm2397, 0.0, %v2393
    %v2402 = vsel %vm2394, 1, 0
    %v2403 = vsel %vm2395, 1, 0
    %v2404 = vsel %vm2396, 1, 0
    %v2405 = vsel %vm2397, 1, 0
    %v2406 = vcvt.s32.f32 %v2402
    %v2407 = vcvt.s32.f32 %v2403
    %v2408 = vcvt.s32.f32 %v2404
    %v2409 = vcvt.s32.f32 %v2405
    %v2410 = vpack.c.bf16 %v2406, %v2406
    %v2411 = vpack.c.bf16 %v2407, %v2407
    %v2412 = vpack.c.bf16 %v2408, %v2408
    %v2413 = vpack.c.bf16 %v2409, %v2409
    %2414 = vmatprep.subr.bf16.mxu0 0
    %2415 = vmatpush1.bf16.msra.mxu0 %v1973
    %2416 = vmatprep.subr.bf16.mxu0 0
    %2417 = vmatpush1.bf16.msra.mxu0 %v1972
    %2418 = vmatprep.subr.bf16.mxu0 0
    %2419 = vmatpush1.bf16.msra.mxu0 %v1971
    %2420 = vmatprep.subr.bf16.mxu0 0
    %2421 = vmatpush1.bf16.msra.mxu0 %v1970
    %2422 = vmatprep.subr.bf16.mxu0 0
    %2423 = vmatpush1.bf16.msra.mxu0 %v1969
    %2424 = vmatprep.subr.bf16.mxu0 0
    %2425 = vmatpush1.bf16.msra.mxu0 %v1968
    %2426 = vmatprep.subr.bf16.mxu0 0
    %2427 = vmatpush1.bf16.msra.mxu0 %v1967
    %2428 = vmatprep.subr.bf16.mxu0 0
    %2429 = vmatpush1.bf16.msra.mxu0 %v1966
    %2430 = vmatprep.subr.bf16.mxu0 0
    %2431 = vmatpush2.bf16.msra.mxu0 %v1981
    %2432 = vmatprep.subr.bf16.mxu0 0
    %2433 = vmatpush2.bf16.msra.mxu0 %v1980
    %2434 = vmatprep.subr.bf16.mxu0 0
    %2435 = vmatpush2.bf16.msra.mxu0 %v1979
    %2436 = vmatprep.subr.bf16.mxu0 0
    %2437 = vmatpush2.bf16.msra.mxu0 %v1978
    %2438 = vmatprep.subr.bf16.mxu0 0
    %2439 = vmatpush2.bf16.msra.mxu0 %v1977
    %2440 = vmatprep.subr.bf16.mxu0 0
    %2441 = vmatpush2.bf16.msra.mxu0 %v1976
    %2442 = vmatprep.subr.bf16.mxu0 0
    %2443 = vmatpush2.bf16.msra.mxu0 %v1975
    %2444 = vmatprep.subr.bf16.mxu0 0
    %2445 = vmatpush2.bf16.msra.mxu0 %v1974
    %2446 = vmatprep.mubr.bf16.mxu0 %v2411
    %2447 = vmatmul.mubr.bf16.gmra.mxu0 %v2410
    %v2448 = vpop.f32.mrf.mxu0
    %v2449 = vadd.f32 %v1836, %v2448
    %v2450 = vpop.f32.mrf.mxu0
    %v2451 = vpop.f32.mrf.mxu0
    %v2452 = vpop.f32.mrf.mxu0
    %2453 = vdwg.mxu0
    %2454 = vmatprep.subr.bf16.mxu0 0
    %2455 = vmatpush1.bf16.msra.mxu0 %v1989
    %2456 = vmatprep.subr.bf16.mxu0 0
    %2457 = vmatpush1.bf16.msra.mxu0 %v1988
    %2458 = vmatprep.subr.bf16.mxu0 0
    %2459 = vmatpush1.bf16.msra.mxu0 %v1987
    %2460 = vmatprep.subr.bf16.mxu0 0
    %2461 = vmatpush1.bf16.msra.mxu0 %v1986
    %2462 = vmatprep.subr.bf16.mxu0 0
    %2463 = vmatpush1.bf16.msra.mxu0 %v1985
    %2464 = vmatprep.subr.bf16.mxu0 0
    %2465 = vmatpush1.bf16.msra.mxu0 %v1984
    %2466 = vmatprep.subr.bf16.mxu0 0
    %2467 = vmatpush1.bf16.msra.mxu0 %v1983
    %2468 = vmatprep.subr.bf16.mxu0 0
    %2469 = vmatpush1.bf16.msra.mxu0 %v1982
    %2470 = vmatprep.subr.bf16.mxu0 0
    %2471 = vmatpush2.bf16.msra.mxu0 %v1997
    %2472 = vmatprep.subr.bf16.mxu0 0
    %2473 = vmatpush2.bf16.msra.mxu0 %v1996
    %2474 = vmatprep.subr.bf16.mxu0 0
    %2475 = vmatpush2.bf16.msra.mxu0 %v1995
    %2476 = vmatprep.subr.bf16.mxu0 0
    %2477 = vmatpush2.bf16.msra.mxu0 %v1994
    %2478 = vmatprep.subr.bf16.mxu0 0
    %2479 = vmatpush2.bf16.msra.mxu0 %v1993
    %2480 = vmatprep.subr.bf16.mxu0 0
    %2481 = vmatpush2.bf16.msra.mxu0 %v1992
    %2482 = vmatprep.subr.bf16.mxu0 0
    %2483 = vmatpush2.bf16.msra.mxu0 %v1991
    %2484 = vmatprep.subr.bf16.mxu0 0
    %2485 = vmatpush2.bf16.msra.mxu0 %v1990
    %2486 = vmatprep.mubr.bf16.mxu0 %v2413
    %2487 = vmatmul.mubr.bf16.gmra.mxu0 %v2412
    %v2488 = vpop.f32.mrf.mxu0
    %v2489 = vadd.f32 %v2449, %v2488
    %v2490 = vpop.f32.mrf.mxu0
    %v2491 = vpop.f32.mrf.mxu0
    %v2492 = vpop.f32.mrf.mxu0
    %2493 = vdwg.mxu0
    %v2494 = vadd.f32 %v2110, %v2489
    %v2495 = vrot.slane %v461, 4
    %v2497 = vadd.f32 %v2116, %v2495
    %vm2498 = vcmp.ge.f32.partialorder %v2497, 1.0
    %v2499 = vsel %vm2498, 0.0, %v2497
    %v2500 = vsel %vm2498, 1, 0
    %v2501 = vcvt.s32.f32 %v2500
    %v2502 = vpack.c.bf16 %v2501, %v2501
    %2503 = vmatprep.subr.bf16.mxu0 %v648
    %2504 = vmatpush1.bf16.msra.mxu0 %v647
    %2505 = vmatprep.subr.bf16.mxu0 %v644
    %2506 = vmatpush1.bf16.msra.mxu0 %v643
    %2507 = vmatprep.subr.bf16.mxu0 %v640
    %2508 = vmatpush1.bf16.msra.mxu0 %v639
    %2509 = vmatprep.subr.bf16.mxu0 %v636
    %2510 = vmatpush1.bf16.msra.mxu0 %v635
    %2511 = vmatprep.subr.bf16.mxu0 %v632
    %2512 = vmatpush1.bf16.msra.mxu0 %v631
    %2513 = vmatprep.subr.bf16.mxu0 %v628
    %2514 = vmatpush1.bf16.msra.mxu0 %v627
    %2515 = vmatprep.subr.bf16.mxu0 %v624
    %2516 = vmatpush1.bf16.msra.mxu0 %v623
    %2517 = vmatprep.subr.bf16.mxu0 %v620
    %2518 = vmatpush1.bf16.msra.mxu0 %v619
    %2519 = vmatprep.subr.bf16.mxu0 0
    %2520 = vmatpush2.bf16.msra.mxu0 0
    %2521 = vmatprep.subr.bf16.mxu0 0
    %2522 = vmatpush2.bf16.msra.mxu0 0
    %2523 = vmatprep.subr.bf16.mxu0 0
    %2524 = vmatpush2.bf16.msra.mxu0 0
    %2525 = vmatprep.subr.bf16.mxu0 0
    %2526 = vmatpush2.bf16.msra.mxu0 0
    %2527 = vmatprep.subr.bf16.mxu0 0
    %2528 = vmatpush2.bf16.msra.mxu0 0
    %2529 = vmatprep.subr.bf16.mxu0 0
    %2530 = vmatpush2.bf16.msra.mxu0 0
    %2531 = vmatprep.subr.bf16.mxu0 0
    %2532 = vmatpush2.bf16.msra.mxu0 0
    %2533 = vmatprep.subr.bf16.mxu0 0
    %2534 = vmatpush2.bf16.msra.mxu0 0
    %2535 = vmatprep.mubr.bf16.mxu0 0
    %2536 = vmatmul.mubr.bf16.gmra.mxu0 %v2502
    %v2537 = vpop.f32.mrf.mxu0
    %v2538 = vadd.f32 %v506, %v2537
    %v2539 = vpop.f32.mrf.mxu0
    %v2540 = vadd.f32 %v510, %v2539
    %v2541 = vpop.f32.mrf.mxu0
    %v2542 = vpop.f32.mrf.mxu0
    %2543 = vdwg.mxu0
    %2544 = vmatprep.subr.bf16.mxu0 %v650
    %2545 = vmatpush1.bf16.msra.mxu0 %v649
    %2546 = vmatprep.subr.bf16.mxu0 %v646
    %2547 = vmatpush1.bf16.msra.mxu0 %v645
    %2548 = vmatprep.subr.bf16.mxu0 %v642
    %2549 = vmatpush1.bf16.msra.mxu0 %v641
    %2550 = vmatprep.subr.bf16.mxu0 %v638
    %2551 = vmatpush1.bf16.msra.mxu0 %v637
    %2552 = vmatprep.subr.bf16.mxu0 %v634
    %2553 = vmatpush1.bf16.msra.mxu0 %v633
    %2554 = vmatprep.subr.bf16.mxu0 %v630
    %2555 = vmatpush1.bf16.msra.mxu0 %v629
    %2556 = vmatprep.subr.bf16.mxu0 %v626
    %2557 = vmatpush1.bf16.msra.mxu0 %v625
    %2558 = vmatprep.subr.bf16.mxu0 %v622
    %2559 = vmatpush1.bf16.msra.mxu0 %v621
    %2560 = vmatprep.subr.bf16.mxu0 0
    %2561 = vmatpush2.bf16.msra.mxu0 0
    %2562 = vmatprep.subr.bf16.mxu0 0
    %2563 = vmatpush2.bf16.msra.mxu0 0
    %2564 = vmatprep.subr.bf16.mxu0 0
    %2565 = vmatpush2.bf16.msra.mxu0 0
    %2566 = vmatprep.subr.bf16.mxu0 0
    %2567 = vmatpush2.bf16.msra.mxu0 0
    %2568 = vmatprep.subr.bf16.mxu0 0
    %2569 = vmatpush2.bf16.msra.mxu0 0
    %2570 = vmatprep.subr.bf16.mxu0 0
    %2571 = vmatpush2.bf16.msra.mxu0 0
    %2572 = vmatprep.subr.bf16.mxu0 0
    %2573 = vmatpush2.bf16.msra.mxu0 0
    %2574 = vmatprep.subr.bf16.mxu0 0
    %2575 = vmatpush2.bf16.msra.mxu0 0
    %2576 = vmatprep.mubr.bf16.mxu0 0
    %2577 = vmatmul.mubr.bf16.gmra.mxu0 %v2502
    %v2578 = vpop.f32.mrf.mxu0
    %v2579 = vadd.f32 %v514, %v2578
    %v2580 = vpop.f32.mrf.mxu0
    %v2581 = vadd.f32 %v518, %v2580
    %v2582 = vpop.f32.mrf.mxu0
    %v2583 = vpop.f32.mrf.mxu0
    %2584 = vdwg.mxu0
    %v2585 = vadd.f32 %v2210, %v2538
    %v2586 = vadd.f32 %v2211, %v2540
    %v2587 = vadd.f32 %v2212, %v2579
    %v2588 = vadd.f32 %v2213, %v2581
    %vm2589 = vcmp.ge.f32.partialorder %v2585, 1.0
    %vm2590 = vcmp.ge.f32.partialorder %v2586, 1.0
    %vm2591 = vcmp.ge.f32.partialorder %v2587, 1.0
    %vm2592 = vcmp.ge.f32.partialorder %v2588, 1.0
    %v2593 = vsel %vm2589, 0.0, %v2585
    %v2594 = vsel %vm2590, 0.0, %v2586
    %v2595 = vsel %vm2591, 0.0, %v2587
    %v2596 = vsel %vm2592, 0.0, %v2588
    %v2597 = vsel %vm2589, 1, 0
    %v2598 = vsel %vm2590, 1, 0
    %v2599 = vsel %vm2591, 1, 0
    %v2600 = vsel %vm2592, 1, 0
    %v2601 = vcvt.s32.f32 %v2597
    %v2602 = vcvt.s32.f32 %v2598
    %v2603 = vcvt.s32.f32 %v2599
    %v2604 = vcvt.s32.f32 %v2600
    %v2605 = vpack.c.bf16 %v2601, %v2601
    %v2606 = vpack.c.bf16 %v2602, %v2602
    %v2607 = vpack.c.bf16 %v2603, %v2603
    %v2608 = vpack.c.bf16 %v2604, %v2604
    %2609 = vmatprep.subr.bf16.mxu0 %v1352
    %2610 = vmatpush1.bf16.msra.mxu0 %v1351
    %2611 = vmatprep.subr.bf16.mxu0 %v1348
    %2612 = vmatpush1.bf16.msra.mxu0 %v1347
    %2613 = vmatprep.subr.bf16.mxu0 %v1344
    %2614 = vmatpush1.bf16.msra.mxu0 %v1343
    %2615 = vmatprep.subr.bf16.mxu0 %v1340
    %2616 = vmatpush1.bf16.msra.mxu0 %v1339
    %2617 = vmatprep.subr.bf16.mxu0 %v1336
    %2618 = vmatpush1.bf16.msra.mxu0 %v1335
    %2619 = vmatprep.subr.bf16.mxu0 %v1332
    %2620 = vmatpush1.bf16.msra.mxu0 %v1331
    %2621 = vmatprep.subr.bf16.mxu0 %v1328
    %2622 = vmatpush1.bf16.msra.mxu0 %v1327
    %2623 = vmatprep.subr.bf16.mxu0 %v1324
    %2624 = vmatpush1.bf16.msra.mxu0 %v1323
    %2625 = vmatprep.subr.bf16.mxu0 %v1384
    %2626 = vmatpush2.bf16.msra.mxu0 %v1383
    %2627 = vmatprep.subr.bf16.mxu0 %v1380
    %2628 = vmatpush2.bf16.msra.mxu0 %v1379
    %2629 = vmatprep.subr.bf16.mxu0 %v1376
    %2630 = vmatpush2.bf16.msra.mxu0 %v1375
    %2631 = vmatprep.subr.bf16.mxu0 %v1372
    %2632 = vmatpush2.bf16.msra.mxu0 %v1371
    %2633 = vmatprep.subr.bf16.mxu0 %v1368
    %2634 = vmatpush2.bf16.msra.mxu0 %v1367
    %2635 = vmatprep.subr.bf16.mxu0 %v1364
    %2636 = vmatpush2.bf16.msra.mxu0 %v1363
    %2637 = vmatprep.subr.bf16.mxu0 %v1360
    %2638 = vmatpush2.bf16.msra.mxu0 %v1359
    %2639 = vmatprep.subr.bf16.mxu0 %v1356
    %2640 = vmatpush2.bf16.msra.mxu0 %v1355
    %2641 = vmatprep.mubr.bf16.mxu0 %v2606
    %2642 = vmatmul.mubr.bf16.gmra.mxu0 %v2605
    %v2643 = vpop.f32.mrf.mxu0
    %v2644 = vadd.f32 %v922, %v2643
    %v2645 = vpop.f32.mrf.mxu0
    %v2646 = vadd.f32 %v926, %v2645
    %v2647 = vpop.f32.mrf.mxu0
    %v2648 = vpop.f32.mrf.mxu0
    %2649 = vdwg.mxu0
    %2650 = vmatprep.subr.bf16.mxu0 %v1416
    %2651 = vmatpush1.bf16.msra.mxu0 %v1415
    %2652 = vmatprep.subr.bf16.mxu0 %v1412
    %2653 = vmatpush1.bf16.msra.mxu0 %v1411
    %2654 = vmatprep.subr.bf16.mxu0 %v1408
    %2655 = vmatpush1.bf16.msra.mxu0 %v1407
    %2656 = vmatprep.subr.bf16.mxu0 %v1404
    %2657 = vmatpush1.bf16.msra.mxu0 %v1403
    %2658 = vmatprep.subr.bf16.mxu0 %v1400
    %2659 = vmatpush1.bf16.msra.mxu0 %v1399
    %2660 = vmatprep.subr.bf16.mxu0 %v1396
    %2661 = vmatpush1.bf16.msra.mxu0 %v1395
    %2662 = vmatprep.subr.bf16.mxu0 %v1392
    %2663 = vmatpush1.bf16.msra.mxu0 %v1391
    %2664 = vmatprep.subr.bf16.mxu0 %v1388
    %2665 = vmatpush1.bf16.msra.mxu0 %v1387
    %2666 = vmatprep.subr.bf16.mxu0 %v1448
    %2667 = vmatpush2.bf16.msra.mxu0 %v1447
    %2668 = vmatprep.subr.bf16.mxu0 %v1444
    %2669 = vmatpush2.bf16.msra.mxu0 %v1443
    %2670 = vmatprep.subr.bf16.mxu0 %v1440
    %2671 = vmatpush2.bf16.msra.mxu0 %v1439
    %2672 = vmatprep.subr.bf16.mxu0 %v1436
    %2673 = vmatpush2.bf16.msra.mxu0 %v1435
    %2674 = vmatprep.subr.bf16.mxu0 %v1432
    %2675 = vmatpush2.bf16.msra.mxu0 %v1431
    %2676 = vmatprep.subr.bf16.mxu0 %v1428
    %2677 = vmatpush2.bf16.msra.mxu0 %v1427
    %2678 = vmatprep.subr.bf16.mxu0 %v1424
    %2679 = vmatpush2.bf16.msra.mxu0 %v1423
    %2680 = vmatprep.subr.bf16.mxu0 %v1420
    %2681 = vmatpush2.bf16.msra.mxu0 %v1419
    %2682 = vmatprep.mubr.bf16.mxu0 %v2608
    %2683 = vmatmul.mubr.bf16.gmra.mxu0 %v2607
    %v2684 = vpop.f32.mrf.mxu0
    %v2685 = vadd.f32 %v2644, %v2684
    %v2686 = vpop.f32.mrf.mxu0
    %v2687 = vadd.f32 %v2646, %v2686
    %v2688 = vpop.f32.mrf.mxu0
    %v2689 = vpop.f32.mrf.mxu0
    %2690 = vdwg.mxu0
    %2691 = vmatprep.subr.bf16.mxu0 %v1354
    %2692 = vmatpush1.bf16.msra.mxu0 %v1353
    %2693 = vmatprep.subr.bf16.mxu0 %v1350
    %2694 = vmatpush1.bf16.msra.mxu0 %v1349
    %2695 = vmatprep.subr.bf16.mxu0 %v1346
    %2696 = vmatpush1.bf16.msra.mxu0 %v1345
    %2697 = vmatprep.subr.bf16.mxu0 %v1342
    %2698 = vmatpush1.bf16.msra.mxu0 %v1341
    %2699 = vmatprep.subr.bf16.mxu0 %v1338
    %2700 = vmatpush1.bf16.msra.mxu0 %v1337
    %2701 = vmatprep.subr.bf16.mxu0 %v1334
    %2702 = vmatpush1.bf16.msra.mxu0 %v1333
    %2703 = vmatprep.subr.bf16.mxu0 %v1330
    %2704 = vmatpush1.bf16.msra.mxu0 %v1329
    %2705 = vmatprep.subr.bf16.mxu0 %v1326
    %2706 = vmatpush1.bf16.msra.mxu0 %v1325
    %2707 = vmatprep.subr.bf16.mxu0 %v1386
    %2708 = vmatpush2.bf16.msra.mxu0 %v1385
    %2709 = vmatprep.subr.bf16.mxu0 %v1382
    %2710 = vmatpush2.bf16.msra.mxu0 %v1381
    %2711 = vmatprep.subr.bf16.mxu0 %v1378
    %2712 = vmatpush2.bf16.msra.mxu0 %v1377
    %2713 = vmatprep.subr.bf16.mxu0 %v1374
    %2714 = vmatpush2.bf16.msra.mxu0 %v1373
    %2715 = vmatprep.subr.bf16.mxu0 %v1370
    %2716 = vmatpush2.bf16.msra.mxu0 %v1369
    %2717 = vmatprep.subr.bf16.mxu0 %v1366
    %2718 = vmatpush2.bf16.msra.mxu0 %v1365
    %2719 = vmatprep.subr.bf16.mxu0 %v1362
    %2720 = vmatpush2.bf16.msra.mxu0 %v1361
    %2721 = vmatprep.subr.bf16.mxu0 %v1358
    %2722 = vmatpush2.bf16.msra.mxu0 %v1357
    %2723 = vmatprep.mubr.bf16.mxu0 %v2606
    %2724 = vmatmul.mubr.bf16.gmra.mxu0 %v2605
    %v2725 = vpop.f32.mrf.mxu0
    %v2726 = vadd.f32 %v930, %v2725
    %v2727 = vpop.f32.mrf.mxu0
    %v2728 = vadd.f32 %v934, %v2727
    %v2729 = vpop.f32.mrf.mxu0
    %v2730 = vpop.f32.mrf.mxu0
    %2731 = vdwg.mxu0
    %2732 = vmatprep.subr.bf16.mxu0 %v1418
    %2733 = vmatpush1.bf16.msra.mxu0 %v1417
    %2734 = vmatprep.subr.bf16.mxu0 %v1414
    %2735 = vmatpush1.bf16.msra.mxu0 %v1413
    %2736 = vmatprep.subr.bf16.mxu0 %v1410
    %2737 = vmatpush1.bf16.msra.mxu0 %v1409
    %2738 = vmatprep.subr.bf16.mxu0 %v1406
    %2739 = vmatpush1.bf16.msra.mxu0 %v1405
    %2740 = vmatprep.subr.bf16.mxu0 %v1402
    %2741 = vmatpush1.bf16.msra.mxu0 %v1401
    %2742 = vmatprep.subr.bf16.mxu0 %v1398
    %2743 = vmatpush1.bf16.msra.mxu0 %v1397
    %2744 = vmatprep.subr.bf16.mxu0 %v1394
    %2745 = vmatpush1.bf16.msra.mxu0 %v1393
    %2746 = vmatprep.subr.bf16.mxu0 %v1390
    %2747 = vmatpush1.bf16.msra.mxu0 %v1389
    %2748 = vmatprep.subr.bf16.mxu0 %v1450
    %2749 = vmatpush2.bf16.msra.mxu0 %v1449
    %2750 = vmatprep.subr.bf16.mxu0 %v1446
    %2751 = vmatpush2.bf16.msra.mxu0 %v1445
    %2752 = vmatprep.subr.bf16.mxu0 %v1442
    %2753 = vmatpush2.bf16.msra.mxu0 %v1441
    %2754 = vmatprep.subr.bf16.mxu0 %v1438
    %2755 = vmatpush2.bf16.msra.mxu0 %v1437
    %2756 = vmatprep.subr.bf16.mxu0 %v1434
    %2757 = vmatpush2.bf16.msra.mxu0 %v1433
    %2758 = vmatprep.subr.bf16.mxu0 %v1430
    %2759 = vmatpush2.bf16.msra.mxu0 %v1429
    %2760 = vmatprep.subr.bf16.mxu0 %v1426
    %2761 = vmatpush2.bf16.msra.mxu0 %v1425
    %2762 = vmatprep.subr.bf16.mxu0 %v1422
    %2763 = vmatpush2.bf16.msra.mxu0 %v1421
    %2764 = vmatprep.mubr.bf16.mxu0 %v2608
    %2765 = vmatmul.mubr.bf16.gmra.mxu0 %v2607
    %v2766 = vpop.f32.mrf.mxu0
    %v2767 = vadd.f32 %v2726, %v2766
    %v2768 = vpop.f32.mrf.mxu0
    %v2769 = vadd.f32 %v2728, %v2768
    %v2770 = vpop.f32.mrf.mxu0
    %v2771 = vpop.f32.mrf.mxu0
    %2772 = vdwg.mxu0
    %v2773 = vadd.f32 %v2398, %v2685
    %v2774 = vadd.f32 %v2399, %v2687
    %v2775 = vadd.f32 %v2400, %v2767
    %v2776 = vadd.f32 %v2401, %v2769
    %vm2777 = vcmp.ge.f32.partialorder %v2773, 1.0
    %vm2778 = vcmp.ge.f32.partialorder %v2774, 1.0
    %vm2779 = vcmp.ge.f32.partialorder %v2775, 1.0
    %vm2780 = vcmp.ge.f32.partialorder %v2776, 1.0
    %v2781 = vsel %vm2777, 0.0, %v2773
    %v2782 = vsel %vm2778, 0.0, %v2774
    %v2783 = vsel %vm2779, 0.0, %v2775
    %v2784 = vsel %vm2780, 0.0, %v2776
    %v2785 = vsel %vm2777, 1, 0
    %v2786 = vsel %vm2778, 1, 0
    %v2787 = vsel %vm2779, 1, 0
    %v2788 = vsel %vm2780, 1, 0
    %v2789 = vcvt.s32.f32 %v2785
    %v2790 = vcvt.s32.f32 %v2786
    %v2791 = vcvt.s32.f32 %v2787
    %v2792 = vcvt.s32.f32 %v2788
    %v2793 = vpack.c.bf16 %v2789, %v2789
    %v2794 = vpack.c.bf16 %v2790, %v2790
    %v2795 = vpack.c.bf16 %v2791, %v2791
    %v2796 = vpack.c.bf16 %v2792, %v2792
    %2797 = vmatprep.subr.bf16.mxu0 0
    %2798 = vmatpush1.bf16.msra.mxu0 %v1973
    %2799 = vmatprep.subr.bf16.mxu0 0
    %2800 = vmatpush1.bf16.msra.mxu0 %v1972
    %2801 = vmatprep.subr.bf16.mxu0 0
    %2802 = vmatpush1.bf16.msra.mxu0 %v1971
    %2803 = vmatprep.subr.bf16.mxu0 0
    %2804 = vmatpush1.bf16.msra.mxu0 %v1970
    %2805 = vmatprep.subr.bf16.mxu0 0
    %2806 = vmatpush1.bf16.msra.mxu0 %v1969
    %2807 = vmatprep.subr.bf16.mxu0 0
    %2808 = vmatpush1.bf16.msra.mxu0 %v1968
    %2809 = vmatprep.subr.bf16.mxu0 0
    %2810 = vmatpush1.bf16.msra.mxu0 %v1967
    %2811 = vmatprep.subr.bf16.mxu0 0
    %2812 = vmatpush1.bf16.msra.mxu0 %v1966
    %2813 = vmatprep.subr.bf16.mxu0 0
    %2814 = vmatpush2.bf16.msra.mxu0 %v1981
    %2815 = vmatprep.subr.bf16.mxu0 0
    %2816 = vmatpush2.bf16.msra.mxu0 %v1980
    %2817 = vmatprep.subr.bf16.mxu0 0
    %2818 = vmatpush2.bf16.msra.mxu0 %v1979
    %2819 = vmatprep.subr.bf16.mxu0 0
    %2820 = vmatpush2.bf16.msra.mxu0 %v1978
    %2821 = vmatprep.subr.bf16.mxu0 0
    %2822 = vmatpush2.bf16.msra.mxu0 %v1977
    %2823 = vmatprep.subr.bf16.mxu0 0
    %2824 = vmatpush2.bf16.msra.mxu0 %v1976
    %2825 = vmatprep.subr.bf16.mxu0 0
    %2826 = vmatpush2.bf16.msra.mxu0 %v1975
    %2827 = vmatprep.subr.bf16.mxu0 0
    %2828 = vmatpush2.bf16.msra.mxu0 %v1974
    %2829 = vmatprep.mubr.bf16.mxu0 %v2794
    %2830 = vmatmul.mubr.bf16.gmra.mxu0 %v2793
    %v2831 = vpop.f32.mrf.mxu0
    %v2832 = vadd.f32 %v1836, %v2831
    %v2833 = vpop.f32.mrf.mxu0
    %v2834 = vpop.f32.mrf.mxu0
    %v2835 = vpop.f32.mrf.mxu0
    %2836 = vdwg.mxu0
    %2837 = vmatprep.subr.bf16.mxu0 0
    %2838 = vmatpush1.bf16.msra.mxu0 %v1989
    %2839 = vmatprep.subr.bf16.mxu0 0
    %2840 = vmatpush1.bf16.msra.mxu0 %v1988
    %2841 = vmatprep.subr.bf16.mxu0 0
    %2842 = vmatpush1.bf16.msra.mxu0 %v1987
    %2843 = vmatprep.subr.bf16.mxu0 0
    %2844 = vmatpush1.bf16.msra.mxu0 %v1986
    %2845 = vmatprep.subr.bf16.mxu0 0
    %2846 = vmatpush1.bf16.msra.mxu0 %v1985
    %2847 = vmatprep.subr.bf16.mxu0 0
    %2848 = vmatpush1.bf16.msra.mxu0 %v1984
    %2849 = vmatprep.subr.bf16.mxu0 0
    %2850 = vmatpush1.bf16.msra.mxu0 %v1983
    %2851 = vmatprep.subr.bf16.mxu0 0
    %2852 = vmatpush1.bf16.msra.mxu0 %v1982
    %2853 = vmatprep.subr.bf16.mxu0 0
    %2854 = vmatpush2.bf16.msra.mxu0 %v1997
    %2855 = vmatprep.subr.bf16.mxu0 0
    %2856 = vmatpush2.bf16.msra.mxu0 %v1996
    %2857 = vmatprep.subr.bf16.mxu0 0
    %2858 = vmatpush2.bf16.msra.mxu0 %v1995
    %2859 = vmatprep.subr.bf16.mxu0 0
    %2860 = vmatpush2.bf16.msra.mxu0 %v1994
    %2861 = vmatprep.subr.bf16.mxu0 0
    %2862 = vmatpush2.bf16.msra.mxu0 %v1993
    %2863 = vmatprep.subr.bf16.mxu0 0
    %2864 = vmatpush2.bf16.msra.mxu0 %v1992
    %2865 = vmatprep.subr.bf16.mxu0 0
    %2866 = vmatpush2.bf16.msra.mxu0 %v1991
    %2867 = vmatprep.subr.bf16.mxu0 0
    %2868 = vmatpush2.bf16.msra.mxu0 %v1990
    %2869 = vmatprep.mubr.bf16.mxu0 %v2796
    %2870 = vmatmul.mubr.bf16.gmra.mxu0 %v2795
    %v2871 = vpop.f32.mrf.mxu0
    %v2872 = vadd.f32 %v2832, %v2871
    %v2873 = vpop.f32.mrf.mxu0
    %v2874 = vpop.f32.mrf.mxu0
    %v2875 = vpop.f32.mrf.mxu0
    %2876 = vdwg.mxu0
    %v2877 = vadd.f32 %v2494, %v2872
    %v2878 = vrot.slane %v461, 6
    %v2880 = vadd.f32 %v2499, %v2878
    %vm2881 = vcmp.ge.f32.partialorder %v2880, 1.0
    %v2882 = vsel %vm2881, 0.0, %v2880
    %v2883 = vsel %vm2881, 1, 0
    %v2884 = vcvt.s32.f32 %v2883
    %v2885 = vpack.c.bf16 %v2884, %v2884
    %2886 = vmatprep.subr.bf16.mxu0 %v648
    %2887 = vmatpush1.bf16.msra.mxu0 %v647
    %2888 = vmatprep.subr.bf16.mxu0 %v644
    %2889 = vmatpush1.bf16.msra.mxu0 %v643
    %2890 = vmatprep.subr.bf16.mxu0 %v640
    %2891 = vmatpush1.bf16.msra.mxu0 %v639
    %2892 = vmatprep.subr.bf16.mxu0 %v636
    %2893 = vmatpush1.bf16.msra.mxu0 %v635
    %2894 = vmatprep.subr.bf16.mxu0 %v632
    %2895 = vmatpush1.bf16.msra.mxu0 %v631
    %2896 = vmatprep.subr.bf16.mxu0 %v628
    %2897 = vmatpush1.bf16.msra.mxu0 %v627
    %2898 = vmatprep.subr.bf16.mxu0 %v624
    %2899 = vmatpush1.bf16.msra.mxu0 %v623
    %2900 = vmatprep.subr.bf16.mxu0 %v620
    %2901 = vmatpush1.bf16.msra.mxu0 %v619
    %2902 = vmatprep.subr.bf16.mxu0 0
    %2903 = vmatpush2.bf16.msra.mxu0 0
    %2904 = vmatprep.subr.bf16.mxu0 0
    %2905 = vmatpush2.bf16.msra.mxu0 0
    %2906 = vmatprep.subr.bf16.mxu0 0
    %2907 = vmatpush2.bf16.msra.mxu0 0
    %2908 = vmatprep.subr.bf16.mxu0 0
    %2909 = vmatpush2.bf16.msra.mxu0 0
    %2910 = vmatprep.subr.bf16.mxu0 0
    %2911 = vmatpush2.bf16.msra.mxu0 0
    %2912 = vmatprep.subr.bf16.mxu0 0
    %2913 = vmatpush2.bf16.msra.mxu0 0
    %2914 = vmatprep.subr.bf16.mxu0 0
    %2915 = vmatpush2.bf16.msra.mxu0 0
    %2916 = vmatprep.subr.bf16.mxu0 0
    %2917 = vmatpush2.bf16.msra.mxu0 0
    %2918 = vmatprep.mubr.bf16.mxu0 0
    %2919 = vmatmul.mubr.bf16.gmra.mxu0 %v2885
    %v2920 = vpop.f32.mrf.mxu0
    %v2921 = vadd.f32 %v506, %v2920
    %v2922 = vpop.f32.mrf.mxu0
    %v2923 = vadd.f32 %v510, %v2922
    %v2924 = vpop.f32.mrf.mxu0
    %v2925 = vpop.f32.mrf.mxu0
    %2926 = vdwg.mxu0
    %2927 = vmatprep.subr.bf16.mxu0 %v650
    %2928 = vmatpush1.bf16.msra.mxu0 %v649
    %2929 = vmatprep.subr.bf16.mxu0 %v646
    %2930 = vmatpush1.bf16.msra.mxu0 %v645
    %2931 = vmatprep.subr.bf16.mxu0 %v642
    %2932 = vmatpush1.bf16.msra.mxu0 %v641
    %2933 = vmatprep.subr.bf16.mxu0 %v638
    %2934 = vmatpush1.bf16.msra.mxu0 %v637
    %2935 = vmatprep.subr.bf16.mxu0 %v634
    %2936 = vmatpush1.bf16.msra.mxu0 %v633
    %2937 = vmatprep.subr.bf16.mxu0 %v630
    %2938 = vmatpush1.bf16.msra.mxu0 %v629
    %2939 = vmatprep.subr.bf16.mxu0 %v626
    %2940 = vmatpush1.bf16.msra.mxu0 %v625
    %2941 = vmatprep.subr.bf16.mxu0 %v622
    %2942 = vmatpush1.bf16.msra.mxu0 %v621
    %2943 = vmatprep.subr.bf16.mxu0 0
    %2944 = vmatpush2.bf16.msra.mxu0 0
    %2945 = vmatprep.subr.bf16.mxu0 0
    %2946 = vmatpush2.bf16.msra.mxu0 0
    %2947 = vmatprep.subr.bf16.mxu0 0
    %2948 = vmatpush2.bf16.msra.mxu0 0
    %2949 = vmatprep.subr.bf16.mxu0 0
    %2950 = vmatpush2.bf16.msra.mxu0 0
    %2951 = vmatprep.subr.bf16.mxu0 0
    %2952 = vmatpush2.bf16.msra.mxu0 0
    %2953 = vmatprep.subr.bf16.mxu0 0
    %2954 = vmatpush2.bf16.msra.mxu0 0
    %2955 = vmatprep.subr.bf16.mxu0 0
    %2956 = vmatpush2.bf16.msra.mxu0 0
    %2957 = vmatprep.subr.bf16.mxu0 0
    %2958 = vmatpush2.bf16.msra.mxu0 0
    %2959 = vmatprep.mubr.bf16.mxu0 0
    %2960 = vmatmul.mubr.bf16.gmra.mxu0 %v2885
    %v2961 = vpop.f32.mrf.mxu0
    %v2962 = vadd.f32 %v514, %v2961
    %v2963 = vpop.f32.mrf.mxu0
    %v2964 = vadd.f32 %v518, %v2963
    %v2965 = vpop.f32.mrf.mxu0
    %v2966 = vpop.f32.mrf.mxu0
    %2967 = vdwg.mxu0
    %v2968 = vadd.f32 %v2593, %v2921
    %v2969 = vadd.f32 %v2594, %v2923
    %v2970 = vadd.f32 %v2595, %v2962
    %v2971 = vadd.f32 %v2596, %v2964
    %vm2972 = vcmp.ge.f32.partialorder %v2968, 1.0
    %vm2973 = vcmp.ge.f32.partialorder %v2969, 1.0
    %vm2974 = vcmp.ge.f32.partialorder %v2970, 1.0
    %vm2975 = vcmp.ge.f32.partialorder %v2971, 1.0
    %v2976 = vsel %vm2972, 0.0, %v2968
    %v2977 = vsel %vm2973, 0.0, %v2969
    %v2978 = vsel %vm2974, 0.0, %v2970
    %v2979 = vsel %vm2975, 0.0, %v2971
    %v2980 = vsel %vm2972, 1, 0
    %v2981 = vsel %vm2973, 1, 0
    %v2982 = vsel %vm2974, 1, 0
    %v2983 = vsel %vm2975, 1, 0
    %v2984 = vcvt.s32.f32 %v2980
    %v2985 = vcvt.s32.f32 %v2981
    %v2986 = vcvt.s32.f32 %v2982
    %v2987 = vcvt.s32.f32 %v2983
    %v2988 = vpack.c.bf16 %v2984, %v2984
    %v2989 = vpack.c.bf16 %v2985, %v2985
    %v2990 = vpack.c.bf16 %v2986, %v2986
    %v2991 = vpack.c.bf16 %v2987, %v2987
    %2992 = vmatprep.subr.bf16.mxu0 %v1352
    %2993 = vmatpush1.bf16.msra.mxu0 %v1351
    %2994 = vmatprep.subr.bf16.mxu0 %v1348
    %2995 = vmatpush1.bf16.msra.mxu0 %v1347
    %2996 = vmatprep.subr.bf16.mxu0 %v1344
    %2997 = vmatpush1.bf16.msra.mxu0 %v1343
    %2998 = vmatprep.subr.bf16.mxu0 %v1340
    %2999 = vmatpush1.bf16.msra.mxu0 %v1339
    %3000 = vmatprep.subr.bf16.mxu0 %v1336
    %3001 = vmatpush1.bf16.msra.mxu0 %v1335
    %3002 = vmatprep.subr.bf16.mxu0 %v1332
    %3003 = vmatpush1.bf16.msra.mxu0 %v1331
    %3004 = vmatprep.subr.bf16.mxu0 %v1328
    %3005 = vmatpush1.bf16.msra.mxu0 %v1327
    %3006 = vmatprep.subr.bf16.mxu0 %v1324
    %3007 = vmatpush1.bf16.msra.mxu0 %v1323
    %3008 = vmatprep.subr.bf16.mxu0 %v1384
    %3009 = vmatpush2.bf16.msra.mxu0 %v1383
    %3010 = vmatprep.subr.bf16.mxu0 %v1380
    %3011 = vmatpush2.bf16.msra.mxu0 %v1379
    %3012 = vmatprep.subr.bf16.mxu0 %v1376
    %3013 = vmatpush2.bf16.msra.mxu0 %v1375
    %3014 = vmatprep.subr.bf16.mxu0 %v1372
    %3015 = vmatpush2.bf16.msra.mxu0 %v1371
    %3016 = vmatprep.subr.bf16.mxu0 %v1368
    %3017 = vmatpush2.bf16.msra.mxu0 %v1367
    %3018 = vmatprep.subr.bf16.mxu0 %v1364
    %3019 = vmatpush2.bf16.msra.mxu0 %v1363
    %3020 = vmatprep.subr.bf16.mxu0 %v1360
    %3021 = vmatpush2.bf16.msra.mxu0 %v1359
    %3022 = vmatprep.subr.bf16.mxu0 %v1356
    %3023 = vmatpush2.bf16.msra.mxu0 %v1355
    %3024 = vmatprep.mubr.bf16.mxu0 %v2989
    %3025 = vmatmul.mubr.bf16.gmra.mxu0 %v2988
    %v3026 = vpop.f32.mrf.mxu0
    %v3027 = vadd.f32 %v922, %v3026
    %v3028 = vpop.f32.mrf.mxu0
    %v3029 = vadd.f32 %v926, %v3028
    %v3030 = vpop.f32.mrf.mxu0
    %v3031 = vpop.f32.mrf.mxu0
    %3032 = vdwg.mxu0
    %3033 = vmatprep.subr.bf16.mxu0 %v1416
    %3034 = vmatpush1.bf16.msra.mxu0 %v1415
    %3035 = vmatprep.subr.bf16.mxu0 %v1412
    %3036 = vmatpush1.bf16.msra.mxu0 %v1411
    %3037 = vmatprep.subr.bf16.mxu0 %v1408
    %3038 = vmatpush1.bf16.msra.mxu0 %v1407
    %3039 = vmatprep.subr.bf16.mxu0 %v1404
    %3040 = vmatpush1.bf16.msra.mxu0 %v1403
    %3041 = vmatprep.subr.bf16.mxu0 %v1400
    %3042 = vmatpush1.bf16.msra.mxu0 %v1399
    %3043 = vmatprep.subr.bf16.mxu0 %v1396
    %3044 = vmatpush1.bf16.msra.mxu0 %v1395
    %3045 = vmatprep.subr.bf16.mxu0 %v1392
    %3046 = vmatpush1.bf16.msra.mxu0 %v1391
    %3047 = vmatprep.subr.bf16.mxu0 %v1388
    %3048 = vmatpush1.bf16.msra.mxu0 %v1387
    %3049 = vmatprep.subr.bf16.mxu0 %v1448
    %3050 = vmatpush2.bf16.msra.mxu0 %v1447
    %3051 = vmatprep.subr.bf16.mxu0 %v1444
    %3052 = vmatpush2.bf16.msra.mxu0 %v1443
    %3053 = vmatprep.subr.bf16.mxu0 %v1440
    %3054 = vmatpush2.bf16.msra.mxu0 %v1439
    %3055 = vmatprep.subr.bf16.mxu0 %v1436
    %3056 = vmatpush2.bf16.msra.mxu0 %v1435
    %3057 = vmatprep.subr.bf16.mxu0 %v1432
    %3058 = vmatpush2.bf16.msra.mxu0 %v1431
    %3059 = vmatprep.subr.bf16.mxu0 %v1428
    %3060 = vmatpush2.bf16.msra.mxu0 %v1427
    %3061 = vmatprep.subr.bf16.mxu0 %v1424
    %3062 = vmatpush2.bf16.msra.mxu0 %v1423
    %3063 = vmatprep.subr.bf16.mxu0 %v1420
    %3064 = vmatpush2.bf16.msra.mxu0 %v1419
    %3065 = vmatprep.mubr.bf16.mxu0 %v2991
    %3066 = vmatmul.mubr.bf16.gmra.mxu0 %v2990
    %v3067 = vpop.f32.mrf.mxu0
    %v3068 = vadd.f32 %v3027, %v3067
    %v3069 = vpop.f32.mrf.mxu0
    %v3070 = vadd.f32 %v3029, %v3069
    %v3071 = vpop.f32.mrf.mxu0
    %v3072 = vpop.f32.mrf.mxu0
    %3073 = vdwg.mxu0
    %3074 = vmatprep.subr.bf16.mxu0 %v1354
    %3075 = vmatpush1.bf16.msra.mxu0 %v1353
    %3076 = vmatprep.subr.bf16.mxu0 %v1350
    %3077 = vmatpush1.bf16.msra.mxu0 %v1349
    %3078 = vmatprep.subr.bf16.mxu0 %v1346
    %3079 = vmatpush1.bf16.msra.mxu0 %v1345
    %3080 = vmatprep.subr.bf16.mxu0 %v1342
    %3081 = vmatpush1.bf16.msra.mxu0 %v1341
    %3082 = vmatprep.subr.bf16.mxu0 %v1338
    %3083 = vmatpush1.bf16.msra.mxu0 %v1337
    %3084 = vmatprep.subr.bf16.mxu0 %v1334
    %3085 = vmatpush1.bf16.msra.mxu0 %v1333
    %3086 = vmatprep.subr.bf16.mxu0 %v1330
    %3087 = vmatpush1.bf16.msra.mxu0 %v1329
    %3088 = vmatprep.subr.bf16.mxu0 %v1326
    %3089 = vmatpush1.bf16.msra.mxu0 %v1325
    %3090 = vmatprep.subr.bf16.mxu0 %v1386
    %3091 = vmatpush2.bf16.msra.mxu0 %v1385
    %3092 = vmatprep.subr.bf16.mxu0 %v1382
    %3093 = vmatpush2.bf16.msra.mxu0 %v1381
    %3094 = vmatprep.subr.bf16.mxu0 %v1378
    %3095 = vmatpush2.bf16.msra.mxu0 %v1377
    %3096 = vmatprep.subr.bf16.mxu0 %v1374
    %3097 = vmatpush2.bf16.msra.mxu0 %v1373
    %3098 = vmatprep.subr.bf16.mxu0 %v1370
    %3099 = vmatpush2.bf16.msra.mxu0 %v1369
    %3100 = vmatprep.subr.bf16.mxu0 %v1366
    %3101 = vmatpush2.bf16.msra.mxu0 %v1365
    %3102 = vmatprep.subr.bf16.mxu0 %v1362
    %3103 = vmatpush2.bf16.msra.mxu0 %v1361
    %3104 = vmatprep.subr.bf16.mxu0 %v1358
    %3105 = vmatpush2.bf16.msra.mxu0 %v1357
    %3106 = vmatprep.mubr.bf16.mxu0 %v2989
    %3107 = vmatmul.mubr.bf16.gmra.mxu0 %v2988
    %v3108 = vpop.f32.mrf.mxu0
    %v3109 = vadd.f32 %v930, %v3108
    %v3110 = vpop.f32.mrf.mxu0
    %v3111 = vadd.f32 %v934, %v3110
    %v3112 = vpop.f32.mrf.mxu0
    %v3113 = vpop.f32.mrf.mxu0
    %3114 = vdwg.mxu0
    %3115 = vmatprep.subr.bf16.mxu0 %v1418
    %3116 = vmatpush1.bf16.msra.mxu0 %v1417
    %3117 = vmatprep.subr.bf16.mxu0 %v1414
    %3118 = vmatpush1.bf16.msra.mxu0 %v1413
    %3119 = vmatprep.subr.bf16.mxu0 %v1410
    %3120 = vmatpush1.bf16.msra.mxu0 %v1409
    %3121 = vmatprep.subr.bf16.mxu0 %v1406
    %3122 = vmatpush1.bf16.msra.mxu0 %v1405
    %3123 = vmatprep.subr.bf16.mxu0 %v1402
    %3124 = vmatpush1.bf16.msra.mxu0 %v1401
    %3125 = vmatprep.subr.bf16.mxu0 %v1398
    %3126 = vmatpush1.bf16.msra.mxu0 %v1397
    %3127 = vmatprep.subr.bf16.mxu0 %v1394
    %3128 = vmatpush1.bf16.msra.mxu0 %v1393
    %3129 = vmatprep.subr.bf16.mxu0 %v1390
    %3130 = vmatpush1.bf16.msra.mxu0 %v1389
    %3131 = vmatprep.subr.bf16.mxu0 %v1450
    %3132 = vmatpush2.bf16.msra.mxu0 %v1449
    %3133 = vmatprep.subr.bf16.mxu0 %v1446
    %3134 = vmatpush2.bf16.msra.mxu0 %v1445
    %3135 = vmatprep.subr.bf16.mxu0 %v1442
    %3136 = vmatpush2.bf16.msra.mxu0 %v1441
    %3137 = vmatprep.subr.bf16.mxu0 %v1438
    %3138 = vmatpush2.bf16.msra.mxu0 %v1437
    %3139 = vmatprep.subr.bf16.mxu0 %v1434
    %3140 = vmatpush2.bf16.msra.mxu0 %v1433
    %3141 = vmatprep.subr.bf16.mxu0 %v1430
    %3142 = vmatpush2.bf16.msra.mxu0 %v1429
    %3143 = vmatprep.subr.bf16.mxu0 %v1426
    %3144 = vmatpush2.bf16.msra.mxu0 %v1425
    %3145 = vmatprep.subr.bf16.mxu0 %v1422
    %3146 = vmatpush2.bf16.msra.mxu0 %v1421
    %3147 = vmatprep.mubr.bf16.mxu0 %v2991
    %3148 = vmatmul.mubr.bf16.gmra.mxu0 %v2990
    %v3149 = vpop.f32.mrf.mxu0
    %v3150 = vadd.f32 %v3109, %v3149
    %v3151 = vpop.f32.mrf.mxu0
    %v3152 = vadd.f32 %v3111, %v3151
    %v3153 = vpop.f32.mrf.mxu0
    %v3154 = vpop.f32.mrf.mxu0
    %3155 = vdwg.mxu0
    %v3156 = vadd.f32 %v2781, %v3068
    %v3157 = vadd.f32 %v2782, %v3070
    %v3158 = vadd.f32 %v2783, %v3150
    %v3159 = vadd.f32 %v2784, %v3152
    %vm3160 = vcmp.ge.f32.partialorder %v3156, 1.0
    %vm3161 = vcmp.ge.f32.partialorder %v3157, 1.0
    %vm3162 = vcmp.ge.f32.partialorder %v3158, 1.0
    %vm3163 = vcmp.ge.f32.partialorder %v3159, 1.0
    %v3164 = vsel %vm3160, 0.0, %v3156
    %v3165 = vsel %vm3161, 0.0, %v3157
    %v3166 = vsel %vm3162, 0.0, %v3158
    %v3167 = vsel %vm3163, 0.0, %v3159
    %v3168 = vsel %vm3160, 1, 0
    %v3169 = vsel %vm3161, 1, 0
    %v3170 = vsel %vm3162, 1, 0
    %v3171 = vsel %vm3163, 1, 0
    %v3172 = vcvt.s32.f32 %v3168
    %v3173 = vcvt.s32.f32 %v3169
    %v3174 = vcvt.s32.f32 %v3170
    %v3175 = vcvt.s32.f32 %v3171
    %v3176 = vpack.c.bf16 %v3172, %v3172
    %v3177 = vpack.c.bf16 %v3173, %v3173
    %v3178 = vpack.c.bf16 %v3174, %v3174
    %v3179 = vpack.c.bf16 %v3175, %v3175
    %3180 = vmatprep.subr.bf16.mxu0 0
    %3181 = vmatpush1.bf16.msra.mxu0 %v1973
    %3182 = vmatprep.subr.bf16.mxu0 0
    %3183 = vmatpush1.bf16.msra.mxu0 %v1972
    %3184 = vmatprep.subr.bf16.mxu0 0
    %3185 = vmatpush1.bf16.msra.mxu0 %v1971
    %3186 = vmatprep.subr.bf16.mxu0 0
    %3187 = vmatpush1.bf16.msra.mxu0 %v1970
    %3188 = vmatprep.subr.bf16.mxu0 0
    %3189 = vmatpush1.bf16.msra.mxu0 %v1969
    %3190 = vmatprep.subr.bf16.mxu0 0
    %3191 = vmatpush1.bf16.msra.mxu0 %v1968
    %3192 = vmatprep.subr.bf16.mxu0 0
    %3193 = vmatpush1.bf16.msra.mxu0 %v1967
    %3194 = vmatprep.subr.bf16.mxu0 0
    %3195 = vmatpush1.bf16.msra.mxu0 %v1966
    %3196 = vmatprep.subr.bf16.mxu0 0
    %3197 = vmatpush2.bf16.msra.mxu0 %v1981
    %3198 = vmatprep.subr.bf16.mxu0 0
    %3199 = vmatpush2.bf16.msra.mxu0 %v1980
    %3200 = vmatprep.subr.bf16.mxu0 0
    %3201 = vmatpush2.bf16.msra.mxu0 %v1979
    %3202 = vmatprep.subr.bf16.mxu0 0
    %3203 = vmatpush2.bf16.msra.mxu0 %v1978
    %3204 = vmatprep.subr.bf16.mxu0 0
    %3205 = vmatpush2.bf16.msra.mxu0 %v1977
    %3206 = vmatprep.subr.bf16.mxu0 0
    %3207 = vmatpush2.bf16.msra.mxu0 %v1976
    %3208 = vmatprep.subr.bf16.mxu0 0
    %3209 = vmatpush2.bf16.msra.mxu0 %v1975
    %3210 = vmatprep.subr.bf16.mxu0 0
    %3211 = vmatpush2.bf16.msra.mxu0 %v1974
    %3212 = vmatprep.mubr.bf16.mxu0 %v3177
    %3213 = vmatmul.mubr.bf16.gmra.mxu0 %v3176
    %v3214 = vpop.f32.mrf.mxu0
    %v3215 = vadd.f32 %v1836, %v3214
    %v3216 = vpop.f32.mrf.mxu0
    %v3217 = vpop.f32.mrf.mxu0
    %v3218 = vpop.f32.mrf.mxu0
    %3219 = vdwg.mxu0
    %3220 = vmatprep.subr.bf16.mxu0 0
    %3221 = vmatpush1.bf16.msra.mxu0 %v1989
    %3222 = vmatprep.subr.bf16.mxu0 0
    %3223 = vmatpush1.bf16.msra.mxu0 %v1988
    %3224 = vmatprep.subr.bf16.mxu0 0
    %3225 = vmatpush1.bf16.msra.mxu0 %v1987
    %3226 = vmatprep.subr.bf16.mxu0 0
    %3227 = vmatpush1.bf16.msra.mxu0 %v1986
    %3228 = vmatprep.subr.bf16.mxu0 0
    %3229 = vmatpush1.bf16.msra.mxu0 %v1985
    %3230 = vmatprep.subr.bf16.mxu0 0
    %3231 = vmatpush1.bf16.msra.mxu0 %v1984
    %3232 = vmatprep.subr.bf16.mxu0 0
    %3233 = vmatpush1.bf16.msra.mxu0 %v1983
    %3234 = vmatprep.subr.bf16.mxu0 0
    %3235 = vmatpush1.bf16.msra.mxu0 %v1982
    %3236 = vmatprep.subr.bf16.mxu0 0
    %3237 = vmatpush2.bf16.msra.mxu0 %v1997
    %3238 = vmatprep.subr.bf16.mxu0 0
    %3239 = vmatpush2.bf16.msra.mxu0 %v1996
    %3240 = vmatprep.subr.bf16.mxu0 0
    %3241 = vmatpush2.bf16.msra.mxu0 %v1995
    %3242 = vmatprep.subr.bf16.mxu0 0
    %3243 = vmatpush2.bf16.msra.mxu0 %v1994
    %3244 = vmatprep.subr.bf16.mxu0 0
    %3245 = vmatpush2.bf16.msra.mxu0 %v1993
    %3246 = vmatprep.subr.bf16.mxu0 0
    %3247 = vmatpush2.bf16.msra.mxu0 %v1992
    %3248 = vmatprep.subr.bf16.mxu0 0
    %3249 = vmatpush2.bf16.msra.mxu0 %v1991
    %3250 = vmatprep.subr.bf16.mxu0 0
    %3251 = vmatpush2.bf16.msra.mxu0 %v1990
    %3252 = vmatprep.mubr.bf16.mxu0 %v3179
    %3253 = vmatmul.mubr.bf16.gmra.mxu0 %v3178
    %v3254 = vpop.f32.mrf.mxu0
    %v3255 = vadd.f32 %v3215, %v3254
    %v3256 = vpop.f32.mrf.mxu0
    %v3257 = vpop.f32.mrf.mxu0
    %v3258 = vpop.f32.mrf.mxu0
    %3259 = vdwg.mxu0
    %v3260 = vadd.f32 %v2877, %v3255
    %v3261 = vadd.f32 %v2882, %v462
    %vm3262 = vcmp.ge.f32.partialorder %v3261, 1.0
    %v3263 = vsel %vm3262, 0.0, %v3261
    %v3264 = vsel %vm3262, 1, 0
    %v3265 = vcvt.s32.f32 %v3264
    %v3266 = vpack.c.bf16 %v3265, %v3265
    %3267 = vmatprep.subr.bf16.mxu0 %v648
    %3268 = vmatpush1.bf16.msra.mxu0 %v647
    %3269 = vmatprep.subr.bf16.mxu0 %v644
    %3270 = vmatpush1.bf16.msra.mxu0 %v643
    %3271 = vmatprep.subr.bf16.mxu0 %v640
    %3272 = vmatpush1.bf16.msra.mxu0 %v639
    %3273 = vmatprep.subr.bf16.mxu0 %v636
    %3274 = vmatpush1.bf16.msra.mxu0 %v635
    %3275 = vmatprep.subr.bf16.mxu0 %v632
    %3276 = vmatpush1.bf16.msra.mxu0 %v631
    %3277 = vmatprep.subr.bf16.mxu0 %v628
    %3278 = vmatpush1.bf16.msra.mxu0 %v627
    %3279 = vmatprep.subr.bf16.mxu0 %v624
    %3280 = vmatpush1.bf16.msra.mxu0 %v623
    %3281 = vmatprep.subr.bf16.mxu0 %v620
    %3282 = vmatpush1.bf16.msra.mxu0 %v619
    %3283 = vmatprep.subr.bf16.mxu0 0
    %3284 = vmatpush2.bf16.msra.mxu0 0
    %3285 = vmatprep.subr.bf16.mxu0 0
    %3286 = vmatpush2.bf16.msra.mxu0 0
    %3287 = vmatprep.subr.bf16.mxu0 0
    %3288 = vmatpush2.bf16.msra.mxu0 0
    %3289 = vmatprep.subr.bf16.mxu0 0
    %3290 = vmatpush2.bf16.msra.mxu0 0
    %3291 = vmatprep.subr.bf16.mxu0 0
    %3292 = vmatpush2.bf16.msra.mxu0 0
    %3293 = vmatprep.subr.bf16.mxu0 0
    %3294 = vmatpush2.bf16.msra.mxu0 0
    %3295 = vmatprep.subr.bf16.mxu0 0
    %3296 = vmatpush2.bf16.msra.mxu0 0
    %3297 = vmatprep.subr.bf16.mxu0 0
    %3298 = vmatpush2.bf16.msra.mxu0 0
    %3299 = vmatprep.mubr.bf16.mxu0 0
    %3300 = vmatmul.mubr.bf16.gmra.mxu0 %v3266
    %v3301 = vpop.f32.mrf.mxu0
    %v3302 = vadd.f32 %v506, %v3301
    %v3303 = vpop.f32.mrf.mxu0
    %v3304 = vadd.f32 %v510, %v3303
    %v3305 = vpop.f32.mrf.mxu0
    %v3306 = vpop.f32.mrf.mxu0
    %3307 = vdwg.mxu0
    %3308 = vmatprep.subr.bf16.mxu0 %v650
    %3309 = vmatpush1.bf16.msra.mxu0 %v649
    %3310 = vmatprep.subr.bf16.mxu0 %v646
    %3311 = vmatpush1.bf16.msra.mxu0 %v645
    %3312 = vmatprep.subr.bf16.mxu0 %v642
    %3313 = vmatpush1.bf16.msra.mxu0 %v641
    %3314 = vmatprep.subr.bf16.mxu0 %v638
    %3315 = vmatpush1.bf16.msra.mxu0 %v637
    %3316 = vmatprep.subr.bf16.mxu0 %v634
    %3317 = vmatpush1.bf16.msra.mxu0 %v633
    %3318 = vmatprep.subr.bf16.mxu0 %v630
    %3319 = vmatpush1.bf16.msra.mxu0 %v629
    %3320 = vmatprep.subr.bf16.mxu0 %v626
    %3321 = vmatpush1.bf16.msra.mxu0 %v625
    %3322 = vmatprep.subr.bf16.mxu0 %v622
    %3323 = vmatpush1.bf16.msra.mxu0 %v621
    %3324 = vmatprep.subr.bf16.mxu0 0
    %3325 = vmatpush2.bf16.msra.mxu0 0
    %3326 = vmatprep.subr.bf16.mxu0 0
    %3327 = vmatpush2.bf16.msra.mxu0 0
    %3328 = vmatprep.subr.bf16.mxu0 0
    %3329 = vmatpush2.bf16.msra.mxu0 0
    %3330 = vmatprep.subr.bf16.mxu0 0
    %3331 = vmatpush2.bf16.msra.mxu0 0
    %3332 = vmatprep.subr.bf16.mxu0 0
    %3333 = vmatpush2.bf16.msra.mxu0 0
    %3334 = vmatprep.subr.bf16.mxu0 0
    %3335 = vmatpush2.bf16.msra.mxu0 0
    %3336 = vmatprep.subr.bf16.mxu0 0
    %3337 = vmatpush2.bf16.msra.mxu0 0
    %3338 = vmatprep.subr.bf16.mxu0 0
    %3339 = vmatpush2.bf16.msra.mxu0 0
    %3340 = vmatprep.mubr.bf16.mxu0 0
    %3341 = vmatmul.mubr.bf16.gmra.mxu0 %v3266
    %v3342 = vpop.f32.mrf.mxu0
    %v3343 = vadd.f32 %v514, %v3342
    %v3344 = vpop.f32.mrf.mxu0
    %v3345 = vadd.f32 %v518, %v3344
    %v3346 = vpop.f32.mrf.mxu0
    %v3347 = vpop.f32.mrf.mxu0
    %3348 = vdwg.mxu0
    %v3349 = vadd.f32 %v2976, %v3302
    %v3350 = vadd.f32 %v2977, %v3304
    %v3351 = vadd.f32 %v2978, %v3343
    %v3352 = vadd.f32 %v2979, %v3345
    %vm3353 = vcmp.ge.f32.partialorder %v3349, 1.0
    %vm3354 = vcmp.ge.f32.partialorder %v3350, 1.0
    %vm3355 = vcmp.ge.f32.partialorder %v3351, 1.0
    %vm3356 = vcmp.ge.f32.partialorder %v3352, 1.0
    %v3357 = vsel %vm3353, 0.0, %v3349
    %v3358 = vsel %vm3354, 0.0, %v3350
    %v3359 = vsel %vm3355, 0.0, %v3351
    %v3360 = vsel %vm3356, 0.0, %v3352
    %v3361 = vsel %vm3353, 1, 0
    %v3362 = vsel %vm3354, 1, 0
    %v3363 = vsel %vm3355, 1, 0
    %v3364 = vsel %vm3356, 1, 0
    %v3365 = vcvt.s32.f32 %v3361
    %v3366 = vcvt.s32.f32 %v3362
    %v3367 = vcvt.s32.f32 %v3363
    %v3368 = vcvt.s32.f32 %v3364
    %v3369 = vpack.c.bf16 %v3365, %v3365
    %v3370 = vpack.c.bf16 %v3366, %v3366
    %v3371 = vpack.c.bf16 %v3367, %v3367
    %v3372 = vpack.c.bf16 %v3368, %v3368
    %3373 = vmatprep.subr.bf16.mxu0 %v1352
    %3374 = vmatpush1.bf16.msra.mxu0 %v1351
    %3375 = vmatprep.subr.bf16.mxu0 %v1348
    %3376 = vmatpush1.bf16.msra.mxu0 %v1347
    %3377 = vmatprep.subr.bf16.mxu0 %v1344
    %3378 = vmatpush1.bf16.msra.mxu0 %v1343
    %3379 = vmatprep.subr.bf16.mxu0 %v1340
    %3380 = vmatpush1.bf16.msra.mxu0 %v1339
    %3381 = vmatprep.subr.bf16.mxu0 %v1336
    %3382 = vmatpush1.bf16.msra.mxu0 %v1335
    %3383 = vmatprep.subr.bf16.mxu0 %v1332
    %3384 = vmatpush1.bf16.msra.mxu0 %v1331
    %3385 = vmatprep.subr.bf16.mxu0 %v1328
    %3386 = vmatpush1.bf16.msra.mxu0 %v1327
    %3387 = vmatprep.subr.bf16.mxu0 %v1324
    %3388 = vmatpush1.bf16.msra.mxu0 %v1323
    %3389 = vmatprep.subr.bf16.mxu0 %v1384
    %3390 = vmatpush2.bf16.msra.mxu0 %v1383
    %3391 = vmatprep.subr.bf16.mxu0 %v1380
    %3392 = vmatpush2.bf16.msra.mxu0 %v1379
    %3393 = vmatprep.subr.bf16.mxu0 %v1376
    %3394 = vmatpush2.bf16.msra.mxu0 %v1375
    %3395 = vmatprep.subr.bf16.mxu0 %v1372
    %3396 = vmatpush2.bf16.msra.mxu0 %v1371
    %3397 = vmatprep.subr.bf16.mxu0 %v1368
    %3398 = vmatpush2.bf16.msra.mxu0 %v1367
    %3399 = vmatprep.subr.bf16.mxu0 %v1364
    %3400 = vmatpush2.bf16.msra.mxu0 %v1363
    %3401 = vmatprep.subr.bf16.mxu0 %v1360
    %3402 = vmatpush2.bf16.msra.mxu0 %v1359
    %3403 = vmatprep.subr.bf16.mxu0 %v1356
    %3404 = vmatpush2.bf16.msra.mxu0 %v1355
    %3405 = vmatprep.mubr.bf16.mxu0 %v3370
    %3406 = vmatmul.mubr.bf16.gmra.mxu0 %v3369
    %v3407 = vpop.f32.mrf.mxu0
    %v3408 = vadd.f32 %v922, %v3407
    %v3409 = vpop.f32.mrf.mxu0
    %v3410 = vadd.f32 %v926, %v3409
    %v3411 = vpop.f32.mrf.mxu0
    %v3412 = vpop.f32.mrf.mxu0
    %3413 = vdwg.mxu0
    %3414 = vmatprep.subr.bf16.mxu0 %v1416
    %3415 = vmatpush1.bf16.msra.mxu0 %v1415
    %3416 = vmatprep.subr.bf16.mxu0 %v1412
    %3417 = vmatpush1.bf16.msra.mxu0 %v1411
    %3418 = vmatprep.subr.bf16.mxu0 %v1408
    %3419 = vmatpush1.bf16.msra.mxu0 %v1407
    %3420 = vmatprep.subr.bf16.mxu0 %v1404
    %3421 = vmatpush1.bf16.msra.mxu0 %v1403
    %3422 = vmatprep.subr.bf16.mxu0 %v1400
    %3423 = vmatpush1.bf16.msra.mxu0 %v1399
    %3424 = vmatprep.subr.bf16.mxu0 %v1396
    %3425 = vmatpush1.bf16.msra.mxu0 %v1395
    %3426 = vmatprep.subr.bf16.mxu0 %v1392
    %3427 = vmatpush1.bf16.msra.mxu0 %v1391
    %3428 = vmatprep.subr.bf16.mxu0 %v1388
    %3429 = vmatpush1.bf16.msra.mxu0 %v1387
    %3430 = vmatprep.subr.bf16.mxu0 %v1448
    %3431 = vmatpush2.bf16.msra.mxu0 %v1447
    %3432 = vmatprep.subr.bf16.mxu0 %v1444
    %3433 = vmatpush2.bf16.msra.mxu0 %v1443
    %3434 = vmatprep.subr.bf16.mxu0 %v1440
    %3435 = vmatpush2.bf16.msra.mxu0 %v1439
    %3436 = vmatprep.subr.bf16.mxu0 %v1436
    %3437 = vmatpush2.bf16.msra.mxu0 %v1435
    %3438 = vmatprep.subr.bf16.mxu0 %v1432
    %3439 = vmatpush2.bf16.msra.mxu0 %v1431
    %3440 = vmatprep.subr.bf16.mxu0 %v1428
    %3441 = vmatpush2.bf16.msra.mxu0 %v1427
    %3442 = vmatprep.subr.bf16.mxu0 %v1424
    %3443 = vmatpush2.bf16.msra.mxu0 %v1423
    %3444 = vmatprep.subr.bf16.mxu0 %v1420
    %3445 = vmatpush2.bf16.msra.mxu0 %v1419
    %3446 = vmatprep.mubr.bf16.mxu0 %v3372
    %3447 = vmatmul.mubr.bf16.gmra.mxu0 %v3371
    %v3448 = vpop.f32.mrf.mxu0
    %v3449 = vadd.f32 %v3408, %v3448
    %v3450 = vpop.f32.mrf.mxu0
    %v3451 = vadd.f32 %v3410, %v3450
    %v3452 = vpop.f32.mrf.mxu0
    %v3453 = vpop.f32.mrf.mxu0
    %3454 = vdwg.mxu0
    %3455 = vmatprep.subr.bf16.mxu0 %v1354
    %3456 = vmatpush1.bf16.msra.mxu0 %v1353
    %3457 = vmatprep.subr.bf16.mxu0 %v1350
    %3458 = vmatpush1.bf16.msra.mxu0 %v1349
    %3459 = vmatprep.subr.bf16.mxu0 %v1346
    %3460 = vmatpush1.bf16.msra.mxu0 %v1345
    %3461 = vmatprep.subr.bf16.mxu0 %v1342
    %3462 = vmatpush1.bf16.msra.mxu0 %v1341
    %3463 = vmatprep.subr.bf16.mxu0 %v1338
    %3464 = vmatpush1.bf16.msra.mxu0 %v1337
    %3465 = vmatprep.subr.bf16.mxu0 %v1334
    %3466 = vmatpush1.bf16.msra.mxu0 %v1333
    %3467 = vmatprep.subr.bf16.mxu0 %v1330
    %3468 = vmatpush1.bf16.msra.mxu0 %v1329
    %3469 = vmatprep.subr.bf16.mxu0 %v1326
    %3470 = vmatpush1.bf16.msra.mxu0 %v1325
    %3471 = vmatprep.subr.bf16.mxu0 %v1386
    %3472 = vmatpush2.bf16.msra.mxu0 %v1385
    %3473 = vmatprep.subr.bf16.mxu0 %v1382
    %3474 = vmatpush2.bf16.msra.mxu0 %v1381
    %3475 = vmatprep.subr.bf16.mxu0 %v1378
    %3476 = vmatpush2.bf16.msra.mxu0 %v1377
    %3477 = vmatprep.subr.bf16.mxu0 %v1374
    %3478 = vmatpush2.bf16.msra.mxu0 %v1373
    %3479 = vmatprep.subr.bf16.mxu0 %v1370
    %3480 = vmatpush2.bf16.msra.mxu0 %v1369
    %3481 = vmatprep.subr.bf16.mxu0 %v1366
    %3482 = vmatpush2.bf16.msra.mxu0 %v1365
    %3483 = vmatprep.subr.bf16.mxu0 %v1362
    %3484 = vmatpush2.bf16.msra.mxu0 %v1361
    %3485 = vmatprep.subr.bf16.mxu0 %v1358
    %3486 = vmatpush2.bf16.msra.mxu0 %v1357
    %3487 = vmatprep.mubr.bf16.mxu0 %v3370
    %3488 = vmatmul.mubr.bf16.gmra.mxu0 %v3369
    %v3489 = vpop.f32.mrf.mxu0
    %v3490 = vadd.f32 %v930, %v3489
    %v3491 = vpop.f32.mrf.mxu0
    %v3492 = vadd.f32 %v934, %v3491
    %v3493 = vpop.f32.mrf.mxu0
    %v3494 = vpop.f32.mrf.mxu0
    %3495 = vdwg.mxu0
    %3496 = vmatprep.subr.bf16.mxu0 %v1418
    %3497 = vmatpush1.bf16.msra.mxu0 %v1417
    %3498 = vmatprep.subr.bf16.mxu0 %v1414
    %3499 = vmatpush1.bf16.msra.mxu0 %v1413
    %3500 = vmatprep.subr.bf16.mxu0 %v1410
    %3501 = vmatpush1.bf16.msra.mxu0 %v1409
    %3502 = vmatprep.subr.bf16.mxu0 %v1406
    %3503 = vmatpush1.bf16.msra.mxu0 %v1405
    %3504 = vmatprep.subr.bf16.mxu0 %v1402
    %3505 = vmatpush1.bf16.msra.mxu0 %v1401
    %3506 = vmatprep.subr.bf16.mxu0 %v1398
    %3507 = vmatpush1.bf16.msra.mxu0 %v1397
    %3508 = vmatprep.subr.bf16.mxu0 %v1394
    %3509 = vmatpush1.bf16.msra.mxu0 %v1393
    %3510 = vmatprep.subr.bf16.mxu0 %v1390
    %3511 = vmatpush1.bf16.msra.mxu0 %v1389
    %3512 = vmatprep.subr.bf16.mxu0 %v1450
    %3513 = vmatpush2.bf16.msra.mxu0 %v1449
    %3514 = vmatprep.subr.bf16.mxu0 %v1446
    %3515 = vmatpush2.bf16.msra.mxu0 %v1445
    %3516 = vmatprep.subr.bf16.mxu0 %v1442
    %3517 = vmatpush2.bf16.msra.mxu0 %v1441
    %3518 = vmatprep.subr.bf16.mxu0 %v1438
    %3519 = vmatpush2.bf16.msra.mxu0 %v1437
    %3520 = vmatprep.subr.bf16.mxu0 %v1434
    %3521 = vmatpush2.bf16.msra.mxu0 %v1433
    %3522 = vmatprep.subr.bf16.mxu0 %v1430
    %3523 = vmatpush2.bf16.msra.mxu0 %v1429
    %3524 = vmatprep.subr.bf16.mxu0 %v1426
    %3525 = vmatpush2.bf16.msra.mxu0 %v1425
    %3526 = vmatprep.subr.bf16.mxu0 %v1422
    %3527 = vmatpush2.bf16.msra.mxu0 %v1421
    %3528 = vmatprep.mubr.bf16.mxu0 %v3372
    %3529 = vmatmul.mubr.bf16.gmra.mxu0 %v3371
    %v3530 = vpop.f32.mrf.mxu0
    %v3531 = vadd.f32 %v3490, %v3530
    %v3532 = vpop.f32.mrf.mxu0
    %v3533 = vadd.f32 %v3492, %v3532
    %v3534 = vpop.f32.mrf.mxu0
    %v3535 = vpop.f32.mrf.mxu0
    %3536 = vdwg.mxu0
    %v3537 = vadd.f32 %v3164, %v3449
    %v3538 = vadd.f32 %v3165, %v3451
    %v3539 = vadd.f32 %v3166, %v3531
    %v3540 = vadd.f32 %v3167, %v3533
    %vm3541 = vcmp.ge.f32.partialorder %v3537, 1.0
    %vm3542 = vcmp.ge.f32.partialorder %v3538, 1.0
    %vm3543 = vcmp.ge.f32.partialorder %v3539, 1.0
    %vm3544 = vcmp.ge.f32.partialorder %v3540, 1.0
    %v3545 = vsel %vm3541, 0.0, %v3537
    %v3546 = vsel %vm3542, 0.0, %v3538
    %v3547 = vsel %vm3543, 0.0, %v3539
    %v3548 = vsel %vm3544, 0.0, %v3540
    %v3549 = vsel %vm3541, 1, 0
    %v3550 = vsel %vm3542, 1, 0
    %v3551 = vsel %vm3543, 1, 0
    %v3552 = vsel %vm3544, 1, 0
    %v3553 = vcvt.s32.f32 %v3549
    %v3554 = vcvt.s32.f32 %v3550
    %v3555 = vcvt.s32.f32 %v3551
    %v3556 = vcvt.s32.f32 %v3552
    %v3557 = vpack.c.bf16 %v3553, %v3553
    %v3558 = vpack.c.bf16 %v3554, %v3554
    %v3559 = vpack.c.bf16 %v3555, %v3555
    %v3560 = vpack.c.bf16 %v3556, %v3556
    %3561 = vmatprep.subr.bf16.mxu0 0
    %3562 = vmatpush1.bf16.msra.mxu0 %v1973
    %3563 = vmatprep.subr.bf16.mxu0 0
    %3564 = vmatpush1.bf16.msra.mxu0 %v1972
    %3565 = vmatprep.subr.bf16.mxu0 0
    %3566 = vmatpush1.bf16.msra.mxu0 %v1971
    %3567 = vmatprep.subr.bf16.mxu0 0
    %3568 = vmatpush1.bf16.msra.mxu0 %v1970
    %3569 = vmatprep.subr.bf16.mxu0 0
    %3570 = vmatpush1.bf16.msra.mxu0 %v1969
    %3571 = vmatprep.subr.bf16.mxu0 0
    %3572 = vmatpush1.bf16.msra.mxu0 %v1968
    %3573 = vmatprep.subr.bf16.mxu0 0
    %3574 = vmatpush1.bf16.msra.mxu0 %v1967
    %3575 = vmatprep.subr.bf16.mxu0 0
    %3576 = vmatpush1.bf16.msra.mxu0 %v1966
    %3577 = vmatprep.subr.bf16.mxu0 0
    %3578 = vmatpush2.bf16.msra.mxu0 %v1981
    %3579 = vmatprep.subr.bf16.mxu0 0
    %3580 = vmatpush2.bf16.msra.mxu0 %v1980
    %3581 = vmatprep.subr.bf16.mxu0 0
    %3582 = vmatpush2.bf16.msra.mxu0 %v1979
    %3583 = vmatprep.subr.bf16.mxu0 0
    %3584 = vmatpush2.bf16.msra.mxu0 %v1978
    %3585 = vmatprep.subr.bf16.mxu0 0
    %3586 = vmatpush2.bf16.msra.mxu0 %v1977
    %3587 = vmatprep.subr.bf16.mxu0 0
    %3588 = vmatpush2.bf16.msra.mxu0 %v1976
    %3589 = vmatprep.subr.bf16.mxu0 0
    %3590 = vmatpush2.bf16.msra.mxu0 %v1975
    %3591 = vmatprep.subr.bf16.mxu0 0
    %3592 = vmatpush2.bf16.msra.mxu0 %v1974
    %3593 = vmatprep.mubr.bf16.mxu0 %v3558
    %3594 = vmatmul.mubr.bf16.gmra.mxu0 %v3557
    %v3595 = vpop.f32.mrf.mxu0
    %v3596 = vadd.f32 %v1836, %v3595
    %v3597 = vpop.f32.mrf.mxu0
    %v3598 = vpop.f32.mrf.mxu0
    %v3599 = vpop.f32.mrf.mxu0
    %3600 = vdwg.mxu0
    %3601 = vmatprep.subr.bf16.mxu0 0
    %3602 = vmatpush1.bf16.msra.mxu0 %v1989
    %3603 = vmatprep.subr.bf16.mxu0 0
    %3604 = vmatpush1.bf16.msra.mxu0 %v1988
    %3605 = vmatprep.subr.bf16.mxu0 0
    %3606 = vmatpush1.bf16.msra.mxu0 %v1987
    %3607 = vmatprep.subr.bf16.mxu0 0
    %3608 = vmatpush1.bf16.msra.mxu0 %v1986
    %3609 = vmatprep.subr.bf16.mxu0 0
    %3610 = vmatpush1.bf16.msra.mxu0 %v1985
    %3611 = vmatprep.subr.bf16.mxu0 0
    %3612 = vmatpush1.bf16.msra.mxu0 %v1984
    %3613 = vmatprep.subr.bf16.mxu0 0
    %3614 = vmatpush1.bf16.msra.mxu0 %v1983
    %3615 = vmatprep.subr.bf16.mxu0 0
    %3616 = vmatpush1.bf16.msra.mxu0 %v1982
    %3617 = vmatprep.subr.bf16.mxu0 0
    %3618 = vmatpush2.bf16.msra.mxu0 %v1997
    %3619 = vmatprep.subr.bf16.mxu0 0
    %3620 = vmatpush2.bf16.msra.mxu0 %v1996
    %3621 = vmatprep.subr.bf16.mxu0 0
    %3622 = vmatpush2.bf16.msra.mxu0 %v1995
    %3623 = vmatprep.subr.bf16.mxu0 0
    %3624 = vmatpush2.bf16.msra.mxu0 %v1994
    %3625 = vmatprep.subr.bf16.mxu0 0
    %3626 = vmatpush2.bf16.msra.mxu0 %v1993
    %3627 = vmatprep.subr.bf16.mxu0 0
    %3628 = vmatpush2.bf16.msra.mxu0 %v1992
    %3629 = vmatprep.subr.bf16.mxu0 0
    %3630 = vmatpush2.bf16.msra.mxu0 %v1991
    %3631 = vmatprep.subr.bf16.mxu0 0
    %3632 = vmatpush2.bf16.msra.mxu0 %v1990
    %3633 = vmatprep.mubr.bf16.mxu0 %v3560
    %3634 = vmatmul.mubr.bf16.gmra.mxu0 %v3559
    %v3635 = vpop.f32.mrf.mxu0
    %v3636 = vadd.f32 %v3596, %v3635
    %v3637 = vpop.f32.mrf.mxu0
    %v3638 = vpop.f32.mrf.mxu0
    %v3639 = vpop.f32.mrf.mxu0
    %3640 = vdwg.mxu0
    %v3641 = vadd.f32 %v3260, %v3636
    %v3643 = vrot.slane %v462, 2
    %v3645 = vadd.f32 %v3263, %v3643
    %vm3646 = vcmp.ge.f32.partialorder %v3645, 1.0
    %v3647 = vsel %vm3646, 0.0, %v3645
    %v3648 = vsel %vm3646, 1, 0
    %v3649 = vcvt.s32.f32 %v3648
    %v3650 = vpack.c.bf16 %v3649, %v3649
    %3651 = vmatprep.subr.bf16.mxu0 %v648
    %3652 = vmatpush1.bf16.msra.mxu0 %v647
    %3653 = vmatprep.subr.bf16.mxu0 %v644
    %3654 = vmatpush1.bf16.msra.mxu0 %v643
    %3655 = vmatprep.subr.bf16.mxu0 %v640
    %3656 = vmatpush1.bf16.msra.mxu0 %v639
    %3657 = vmatprep.subr.bf16.mxu0 %v636
    %3658 = vmatpush1.bf16.msra.mxu0 %v635
    %3659 = vmatprep.subr.bf16.mxu0 %v632
    %3660 = vmatpush1.bf16.msra.mxu0 %v631
    %3661 = vmatprep.subr.bf16.mxu0 %v628
    %3662 = vmatpush1.bf16.msra.mxu0 %v627
    %3663 = vmatprep.subr.bf16.mxu0 %v624
    %3664 = vmatpush1.bf16.msra.mxu0 %v623
    %3665 = vmatprep.subr.bf16.mxu0 %v620
    %3666 = vmatpush1.bf16.msra.mxu0 %v619
    %3667 = vmatprep.subr.bf16.mxu0 0
    %3668 = vmatpush2.bf16.msra.mxu0 0
    %3669 = vmatprep.subr.bf16.mxu0 0
    %3670 = vmatpush2.bf16.msra.mxu0 0
    %3671 = vmatprep.subr.bf16.mxu0 0
    %3672 = vmatpush2.bf16.msra.mxu0 0
    %3673 = vmatprep.subr.bf16.mxu0 0
    %3674 = vmatpush2.bf16.msra.mxu0 0
    %3675 = vmatprep.subr.bf16.mxu0 0
    %3676 = vmatpush2.bf16.msra.mxu0 0
    %3677 = vmatprep.subr.bf16.mxu0 0
    %3678 = vmatpush2.bf16.msra.mxu0 0
    %3679 = vmatprep.subr.bf16.mxu0 0
    %3680 = vmatpush2.bf16.msra.mxu0 0
    %3681 = vmatprep.subr.bf16.mxu0 0
    %3682 = vmatpush2.bf16.msra.mxu0 0
    %3683 = vmatprep.mubr.bf16.mxu0 0
    %3684 = vmatmul.mubr.bf16.gmra.mxu0 %v3650
    %v3685 = vpop.f32.mrf.mxu0
    %v3686 = vadd.f32 %v506, %v3685
    %v3687 = vpop.f32.mrf.mxu0
    %v3688 = vadd.f32 %v510, %v3687
    %v3689 = vpop.f32.mrf.mxu0
    %v3690 = vpop.f32.mrf.mxu0
    %3691 = vdwg.mxu0
    %3692 = vmatprep.subr.bf16.mxu0 %v650
    %3693 = vmatpush1.bf16.msra.mxu0 %v649
    %3694 = vmatprep.subr.bf16.mxu0 %v646
    %3695 = vmatpush1.bf16.msra.mxu0 %v645
    %3696 = vmatprep.subr.bf16.mxu0 %v642
    %3697 = vmatpush1.bf16.msra.mxu0 %v641
    %3698 = vmatprep.subr.bf16.mxu0 %v638
    %3699 = vmatpush1.bf16.msra.mxu0 %v637
    %3700 = vmatprep.subr.bf16.mxu0 %v634
    %3701 = vmatpush1.bf16.msra.mxu0 %v633
    %3702 = vmatprep.subr.bf16.mxu0 %v630
    %3703 = vmatpush1.bf16.msra.mxu0 %v629
    %3704 = vmatprep.subr.bf16.mxu0 %v626
    %3705 = vmatpush1.bf16.msra.mxu0 %v625
    %3706 = vmatprep.subr.bf16.mxu0 %v622
    %3707 = vmatpush1.bf16.msra.mxu0 %v621
    %3708 = vmatprep.subr.bf16.mxu0 0
    %3709 = vmatpush2.bf16.msra.mxu0 0
    %3710 = vmatprep.subr.bf16.mxu0 0
    %3711 = vmatpush2.bf16.msra.mxu0 0
    %3712 = vmatprep.subr.bf16.mxu0 0
    %3713 = vmatpush2.bf16.msra.mxu0 0
    %3714 = vmatprep.subr.bf16.mxu0 0
    %3715 = vmatpush2.bf16.msra.mxu0 0
    %3716 = vmatprep.subr.bf16.mxu0 0
    %3717 = vmatpush2.bf16.msra.mxu0 0
    %3718 = vmatprep.subr.bf16.mxu0 0
    %3719 = vmatpush2.bf16.msra.mxu0 0
    %3720 = vmatprep.subr.bf16.mxu0 0
    %3721 = vmatpush2.bf16.msra.mxu0 0
    %3722 = vmatprep.subr.bf16.mxu0 0
    %3723 = vmatpush2.bf16.msra.mxu0 0
    %3724 = vmatprep.mubr.bf16.mxu0 0
    %3725 = vmatmul.mubr.bf16.gmra.mxu0 %v3650
    %v3726 = vpop.f32.mrf.mxu0
    %v3727 = vadd.f32 %v514, %v3726
    %v3728 = vpop.f32.mrf.mxu0
    %v3729 = vadd.f32 %v518, %v3728
    %v3730 = vpop.f32.mrf.mxu0
    %v3731 = vpop.f32.mrf.mxu0
    %3732 = vdwg.mxu0
    %v3733 = vadd.f32 %v3357, %v3686
    %v3734 = vadd.f32 %v3358, %v3688
    %v3735 = vadd.f32 %v3359, %v3727
    %v3736 = vadd.f32 %v3360, %v3729
    %vm3737 = vcmp.ge.f32.partialorder %v3733, 1.0
    %vm3738 = vcmp.ge.f32.partialorder %v3734, 1.0
    %vm3739 = vcmp.ge.f32.partialorder %v3735, 1.0
    %vm3740 = vcmp.ge.f32.partialorder %v3736, 1.0
    %v3741 = vsel %vm3737, 0.0, %v3733
    %v3742 = vsel %vm3738, 0.0, %v3734
    %v3743 = vsel %vm3739, 0.0, %v3735
    %v3744 = vsel %vm3740, 0.0, %v3736
    %v3745 = vsel %vm3737, 1, 0
    %v3746 = vsel %vm3738, 1, 0
    %v3747 = vsel %vm3739, 1, 0
    %v3748 = vsel %vm3740, 1, 0
    %v3749 = vcvt.s32.f32 %v3745
    %v3750 = vcvt.s32.f32 %v3746
    %v3751 = vcvt.s32.f32 %v3747
    %v3752 = vcvt.s32.f32 %v3748
    %v3753 = vpack.c.bf16 %v3749, %v3749
    %v3754 = vpack.c.bf16 %v3750, %v3750
    %v3755 = vpack.c.bf16 %v3751, %v3751
    %v3756 = vpack.c.bf16 %v3752, %v3752
    %3757 = vmatprep.subr.bf16.mxu0 %v1352
    %3758 = vmatpush1.bf16.msra.mxu0 %v1351
    %3759 = vmatprep.subr.bf16.mxu0 %v1348
    %3760 = vmatpush1.bf16.msra.mxu0 %v1347
    %3761 = vmatprep.subr.bf16.mxu0 %v1344
    %3762 = vmatpush1.bf16.msra.mxu0 %v1343
    %3763 = vmatprep.subr.bf16.mxu0 %v1340
    %3764 = vmatpush1.bf16.msra.mxu0 %v1339
    %3765 = vmatprep.subr.bf16.mxu0 %v1336
    %3766 = vmatpush1.bf16.msra.mxu0 %v1335
    %3767 = vmatprep.subr.bf16.mxu0 %v1332
    %3768 = vmatpush1.bf16.msra.mxu0 %v1331
    %3769 = vmatprep.subr.bf16.mxu0 %v1328
    %3770 = vmatpush1.bf16.msra.mxu0 %v1327
    %3771 = vmatprep.subr.bf16.mxu0 %v1324
    %3772 = vmatpush1.bf16.msra.mxu0 %v1323
    %3773 = vmatprep.subr.bf16.mxu0 %v1384
    %3774 = vmatpush2.bf16.msra.mxu0 %v1383
    %3775 = vmatprep.subr.bf16.mxu0 %v1380
    %3776 = vmatpush2.bf16.msra.mxu0 %v1379
    %3777 = vmatprep.subr.bf16.mxu0 %v1376
    %3778 = vmatpush2.bf16.msra.mxu0 %v1375
    %3779 = vmatprep.subr.bf16.mxu0 %v1372
    %3780 = vmatpush2.bf16.msra.mxu0 %v1371
    %3781 = vmatprep.subr.bf16.mxu0 %v1368
    %3782 = vmatpush2.bf16.msra.mxu0 %v1367
    %3783 = vmatprep.subr.bf16.mxu0 %v1364
    %3784 = vmatpush2.bf16.msra.mxu0 %v1363
    %3785 = vmatprep.subr.bf16.mxu0 %v1360
    %3786 = vmatpush2.bf16.msra.mxu0 %v1359
    %3787 = vmatprep.subr.bf16.mxu0 %v1356
    %3788 = vmatpush2.bf16.msra.mxu0 %v1355
    %3789 = vmatprep.mubr.bf16.mxu0 %v3754
    %3790 = vmatmul.mubr.bf16.gmra.mxu0 %v3753
    %v3791 = vpop.f32.mrf.mxu0
    %v3792 = vadd.f32 %v922, %v3791
    %v3793 = vpop.f32.mrf.mxu0
    %v3794 = vadd.f32 %v926, %v3793
    %v3795 = vpop.f32.mrf.mxu0
    %v3796 = vpop.f32.mrf.mxu0
    %3797 = vdwg.mxu0
    %3798 = vmatprep.subr.bf16.mxu0 %v1416
    %3799 = vmatpush1.bf16.msra.mxu0 %v1415
    %3800 = vmatprep.subr.bf16.mxu0 %v1412
    %3801 = vmatpush1.bf16.msra.mxu0 %v1411
    %3802 = vmatprep.subr.bf16.mxu0 %v1408
    %3803 = vmatpush1.bf16.msra.mxu0 %v1407
    %3804 = vmatprep.subr.bf16.mxu0 %v1404
    %3805 = vmatpush1.bf16.msra.mxu0 %v1403
    %3806 = vmatprep.subr.bf16.mxu0 %v1400
    %3807 = vmatpush1.bf16.msra.mxu0 %v1399
    %3808 = vmatprep.subr.bf16.mxu0 %v1396
    %3809 = vmatpush1.bf16.msra.mxu0 %v1395
    %3810 = vmatprep.subr.bf16.mxu0 %v1392
    %3811 = vmatpush1.bf16.msra.mxu0 %v1391
    %3812 = vmatprep.subr.bf16.mxu0 %v1388
    %3813 = vmatpush1.bf16.msra.mxu0 %v1387
    %3814 = vmatprep.subr.bf16.mxu0 %v1448
    %3815 = vmatpush2.bf16.msra.mxu0 %v1447
    %3816 = vmatprep.subr.bf16.mxu0 %v1444
    %3817 = vmatpush2.bf16.msra.mxu0 %v1443
    %3818 = vmatprep.subr.bf16.mxu0 %v1440
    %3819 = vmatpush2.bf16.msra.mxu0 %v1439
    %3820 = vmatprep.subr.bf16.mxu0 %v1436
    %3821 = vmatpush2.bf16.msra.mxu0 %v1435
    %3822 = vmatprep.subr.bf16.mxu0 %v1432
    %3823 = vmatpush2.bf16.msra.mxu0 %v1431
    %3824 = vmatprep.subr.bf16.mxu0 %v1428
    %3825 = vmatpush2.bf16.msra.mxu0 %v1427
    %3826 = vmatprep.subr.bf16.mxu0 %v1424
    %3827 = vmatpush2.bf16.msra.mxu0 %v1423
    %3828 = vmatprep.subr.bf16.mxu0 %v1420
    %3829 = vmatpush2.bf16.msra.mxu0 %v1419
    %3830 = vmatprep.mubr.bf16.mxu0 %v3756
    %3831 = vmatmul.mubr.bf16.gmra.mxu0 %v3755
    %v3832 = vpop.f32.mrf.mxu0
    %v3833 = vadd.f32 %v3792, %v3832
    %v3834 = vpop.f32.mrf.mxu0
    %v3835 = vadd.f32 %v3794, %v3834
    %v3836 = vpop.f32.mrf.mxu0
    %v3837 = vpop.f32.mrf.mxu0
    %3838 = vdwg.mxu0
    %3839 = vmatprep.subr.bf16.mxu0 %v1354
    %3840 = vmatpush1.bf16.msra.mxu0 %v1353
    %3841 = vmatprep.subr.bf16.mxu0 %v1350
    %3842 = vmatpush1.bf16.msra.mxu0 %v1349
    %3843 = vmatprep.subr.bf16.mxu0 %v1346
    %3844 = vmatpush1.bf16.msra.mxu0 %v1345
    %3845 = vmatprep.subr.bf16.mxu0 %v1342
    %3846 = vmatpush1.bf16.msra.mxu0 %v1341
    %3847 = vmatprep.subr.bf16.mxu0 %v1338
    %3848 = vmatpush1.bf16.msra.mxu0 %v1337
    %3849 = vmatprep.subr.bf16.mxu0 %v1334
    %3850 = vmatpush1.bf16.msra.mxu0 %v1333
    %3851 = vmatprep.subr.bf16.mxu0 %v1330
    %3852 = vmatpush1.bf16.msra.mxu0 %v1329
    %3853 = vmatprep.subr.bf16.mxu0 %v1326
    %3854 = vmatpush1.bf16.msra.mxu0 %v1325
    %3855 = vmatprep.subr.bf16.mxu0 %v1386
    %3856 = vmatpush2.bf16.msra.mxu0 %v1385
    %3857 = vmatprep.subr.bf16.mxu0 %v1382
    %3858 = vmatpush2.bf16.msra.mxu0 %v1381
    %3859 = vmatprep.subr.bf16.mxu0 %v1378
    %3860 = vmatpush2.bf16.msra.mxu0 %v1377
    %3861 = vmatprep.subr.bf16.mxu0 %v1374
    %3862 = vmatpush2.bf16.msra.mxu0 %v1373
    %3863 = vmatprep.subr.bf16.mxu0 %v1370
    %3864 = vmatpush2.bf16.msra.mxu0 %v1369
    %3865 = vmatprep.subr.bf16.mxu0 %v1366
    %3866 = vmatpush2.bf16.msra.mxu0 %v1365
    %3867 = vmatprep.subr.bf16.mxu0 %v1362
    %3868 = vmatpush2.bf16.msra.mxu0 %v1361
    %3869 = vmatprep.subr.bf16.mxu0 %v1358
    %3870 = vmatpush2.bf16.msra.mxu0 %v1357
    %3871 = vmatprep.mubr.bf16.mxu0 %v3754
    %3872 = vmatmul.mubr.bf16.gmra.mxu0 %v3753
    %v3873 = vpop.f32.mrf.mxu0
    %v3874 = vadd.f32 %v930, %v3873
    %v3875 = vpop.f32.mrf.mxu0
    %v3876 = vadd.f32 %v934, %v3875
    %v3877 = vpop.f32.mrf.mxu0
    %v3878 = vpop.f32.mrf.mxu0
    %3879 = vdwg.mxu0
    %3880 = vmatprep.subr.bf16.mxu0 %v1418
    %3881 = vmatpush1.bf16.msra.mxu0 %v1417
    %3882 = vmatprep.subr.bf16.mxu0 %v1414
    %3883 = vmatpush1.bf16.msra.mxu0 %v1413
    %3884 = vmatprep.subr.bf16.mxu0 %v1410
    %3885 = vmatpush1.bf16.msra.mxu0 %v1409
    %3886 = vmatprep.subr.bf16.mxu0 %v1406
    %3887 = vmatpush1.bf16.msra.mxu0 %v1405
    %3888 = vmatprep.subr.bf16.mxu0 %v1402
    %3889 = vmatpush1.bf16.msra.mxu0 %v1401
    %3890 = vmatprep.subr.bf16.mxu0 %v1398
    %3891 = vmatpush1.bf16.msra.mxu0 %v1397
    %3892 = vmatprep.subr.bf16.mxu0 %v1394
    %3893 = vmatpush1.bf16.msra.mxu0 %v1393
    %3894 = vmatprep.subr.bf16.mxu0 %v1390
    %3895 = vmatpush1.bf16.msra.mxu0 %v1389
    %3896 = vmatprep.subr.bf16.mxu0 %v1450
    %3897 = vmatpush2.bf16.msra.mxu0 %v1449
    %3898 = vmatprep.subr.bf16.mxu0 %v1446
    %3899 = vmatpush2.bf16.msra.mxu0 %v1445
    %3900 = vmatprep.subr.bf16.mxu0 %v1442
    %3901 = vmatpush2.bf16.msra.mxu0 %v1441
    %3902 = vmatprep.subr.bf16.mxu0 %v1438
    %3903 = vmatpush2.bf16.msra.mxu0 %v1437
    %3904 = vmatprep.subr.bf16.mxu0 %v1434
    %3905 = vmatpush2.bf16.msra.mxu0 %v1433
    %3906 = vmatprep.subr.bf16.mxu0 %v1430
    %3907 = vmatpush2.bf16.msra.mxu0 %v1429
    %3908 = vmatprep.subr.bf16.mxu0 %v1426
    %3909 = vmatpush2.bf16.msra.mxu0 %v1425
    %3910 = vmatprep.subr.bf16.mxu0 %v1422
    %3911 = vmatpush2.bf16.msra.mxu0 %v1421
    %3912 = vmatprep.mubr.bf16.mxu0 %v3756
    %3913 = vmatmul.mubr.bf16.gmra.mxu0 %v3755
    %v3914 = vpop.f32.mrf.mxu0
    %v3915 = vadd.f32 %v3874, %v3914
    %v3916 = vpop.f32.mrf.mxu0
    %v3917 = vadd.f32 %v3876, %v3916
    %v3918 = vpop.f32.mrf.mxu0
    %v3919 = vpop.f32.mrf.mxu0
    %3920 = vdwg.mxu0
    %v3921 = vadd.f32 %v3545, %v3833
    %v3922 = vadd.f32 %v3546, %v3835
    %v3923 = vadd.f32 %v3547, %v3915
    %v3924 = vadd.f32 %v3548, %v3917
    %vm3925 = vcmp.ge.f32.partialorder %v3921, 1.0
    %vm3926 = vcmp.ge.f32.partialorder %v3922, 1.0
    %vm3927 = vcmp.ge.f32.partialorder %v3923, 1.0
    %vm3928 = vcmp.ge.f32.partialorder %v3924, 1.0
    %v3929 = vsel %vm3925, 0.0, %v3921
    %v3930 = vsel %vm3926, 0.0, %v3922
    %v3931 = vsel %vm3927, 0.0, %v3923
    %v3932 = vsel %vm3928, 0.0, %v3924
    %v3933 = vsel %vm3925, 1, 0
    %v3934 = vsel %vm3926, 1, 0
    %v3935 = vsel %vm3927, 1, 0
    %v3936 = vsel %vm3928, 1, 0
    %v3937 = vcvt.s32.f32 %v3933
    %v3938 = vcvt.s32.f32 %v3934
    %v3939 = vcvt.s32.f32 %v3935
    %v3940 = vcvt.s32.f32 %v3936
    %v3941 = vpack.c.bf16 %v3937, %v3937
    %v3942 = vpack.c.bf16 %v3938, %v3938
    %v3943 = vpack.c.bf16 %v3939, %v3939
    %v3944 = vpack.c.bf16 %v3940, %v3940
    %3945 = vmatprep.subr.bf16.mxu0 0
    %3946 = vmatpush1.bf16.msra.mxu0 %v1973
    %3947 = vmatprep.subr.bf16.mxu0 0
    %3948 = vmatpush1.bf16.msra.mxu0 %v1972
    %3949 = vmatprep.subr.bf16.mxu0 0
    %3950 = vmatpush1.bf16.msra.mxu0 %v1971
    %3951 = vmatprep.subr.bf16.mxu0 0
    %3952 = vmatpush1.bf16.msra.mxu0 %v1970
    %3953 = vmatprep.subr.bf16.mxu0 0
    %3954 = vmatpush1.bf16.msra.mxu0 %v1969
    %3955 = vmatprep.subr.bf16.mxu0 0
    %3956 = vmatpush1.bf16.msra.mxu0 %v1968
    %3957 = vmatprep.subr.bf16.mxu0 0
    %3958 = vmatpush1.bf16.msra.mxu0 %v1967
    %3959 = vmatprep.subr.bf16.mxu0 0
    %3960 = vmatpush1.bf16.msra.mxu0 %v1966
    %3961 = vmatprep.subr.bf16.mxu0 0
    %3962 = vmatpush2.bf16.msra.mxu0 %v1981
    %3963 = vmatprep.subr.bf16.mxu0 0
    %3964 = vmatpush2.bf16.msra.mxu0 %v1980
    %3965 = vmatprep.subr.bf16.mxu0 0
    %3966 = vmatpush2.bf16.msra.mxu0 %v1979
    %3967 = vmatprep.subr.bf16.mxu0 0
    %3968 = vmatpush2.bf16.msra.mxu0 %v1978
    %3969 = vmatprep.subr.bf16.mxu0 0
    %3970 = vmatpush2.bf16.msra.mxu0 %v1977
    %3971 = vmatprep.subr.bf16.mxu0 0
    %3972 = vmatpush2.bf16.msra.mxu0 %v1976
    %3973 = vmatprep.subr.bf16.mxu0 0
    %3974 = vmatpush2.bf16.msra.mxu0 %v1975
    %3975 = vmatprep.subr.bf16.mxu0 0
    %3976 = vmatpush2.bf16.msra.mxu0 %v1974
    %3977 = vmatprep.mubr.bf16.mxu0 %v3942
    %3978 = vmatmul.mubr.bf16.gmra.mxu0 %v3941
    %v3979 = vpop.f32.mrf.mxu0
    %v3980 = vadd.f32 %v1836, %v3979
    %v3981 = vpop.f32.mrf.mxu0
    %v3982 = vpop.f32.mrf.mxu0
    %v3983 = vpop.f32.mrf.mxu0
    %3984 = vdwg.mxu0
    %3985 = vmatprep.subr.bf16.mxu0 0
    %3986 = vmatpush1.bf16.msra.mxu0 %v1989
    %3987 = vmatprep.subr.bf16.mxu0 0
    %3988 = vmatpush1.bf16.msra.mxu0 %v1988
    %3989 = vmatprep.subr.bf16.mxu0 0
    %3990 = vmatpush1.bf16.msra.mxu0 %v1987
    %3991 = vmatprep.subr.bf16.mxu0 0
    %3992 = vmatpush1.bf16.msra.mxu0 %v1986
    %3993 = vmatprep.subr.bf16.mxu0 0
    %3994 = vmatpush1.bf16.msra.mxu0 %v1985
    %3995 = vmatprep.subr.bf16.mxu0 0
    %3996 = vmatpush1.bf16.msra.mxu0 %v1984
    %3997 = vmatprep.subr.bf16.mxu0 0
    %3998 = vmatpush1.bf16.msra.mxu0 %v1983
    %3999 = vmatprep.subr.bf16.mxu0 0
    %4000 = vmatpush1.bf16.msra.mxu0 %v1982
    %4001 = vmatprep.subr.bf16.mxu0 0
    %4002 = vmatpush2.bf16.msra.mxu0 %v1997
    %4003 = vmatprep.subr.bf16.mxu0 0
    %4004 = vmatpush2.bf16.msra.mxu0 %v1996
    %4005 = vmatprep.subr.bf16.mxu0 0
    %4006 = vmatpush2.bf16.msra.mxu0 %v1995
    %4007 = vmatprep.subr.bf16.mxu0 0
    %4008 = vmatpush2.bf16.msra.mxu0 %v1994
    %4009 = vmatprep.subr.bf16.mxu0 0
    %4010 = vmatpush2.bf16.msra.mxu0 %v1993
    %4011 = vmatprep.subr.bf16.mxu0 0
    %4012 = vmatpush2.bf16.msra.mxu0 %v1992
    %4013 = vmatprep.subr.bf16.mxu0 0
    %4014 = vmatpush2.bf16.msra.mxu0 %v1991
    %4015 = vmatprep.subr.bf16.mxu0 0
    %4016 = vmatpush2.bf16.msra.mxu0 %v1990
    %4017 = vmatprep.mubr.bf16.mxu0 %v3944
    %4018 = vmatmul.mubr.bf16.gmra.mxu0 %v3943
    %v4019 = vpop.f32.mrf.mxu0
    %v4020 = vadd.f32 %v3980, %v4019
    %v4021 = vpop.f32.mrf.mxu0
    %v4022 = vpop.f32.mrf.mxu0
    %v4023 = vpop.f32.mrf.mxu0
    %4024 = vdwg.mxu0
    %v4025 = vadd.f32 %v3641, %v4020
    %v4026 = vrot.slane %v462, 4
    %v4028 = vadd.f32 %v3647, %v4026
    %vm4029 = vcmp.ge.f32.partialorder %v4028, 1.0
    %v4030 = vsel %vm4029, 0.0, %v4028
    %v4031 = vsel %vm4029, 1, 0
    %v4032 = vcvt.s32.f32 %v4031
    %v4033 = vpack.c.bf16 %v4032, %v4032
    %4034 = vmatprep.subr.bf16.mxu0 %v648
    %4035 = vmatpush1.bf16.msra.mxu0 %v647
    %4036 = vmatprep.subr.bf16.mxu0 %v644
    %4037 = vmatpush1.bf16.msra.mxu0 %v643
    %4038 = vmatprep.subr.bf16.mxu0 %v640
    %4039 = vmatpush1.bf16.msra.mxu0 %v639
    %4040 = vmatprep.subr.bf16.mxu0 %v636
    %4041 = vmatpush1.bf16.msra.mxu0 %v635
    %4042 = vmatprep.subr.bf16.mxu0 %v632
    %4043 = vmatpush1.bf16.msra.mxu0 %v631
    %4044 = vmatprep.subr.bf16.mxu0 %v628
    %4045 = vmatpush1.bf16.msra.mxu0 %v627
    %4046 = vmatprep.subr.bf16.mxu0 %v624
    %4047 = vmatpush1.bf16.msra.mxu0 %v623
    %4048 = vmatprep.subr.bf16.mxu0 %v620
    %4049 = vmatpush1.bf16.msra.mxu0 %v619
    %4050 = vmatprep.subr.bf16.mxu0 0
    %4051 = vmatpush2.bf16.msra.mxu0 0
    %4052 = vmatprep.subr.bf16.mxu0 0
    %4053 = vmatpush2.bf16.msra.mxu0 0
    %4054 = vmatprep.subr.bf16.mxu0 0
    %4055 = vmatpush2.bf16.msra.mxu0 0
    %4056 = vmatprep.subr.bf16.mxu0 0
    %4057 = vmatpush2.bf16.msra.mxu0 0
    %4058 = vmatprep.subr.bf16.mxu0 0
    %4059 = vmatpush2.bf16.msra.mxu0 0
    %4060 = vmatprep.subr.bf16.mxu0 0
    %4061 = vmatpush2.bf16.msra.mxu0 0
    %4062 = vmatprep.subr.bf16.mxu0 0
    %4063 = vmatpush2.bf16.msra.mxu0 0
    %4064 = vmatprep.subr.bf16.mxu0 0
    %4065 = vmatpush2.bf16.msra.mxu0 0
    %4066 = vmatprep.mubr.bf16.mxu0 0
    %4067 = vmatmul.mubr.bf16.gmra.mxu0 %v4033
    %v4068 = vpop.f32.mrf.mxu0
    %v4069 = vadd.f32 %v506, %v4068
    %v4070 = vpop.f32.mrf.mxu0
    %v4071 = vadd.f32 %v510, %v4070
    %v4072 = vpop.f32.mrf.mxu0
    %v4073 = vpop.f32.mrf.mxu0
    %4074 = vdwg.mxu0
    %4075 = vmatprep.subr.bf16.mxu0 %v650
    %4076 = vmatpush1.bf16.msra.mxu0 %v649
    %4077 = vmatprep.subr.bf16.mxu0 %v646
    %4078 = vmatpush1.bf16.msra.mxu0 %v645
    %4079 = vmatprep.subr.bf16.mxu0 %v642
    %4080 = vmatpush1.bf16.msra.mxu0 %v641
    %4081 = vmatprep.subr.bf16.mxu0 %v638
    %4082 = vmatpush1.bf16.msra.mxu0 %v637
    %4083 = vmatprep.subr.bf16.mxu0 %v634
    %4084 = vmatpush1.bf16.msra.mxu0 %v633
    %4085 = vmatprep.subr.bf16.mxu0 %v630
    %4086 = vmatpush1.bf16.msra.mxu0 %v629
    %4087 = vmatprep.subr.bf16.mxu0 %v626
    %4088 = vmatpush1.bf16.msra.mxu0 %v625
    %4089 = vmatprep.subr.bf16.mxu0 %v622
    %4090 = vmatpush1.bf16.msra.mxu0 %v621
    %4091 = vmatprep.subr.bf16.mxu0 0
    %4092 = vmatpush2.bf16.msra.mxu0 0
    %4093 = vmatprep.subr.bf16.mxu0 0
    %4094 = vmatpush2.bf16.msra.mxu0 0
    %4095 = vmatprep.subr.bf16.mxu0 0
    %4096 = vmatpush2.bf16.msra.mxu0 0
    %4097 = vmatprep.subr.bf16.mxu0 0
    %4098 = vmatpush2.bf16.msra.mxu0 0
    %4099 = vmatprep.subr.bf16.mxu0 0
    %4100 = vmatpush2.bf16.msra.mxu0 0
    %4101 = vmatprep.subr.bf16.mxu0 0
    %4102 = vmatpush2.bf16.msra.mxu0 0
    %4103 = vmatprep.subr.bf16.mxu0 0
    %4104 = vmatpush2.bf16.msra.mxu0 0
    %4105 = vmatprep.subr.bf16.mxu0 0
    %4106 = vmatpush2.bf16.msra.mxu0 0
    %4107 = vmatprep.mubr.bf16.mxu0 0
    %4108 = vmatmul.mubr.bf16.gmra.mxu0 %v4033
    %v4109 = vpop.f32.mrf.mxu0
    %v4110 = vadd.f32 %v514, %v4109
    %v4111 = vpop.f32.mrf.mxu0
    %v4112 = vadd.f32 %v518, %v4111
    %v4113 = vpop.f32.mrf.mxu0
    %v4114 = vpop.f32.mrf.mxu0
    %4115 = vdwg.mxu0
    %v4116 = vadd.f32 %v3741, %v4069
    %v4117 = vadd.f32 %v3742, %v4071
    %v4118 = vadd.f32 %v3743, %v4110
    %v4119 = vadd.f32 %v3744, %v4112
    %vm4120 = vcmp.ge.f32.partialorder %v4116, 1.0
    %vm4121 = vcmp.ge.f32.partialorder %v4117, 1.0
    %vm4122 = vcmp.ge.f32.partialorder %v4118, 1.0
    %vm4123 = vcmp.ge.f32.partialorder %v4119, 1.0
    %v4124 = vsel %vm4120, 0.0, %v4116
    %v4125 = vsel %vm4121, 0.0, %v4117
    %v4126 = vsel %vm4122, 0.0, %v4118
    %v4127 = vsel %vm4123, 0.0, %v4119
    %v4128 = vsel %vm4120, 1, 0
    %v4129 = vsel %vm4121, 1, 0
    %v4130 = vsel %vm4122, 1, 0
    %v4131 = vsel %vm4123, 1, 0
    %v4132 = vcvt.s32.f32 %v4128
    %v4133 = vcvt.s32.f32 %v4129
    %v4134 = vcvt.s32.f32 %v4130
    %v4135 = vcvt.s32.f32 %v4131
    %v4136 = vpack.c.bf16 %v4132, %v4132
    %v4137 = vpack.c.bf16 %v4133, %v4133
    %v4138 = vpack.c.bf16 %v4134, %v4134
    %v4139 = vpack.c.bf16 %v4135, %v4135
    %4140 = vmatprep.subr.bf16.mxu0 %v1352
    %4141 = vmatpush1.bf16.msra.mxu0 %v1351
    %4142 = vmatprep.subr.bf16.mxu0 %v1348
    %4143 = vmatpush1.bf16.msra.mxu0 %v1347
    %4144 = vmatprep.subr.bf16.mxu0 %v1344
    %4145 = vmatpush1.bf16.msra.mxu0 %v1343
    %4146 = vmatprep.subr.bf16.mxu0 %v1340
    %4147 = vmatpush1.bf16.msra.mxu0 %v1339
    %4148 = vmatprep.subr.bf16.mxu0 %v1336
    %4149 = vmatpush1.bf16.msra.mxu0 %v1335
    %4150 = vmatprep.subr.bf16.mxu0 %v1332
    %4151 = vmatpush1.bf16.msra.mxu0 %v1331
    %4152 = vmatprep.subr.bf16.mxu0 %v1328
    %4153 = vmatpush1.bf16.msra.mxu0 %v1327
    %4154 = vmatprep.subr.bf16.mxu0 %v1324
    %4155 = vmatpush1.bf16.msra.mxu0 %v1323
    %4156 = vmatprep.subr.bf16.mxu0 %v1384
    %4157 = vmatpush2.bf16.msra.mxu0 %v1383
    %4158 = vmatprep.subr.bf16.mxu0 %v1380
    %4159 = vmatpush2.bf16.msra.mxu0 %v1379
    %4160 = vmatprep.subr.bf16.mxu0 %v1376
    %4161 = vmatpush2.bf16.msra.mxu0 %v1375
    %4162 = vmatprep.subr.bf16.mxu0 %v1372
    %4163 = vmatpush2.bf16.msra.mxu0 %v1371
    %4164 = vmatprep.subr.bf16.mxu0 %v1368
    %4165 = vmatpush2.bf16.msra.mxu0 %v1367
    %4166 = vmatprep.subr.bf16.mxu0 %v1364
    %4167 = vmatpush2.bf16.msra.mxu0 %v1363
    %4168 = vmatprep.subr.bf16.mxu0 %v1360
    %4169 = vmatpush2.bf16.msra.mxu0 %v1359
    %4170 = vmatprep.subr.bf16.mxu0 %v1356
    %4171 = vmatpush2.bf16.msra.mxu0 %v1355
    %4172 = vmatprep.mubr.bf16.mxu0 %v4137
    %4173 = vmatmul.mubr.bf16.gmra.mxu0 %v4136
    %v4174 = vpop.f32.mrf.mxu0
    %v4175 = vadd.f32 %v922, %v4174
    %v4176 = vpop.f32.mrf.mxu0
    %v4177 = vadd.f32 %v926, %v4176
    %v4178 = vpop.f32.mrf.mxu0
    %v4179 = vpop.f32.mrf.mxu0
    %4180 = vdwg.mxu0
    %4181 = vmatprep.subr.bf16.mxu0 %v1416
    %4182 = vmatpush1.bf16.msra.mxu0 %v1415
    %4183 = vmatprep.subr.bf16.mxu0 %v1412
    %4184 = vmatpush1.bf16.msra.mxu0 %v1411
    %4185 = vmatprep.subr.bf16.mxu0 %v1408
    %4186 = vmatpush1.bf16.msra.mxu0 %v1407
    %4187 = vmatprep.subr.bf16.mxu0 %v1404
    %4188 = vmatpush1.bf16.msra.mxu0 %v1403
    %4189 = vmatprep.subr.bf16.mxu0 %v1400
    %4190 = vmatpush1.bf16.msra.mxu0 %v1399
    %4191 = vmatprep.subr.bf16.mxu0 %v1396
    %4192 = vmatpush1.bf16.msra.mxu0 %v1395
    %4193 = vmatprep.subr.bf16.mxu0 %v1392
    %4194 = vmatpush1.bf16.msra.mxu0 %v1391
    %4195 = vmatprep.subr.bf16.mxu0 %v1388
    %4196 = vmatpush1.bf16.msra.mxu0 %v1387
    %4197 = vmatprep.subr.bf16.mxu0 %v1448
    %4198 = vmatpush2.bf16.msra.mxu0 %v1447
    %4199 = vmatprep.subr.bf16.mxu0 %v1444
    %4200 = vmatpush2.bf16.msra.mxu0 %v1443
    %4201 = vmatprep.subr.bf16.mxu0 %v1440
    %4202 = vmatpush2.bf16.msra.mxu0 %v1439
    %4203 = vmatprep.subr.bf16.mxu0 %v1436
    %4204 = vmatpush2.bf16.msra.mxu0 %v1435
    %4205 = vmatprep.subr.bf16.mxu0 %v1432
    %4206 = vmatpush2.bf16.msra.mxu0 %v1431
    %4207 = vmatprep.subr.bf16.mxu0 %v1428
    %4208 = vmatpush2.bf16.msra.mxu0 %v1427
    %4209 = vmatprep.subr.bf16.mxu0 %v1424
    %4210 = vmatpush2.bf16.msra.mxu0 %v1423
    %4211 = vmatprep.subr.bf16.mxu0 %v1420
    %4212 = vmatpush2.bf16.msra.mxu0 %v1419
    %4213 = vmatprep.mubr.bf16.mxu0 %v4139
    %4214 = vmatmul.mubr.bf16.gmra.mxu0 %v4138
    %v4215 = vpop.f32.mrf.mxu0
    %v4216 = vadd.f32 %v4175, %v4215
    %v4217 = vpop.f32.mrf.mxu0
    %v4218 = vadd.f32 %v4177, %v4217
    %v4219 = vpop.f32.mrf.mxu0
    %v4220 = vpop.f32.mrf.mxu0
    %4221 = vdwg.mxu0
    %4222 = vmatprep.subr.bf16.mxu0 %v1354
    %4223 = vmatpush1.bf16.msra.mxu0 %v1353
    %4224 = vmatprep.subr.bf16.mxu0 %v1350
    %4225 = vmatpush1.bf16.msra.mxu0 %v1349
    %4226 = vmatprep.subr.bf16.mxu0 %v1346
    %4227 = vmatpush1.bf16.msra.mxu0 %v1345
    %4228 = vmatprep.subr.bf16.mxu0 %v1342
    %4229 = vmatpush1.bf16.msra.mxu0 %v1341
    %4230 = vmatprep.subr.bf16.mxu0 %v1338
    %4231 = vmatpush1.bf16.msra.mxu0 %v1337
    %4232 = vmatprep.subr.bf16.mxu0 %v1334
    %4233 = vmatpush1.bf16.msra.mxu0 %v1333
    %4234 = vmatprep.subr.bf16.mxu0 %v1330
    %4235 = vmatpush1.bf16.msra.mxu0 %v1329
    %4236 = vmatprep.subr.bf16.mxu0 %v1326
    %4237 = vmatpush1.bf16.msra.mxu0 %v1325
    %4238 = vmatprep.subr.bf16.mxu0 %v1386
    %4239 = vmatpush2.bf16.msra.mxu0 %v1385
    %4240 = vmatprep.subr.bf16.mxu0 %v1382
    %4241 = vmatpush2.bf16.msra.mxu0 %v1381
    %4242 = vmatprep.subr.bf16.mxu0 %v1378
    %4243 = vmatpush2.bf16.msra.mxu0 %v1377
    %4244 = vmatprep.subr.bf16.mxu0 %v1374
    %4245 = vmatpush2.bf16.msra.mxu0 %v1373
    %4246 = vmatprep.subr.bf16.mxu0 %v1370
    %4247 = vmatpush2.bf16.msra.mxu0 %v1369
    %4248 = vmatprep.subr.bf16.mxu0 %v1366
    %4249 = vmatpush2.bf16.msra.mxu0 %v1365
    %4250 = vmatprep.subr.bf16.mxu0 %v1362
    %4251 = vmatpush2.bf16.msra.mxu0 %v1361
    %4252 = vmatprep.subr.bf16.mxu0 %v1358
    %4253 = vmatpush2.bf16.msra.mxu0 %v1357
    %4254 = vmatprep.mubr.bf16.mxu0 %v4137
    %4255 = vmatmul.mubr.bf16.gmra.mxu0 %v4136
    %v4256 = vpop.f32.mrf.mxu0
    %v4257 = vadd.f32 %v930, %v4256
    %v4258 = vpop.f32.mrf.mxu0
    %v4259 = vadd.f32 %v934, %v4258
    %v4260 = vpop.f32.mrf.mxu0
    %v4261 = vpop.f32.mrf.mxu0
    %4262 = vdwg.mxu0
    %4263 = vmatprep.subr.bf16.mxu0 %v1418
    %4264 = vmatpush1.bf16.msra.mxu0 %v1417
    %4265 = vmatprep.subr.bf16.mxu0 %v1414
    %4266 = vmatpush1.bf16.msra.mxu0 %v1413
    %4267 = vmatprep.subr.bf16.mxu0 %v1410
    %4268 = vmatpush1.bf16.msra.mxu0 %v1409
    %4269 = vmatprep.subr.bf16.mxu0 %v1406
    %4270 = vmatpush1.bf16.msra.mxu0 %v1405
    %4271 = vmatprep.subr.bf16.mxu0 %v1402
    %4272 = vmatpush1.bf16.msra.mxu0 %v1401
    %4273 = vmatprep.subr.bf16.mxu0 %v1398
    %4274 = vmatpush1.bf16.msra.mxu0 %v1397
    %4275 = vmatprep.subr.bf16.mxu0 %v1394
    %4276 = vmatpush1.bf16.msra.mxu0 %v1393
    %4277 = vmatprep.subr.bf16.mxu0 %v1390
    %4278 = vmatpush1.bf16.msra.mxu0 %v1389
    %4279 = vmatprep.subr.bf16.mxu0 %v1450
    %4280 = vmatpush2.bf16.msra.mxu0 %v1449
    %4281 = vmatprep.subr.bf16.mxu0 %v1446
    %4282 = vmatpush2.bf16.msra.mxu0 %v1445
    %4283 = vmatprep.subr.bf16.mxu0 %v1442
    %4284 = vmatpush2.bf16.msra.mxu0 %v1441
    %4285 = vmatprep.subr.bf16.mxu0 %v1438
    %4286 = vmatpush2.bf16.msra.mxu0 %v1437
    %4287 = vmatprep.subr.bf16.mxu0 %v1434
    %4288 = vmatpush2.bf16.msra.mxu0 %v1433
    %4289 = vmatprep.subr.bf16.mxu0 %v1430
    %4290 = vmatpush2.bf16.msra.mxu0 %v1429
    %4291 = vmatprep.subr.bf16.mxu0 %v1426
    %4292 = vmatpush2.bf16.msra.mxu0 %v1425
    %4293 = vmatprep.subr.bf16.mxu0 %v1422
    %4294 = vmatpush2.bf16.msra.mxu0 %v1421
    %4295 = vmatprep.mubr.bf16.mxu0 %v4139
    %4296 = vmatmul.mubr.bf16.gmra.mxu0 %v4138
    %v4297 = vpop.f32.mrf.mxu0
    %v4298 = vadd.f32 %v4257, %v4297
    %v4299 = vpop.f32.mrf.mxu0
    %v4300 = vadd.f32 %v4259, %v4299
    %v4301 = vpop.f32.mrf.mxu0
    %v4302 = vpop.f32.mrf.mxu0
    %4303 = vdwg.mxu0
    %v4304 = vadd.f32 %v3929, %v4216
    %v4305 = vadd.f32 %v3930, %v4218
    %v4306 = vadd.f32 %v3931, %v4298
    %v4307 = vadd.f32 %v3932, %v4300
    %vm4308 = vcmp.ge.f32.partialorder %v4304, 1.0
    %vm4309 = vcmp.ge.f32.partialorder %v4305, 1.0
    %vm4310 = vcmp.ge.f32.partialorder %v4306, 1.0
    %vm4311 = vcmp.ge.f32.partialorder %v4307, 1.0
    %v4312 = vsel %vm4308, 0.0, %v4304
    %v4313 = vsel %vm4309, 0.0, %v4305
    %v4314 = vsel %vm4310, 0.0, %v4306
    %v4315 = vsel %vm4311, 0.0, %v4307
    %v4316 = vsel %vm4308, 1, 0
    %v4317 = vsel %vm4309, 1, 0
    %v4318 = vsel %vm4310, 1, 0
    %v4319 = vsel %vm4311, 1, 0
    %v4320 = vcvt.s32.f32 %v4316
    %v4321 = vcvt.s32.f32 %v4317
    %v4322 = vcvt.s32.f32 %v4318
    %v4323 = vcvt.s32.f32 %v4319
    %v4324 = vpack.c.bf16 %v4320, %v4320
    %v4325 = vpack.c.bf16 %v4321, %v4321
    %v4326 = vpack.c.bf16 %v4322, %v4322
    %v4327 = vpack.c.bf16 %v4323, %v4323
    %4328 = vmatprep.subr.bf16.mxu0 0
    %4329 = vmatpush1.bf16.msra.mxu0 %v1973
    %4330 = vmatprep.subr.bf16.mxu0 0
    %4331 = vmatpush1.bf16.msra.mxu0 %v1972
    %4332 = vmatprep.subr.bf16.mxu0 0
    %4333 = vmatpush1.bf16.msra.mxu0 %v1971
    %4334 = vmatprep.subr.bf16.mxu0 0
    %4335 = vmatpush1.bf16.msra.mxu0 %v1970
    %4336 = vmatprep.subr.bf16.mxu0 0
    %4337 = vmatpush1.bf16.msra.mxu0 %v1969
    %4338 = vmatprep.subr.bf16.mxu0 0
    %4339 = vmatpush1.bf16.msra.mxu0 %v1968
    %4340 = vmatprep.subr.bf16.mxu0 0
    %4341 = vmatpush1.bf16.msra.mxu0 %v1967
    %4342 = vmatprep.subr.bf16.mxu0 0
    %4343 = vmatpush1.bf16.msra.mxu0 %v1966
    %4344 = vmatprep.subr.bf16.mxu0 0
    %4345 = vmatpush2.bf16.msra.mxu0 %v1981
    %4346 = vmatprep.subr.bf16.mxu0 0
    %4347 = vmatpush2.bf16.msra.mxu0 %v1980
    %4348 = vmatprep.subr.bf16.mxu0 0
    %4349 = vmatpush2.bf16.msra.mxu0 %v1979
    %4350 = vmatprep.subr.bf16.mxu0 0
    %4351 = vmatpush2.bf16.msra.mxu0 %v1978
    %4352 = vmatprep.subr.bf16.mxu0 0
    %4353 = vmatpush2.bf16.msra.mxu0 %v1977
    %4354 = vmatprep.subr.bf16.mxu0 0
    %4355 = vmatpush2.bf16.msra.mxu0 %v1976
    %4356 = vmatprep.subr.bf16.mxu0 0
    %4357 = vmatpush2.bf16.msra.mxu0 %v1975
    %4358 = vmatprep.subr.bf16.mxu0 0
    %4359 = vmatpush2.bf16.msra.mxu0 %v1974
    %4360 = vmatprep.mubr.bf16.mxu0 %v4325
    %4361 = vmatmul.mubr.bf16.gmra.mxu0 %v4324
    %v4362 = vpop.f32.mrf.mxu0
    %v4363 = vadd.f32 %v1836, %v4362
    %v4364 = vpop.f32.mrf.mxu0
    %v4365 = vpop.f32.mrf.mxu0
    %v4366 = vpop.f32.mrf.mxu0
    %4367 = vdwg.mxu0
    %4368 = vmatprep.subr.bf16.mxu0 0
    %4369 = vmatpush1.bf16.msra.mxu0 %v1989
    %4370 = vmatprep.subr.bf16.mxu0 0
    %4371 = vmatpush1.bf16.msra.mxu0 %v1988
    %4372 = vmatprep.subr.bf16.mxu0 0
    %4373 = vmatpush1.bf16.msra.mxu0 %v1987
    %4374 = vmatprep.subr.bf16.mxu0 0
    %4375 = vmatpush1.bf16.msra.mxu0 %v1986
    %4376 = vmatprep.subr.bf16.mxu0 0
    %4377 = vmatpush1.bf16.msra.mxu0 %v1985
    %4378 = vmatprep.subr.bf16.mxu0 0
    %4379 = vmatpush1.bf16.msra.mxu0 %v1984
    %4380 = vmatprep.subr.bf16.mxu0 0
    %4381 = vmatpush1.bf16.msra.mxu0 %v1983
    %4382 = vmatprep.subr.bf16.mxu0 0
    %4383 = vmatpush1.bf16.msra.mxu0 %v1982
    %4384 = vmatprep.subr.bf16.mxu0 0
    %4385 = vmatpush2.bf16.msra.mxu0 %v1997
    %4386 = vmatprep.subr.bf16.mxu0 0
    %4387 = vmatpush2.bf16.msra.mxu0 %v1996
    %4388 = vmatprep.subr.bf16.mxu0 0
    %4389 = vmatpush2.bf16.msra.mxu0 %v1995
    %4390 = vmatprep.subr.bf16.mxu0 0
    %4391 = vmatpush2.bf16.msra.mxu0 %v1994
    %4392 = vmatprep.subr.bf16.mxu0 0
    %4393 = vmatpush2.bf16.msra.mxu0 %v1993
    %4394 = vmatprep.subr.bf16.mxu0 0
    %4395 = vmatpush2.bf16.msra.mxu0 %v1992
    %4396 = vmatprep.subr.bf16.mxu0 0
    %4397 = vmatpush2.bf16.msra.mxu0 %v1991
    %4398 = vmatprep.subr.bf16.mxu0 0
    %4399 = vmatpush2.bf16.msra.mxu0 %v1990
    %4400 = vmatprep.mubr.bf16.mxu0 %v4327
    %4401 = vmatmul.mubr.bf16.gmra.mxu0 %v4326
    %v4402 = vpop.f32.mrf.mxu0
    %v4403 = vadd.f32 %v4363, %v4402
    %v4404 = vpop.f32.mrf.mxu0
    %v4405 = vpop.f32.mrf.mxu0
    %v4406 = vpop.f32.mrf.mxu0
    %4407 = vdwg.mxu0
    %v4408 = vadd.f32 %v4025, %v4403
    %v4409 = vrot.slane %v462, 6
    %v4411 = vadd.f32 %v4030, %v4409
    %vm4412 = vcmp.ge.f32.partialorder %v4411, 1.0
    %v4413 = vsel %vm4412, 1, 0
    %v4414 = vcvt.s32.f32 %v4413
    %v4415 = vpack.c.bf16 %v4414, %v4414
    %4416 = vmatprep.subr.bf16.mxu0 %v648
    %4417 = vmatpush1.bf16.msra.mxu0 %v647
    %4418 = vmatprep.subr.bf16.mxu0 %v644
    %4419 = vmatpush1.bf16.msra.mxu0 %v643
    %4420 = vmatprep.subr.bf16.mxu0 %v640
    %4421 = vmatpush1.bf16.msra.mxu0 %v639
    %4422 = vmatprep.subr.bf16.mxu0 %v636
    %4423 = vmatpush1.bf16.msra.mxu0 %v635
    %4424 = vmatprep.subr.bf16.mxu0 %v632
    %4425 = vmatpush1.bf16.msra.mxu0 %v631
    %4426 = vmatprep.subr.bf16.mxu0 %v628
    %4427 = vmatpush1.bf16.msra.mxu0 %v627
    %4428 = vmatprep.subr.bf16.mxu0 %v624
    %4429 = vmatpush1.bf16.msra.mxu0 %v623
    %4430 = vmatprep.subr.bf16.mxu0 %v620
    %4431 = vmatpush1.bf16.msra.mxu0 %v619
    %4432 = vmatprep.subr.bf16.mxu0 0
    %4433 = vmatpush2.bf16.msra.mxu0 0
    %4434 = vmatprep.subr.bf16.mxu0 0
    %4435 = vmatpush2.bf16.msra.mxu0 0
    %4436 = vmatprep.subr.bf16.mxu0 0
    %4437 = vmatpush2.bf16.msra.mxu0 0
    %4438 = vmatprep.subr.bf16.mxu0 0
    %4439 = vmatpush2.bf16.msra.mxu0 0
    %4440 = vmatprep.subr.bf16.mxu0 0
    %4441 = vmatpush2.bf16.msra.mxu0 0
    %4442 = vmatprep.subr.bf16.mxu0 0
    %4443 = vmatpush2.bf16.msra.mxu0 0
    %4444 = vmatprep.subr.bf16.mxu0 0
    %4445 = vmatpush2.bf16.msra.mxu0 0
    %4446 = vmatprep.subr.bf16.mxu0 0
    %4447 = vmatpush2.bf16.msra.mxu0 0
    %4448 = vmatprep.mubr.bf16.mxu0 0
    %4449 = vmatmul.mubr.bf16.gmra.mxu0 %v4415
    %v4450 = vpop.f32.mrf.mxu0
    %v4451 = vadd.f32 %v506, %v4450
    %v4452 = vpop.f32.mrf.mxu0
    %v4453 = vadd.f32 %v510, %v4452
    %v4454 = vpop.f32.mrf.mxu0
    %v4455 = vpop.f32.mrf.mxu0
    %4456 = vdwg.mxu0
    %4457 = vmatprep.subr.bf16.mxu0 %v650
    %4458 = vmatpush1.bf16.msra.mxu0 %v649
    %4459 = vmatprep.subr.bf16.mxu0 %v646
    %4460 = vmatpush1.bf16.msra.mxu0 %v645
    %4461 = vmatprep.subr.bf16.mxu0 %v642
    %4462 = vmatpush1.bf16.msra.mxu0 %v641
    %4463 = vmatprep.subr.bf16.mxu0 %v638
    %4464 = vmatpush1.bf16.msra.mxu0 %v637
    %4465 = vmatprep.subr.bf16.mxu0 %v634
    %4466 = vmatpush1.bf16.msra.mxu0 %v633
    %4467 = vmatprep.subr.bf16.mxu0 %v630
    %4468 = vmatpush1.bf16.msra.mxu0 %v629
    %4469 = vmatprep.subr.bf16.mxu0 %v626
    %4470 = vmatpush1.bf16.msra.mxu0 %v625
    %4471 = vmatprep.subr.bf16.mxu0 %v622
    %4472 = vmatpush1.bf16.msra.mxu0 %v621
    %4473 = vmatprep.subr.bf16.mxu0 0
    %4474 = vmatpush2.bf16.msra.mxu0 0
    %4475 = vmatprep.subr.bf16.mxu0 0
    %4476 = vmatpush2.bf16.msra.mxu0 0
    %4477 = vmatprep.subr.bf16.mxu0 0
    %4478 = vmatpush2.bf16.msra.mxu0 0
    %4479 = vmatprep.subr.bf16.mxu0 0
    %4480 = vmatpush2.bf16.msra.mxu0 0
    %4481 = vmatprep.subr.bf16.mxu0 0
    %4482 = vmatpush2.bf16.msra.mxu0 0
    %4483 = vmatprep.subr.bf16.mxu0 0
    %4484 = vmatpush2.bf16.msra.mxu0 0
    %4485 = vmatprep.subr.bf16.mxu0 0
    %4486 = vmatpush2.bf16.msra.mxu0 0
    %4487 = vmatprep.subr.bf16.mxu0 0
    %4488 = vmatpush2.bf16.msra.mxu0 0
    %4489 = vmatprep.mubr.bf16.mxu0 0
    %4490 = vmatmul.mubr.bf16.gmra.mxu0 %v4415
    %v4491 = vpop.f32.mrf.mxu0
    %v4492 = vadd.f32 %v514, %v4491
    %v4493 = vpop.f32.mrf.mxu0
    %v4494 = vadd.f32 %v518, %v4493
    %v4495 = vpop.f32.mrf.mxu0
    %v4496 = vpop.f32.mrf.mxu0
    %4497 = vdwg.mxu0
    %v4498 = vadd.f32 %v4124, %v4451
    %v4499 = vadd.f32 %v4125, %v4453
    %v4500 = vadd.f32 %v4126, %v4492
    %v4501 = vadd.f32 %v4127, %v4494
    %vm4502 = vcmp.ge.f32.partialorder %v4498, 1.0
    %vm4503 = vcmp.ge.f32.partialorder %v4499, 1.0
    %vm4504 = vcmp.ge.f32.partialorder %v4500, 1.0
    %vm4505 = vcmp.ge.f32.partialorder %v4501, 1.0
    %v4506 = vsel %vm4502, 1, 0
    %v4507 = vsel %vm4503, 1, 0
    %v4508 = vsel %vm4504, 1, 0
    %v4509 = vsel %vm4505, 1, 0
    %v4510 = vcvt.s32.f32 %v4506
    %v4511 = vcvt.s32.f32 %v4507
    %v4512 = vcvt.s32.f32 %v4508
    %v4513 = vcvt.s32.f32 %v4509
    %v4514 = vpack.c.bf16 %v4510, %v4510
    %v4515 = vpack.c.bf16 %v4511, %v4511
    %v4516 = vpack.c.bf16 %v4512, %v4512
    %v4517 = vpack.c.bf16 %v4513, %v4513
    %4518 = vmatprep.subr.bf16.mxu0 %v1352
    %4519 = vmatpush1.bf16.msra.mxu0 %v1351
    %4520 = vmatprep.subr.bf16.mxu0 %v1348
    %4521 = vmatpush1.bf16.msra.mxu0 %v1347
    %4522 = vmatprep.subr.bf16.mxu0 %v1344
    %4523 = vmatpush1.bf16.msra.mxu0 %v1343
    %4524 = vmatprep.subr.bf16.mxu0 %v1340
    %4525 = vmatpush1.bf16.msra.mxu0 %v1339
    %4526 = vmatprep.subr.bf16.mxu0 %v1336
    %4527 = vmatpush1.bf16.msra.mxu0 %v1335
    %4528 = vmatprep.subr.bf16.mxu0 %v1332
    %4529 = vmatpush1.bf16.msra.mxu0 %v1331
    %4530 = vmatprep.subr.bf16.mxu0 %v1328
    %4531 = vmatpush1.bf16.msra.mxu0 %v1327
    %4532 = vmatprep.subr.bf16.mxu0 %v1324
    %4533 = vmatpush1.bf16.msra.mxu0 %v1323
    %4534 = vmatprep.subr.bf16.mxu0 %v1384
    %4535 = vmatpush2.bf16.msra.mxu0 %v1383
    %4536 = vmatprep.subr.bf16.mxu0 %v1380
    %4537 = vmatpush2.bf16.msra.mxu0 %v1379
    %4538 = vmatprep.subr.bf16.mxu0 %v1376
    %4539 = vmatpush2.bf16.msra.mxu0 %v1375
    %4540 = vmatprep.subr.bf16.mxu0 %v1372
    %4541 = vmatpush2.bf16.msra.mxu0 %v1371
    %4542 = vmatprep.subr.bf16.mxu0 %v1368
    %4543 = vmatpush2.bf16.msra.mxu0 %v1367
    %4544 = vmatprep.subr.bf16.mxu0 %v1364
    %4545 = vmatpush2.bf16.msra.mxu0 %v1363
    %4546 = vmatprep.subr.bf16.mxu0 %v1360
    %4547 = vmatpush2.bf16.msra.mxu0 %v1359
    %4548 = vmatprep.subr.bf16.mxu0 %v1356
    %4549 = vmatpush2.bf16.msra.mxu0 %v1355
    %4550 = vmatprep.mubr.bf16.mxu0 %v4515
    %4551 = vmatmul.mubr.bf16.gmra.mxu0 %v4514
    %v4552 = vpop.f32.mrf.mxu0
    %v4553 = vadd.f32 %v922, %v4552
    %v4554 = vpop.f32.mrf.mxu0
    %v4555 = vadd.f32 %v926, %v4554
    %v4556 = vpop.f32.mrf.mxu0
    %v4557 = vpop.f32.mrf.mxu0
    %4558 = vdwg.mxu0
    %4559 = vmatprep.subr.bf16.mxu0 %v1416
    %4560 = vmatpush1.bf16.msra.mxu0 %v1415
    %4561 = vmatprep.subr.bf16.mxu0 %v1412
    %4562 = vmatpush1.bf16.msra.mxu0 %v1411
    %4563 = vmatprep.subr.bf16.mxu0 %v1408
    %4564 = vmatpush1.bf16.msra.mxu0 %v1407
    %4565 = vmatprep.subr.bf16.mxu0 %v1404
    %4566 = vmatpush1.bf16.msra.mxu0 %v1403
    %4567 = vmatprep.subr.bf16.mxu0 %v1400
    %4568 = vmatpush1.bf16.msra.mxu0 %v1399
    %4569 = vmatprep.subr.bf16.mxu0 %v1396
    %4570 = vmatpush1.bf16.msra.mxu0 %v1395
    %4571 = vmatprep.subr.bf16.mxu0 %v1392
    %4572 = vmatpush1.bf16.msra.mxu0 %v1391
    %4573 = vmatprep.subr.bf16.mxu0 %v1388
    %4574 = vmatpush1.bf16.msra.mxu0 %v1387
    %4575 = vmatprep.subr.bf16.mxu0 %v1448
    %4576 = vmatpush2.bf16.msra.mxu0 %v1447
    %4577 = vmatprep.subr.bf16.mxu0 %v1444
    %4578 = vmatpush2.bf16.msra.mxu0 %v1443
    %4579 = vmatprep.subr.bf16.mxu0 %v1440
    %4580 = vmatpush2.bf16.msra.mxu0 %v1439
    %4581 = vmatprep.subr.bf16.mxu0 %v1436
    %4582 = vmatpush2.bf16.msra.mxu0 %v1435
    %4583 = vmatprep.subr.bf16.mxu0 %v1432
    %4584 = vmatpush2.bf16.msra.mxu0 %v1431
    %4585 = vmatprep.subr.bf16.mxu0 %v1428
    %4586 = vmatpush2.bf16.msra.mxu0 %v1427
    %4587 = vmatprep.subr.bf16.mxu0 %v1424
    %4588 = vmatpush2.bf16.msra.mxu0 %v1423
    %4589 = vmatprep.subr.bf16.mxu0 %v1420
    %4590 = vmatpush2.bf16.msra.mxu0 %v1419
    %4591 = vmatprep.mubr.bf16.mxu0 %v4517
    %4592 = vmatmul.mubr.bf16.gmra.mxu0 %v4516
    %v4593 = vpop.f32.mrf.mxu0
    %v4594 = vadd.f32 %v4553, %v4593
    %v4595 = vpop.f32.mrf.mxu0
    %v4596 = vadd.f32 %v4555, %v4595
    %v4597 = vpop.f32.mrf.mxu0
    %v4598 = vpop.f32.mrf.mxu0
    %4599 = vdwg.mxu0
    %4600 = vmatprep.subr.bf16.mxu0 %v1354
    %4601 = vmatpush1.bf16.msra.mxu0 %v1353
    %4602 = vmatprep.subr.bf16.mxu0 %v1350
    %4603 = vmatpush1.bf16.msra.mxu0 %v1349
    %4604 = vmatprep.subr.bf16.mxu0 %v1346
    %4605 = vmatpush1.bf16.msra.mxu0 %v1345
    %4606 = vmatprep.subr.bf16.mxu0 %v1342
    %4607 = vmatpush1.bf16.msra.mxu0 %v1341
    %4608 = vmatprep.subr.bf16.mxu0 %v1338
    %4609 = vmatpush1.bf16.msra.mxu0 %v1337
    %4610 = vmatprep.subr.bf16.mxu0 %v1334
    %4611 = vmatpush1.bf16.msra.mxu0 %v1333
    %4612 = vmatprep.subr.bf16.mxu0 %v1330
    %4613 = vmatpush1.bf16.msra.mxu0 %v1329
    %4614 = vmatprep.subr.bf16.mxu0 %v1326
    %4615 = vmatpush1.bf16.msra.mxu0 %v1325
    %4616 = vmatprep.subr.bf16.mxu0 %v1386
    %4617 = vmatpush2.bf16.msra.mxu0 %v1385
    %4618 = vmatprep.subr.bf16.mxu0 %v1382
    %4619 = vmatpush2.bf16.msra.mxu0 %v1381
    %4620 = vmatprep.subr.bf16.mxu0 %v1378
    %4621 = vmatpush2.bf16.msra.mxu0 %v1377
    %4622 = vmatprep.subr.bf16.mxu0 %v1374
    %4623 = vmatpush2.bf16.msra.mxu0 %v1373
    %4624 = vmatprep.subr.bf16.mxu0 %v1370
    %4625 = vmatpush2.bf16.msra.mxu0 %v1369
    %4626 = vmatprep.subr.bf16.mxu0 %v1366
    %4627 = vmatpush2.bf16.msra.mxu0 %v1365
    %4628 = vmatprep.subr.bf16.mxu0 %v1362
    %4629 = vmatpush2.bf16.msra.mxu0 %v1361
    %4630 = vmatprep.subr.bf16.mxu0 %v1358
    %4631 = vmatpush2.bf16.msra.mxu0 %v1357
    %4632 = vmatprep.mubr.bf16.mxu0 %v4515
    %4633 = vmatmul.mubr.bf16.gmra.mxu0 %v4514
    %v4634 = vpop.f32.mrf.mxu0
    %v4635 = vadd.f32 %v930, %v4634
    %v4636 = vpop.f32.mrf.mxu0
    %v4637 = vadd.f32 %v934, %v4636
    %v4638 = vpop.f32.mrf.mxu0
    %v4639 = vpop.f32.mrf.mxu0
    %4640 = vdwg.mxu0
    %4641 = vmatprep.subr.bf16.mxu0 %v1418
    %4642 = vmatpush1.bf16.msra.mxu0 %v1417
    %4643 = vmatprep.subr.bf16.mxu0 %v1414
    %4644 = vmatpush1.bf16.msra.mxu0 %v1413
    %4645 = vmatprep.subr.bf16.mxu0 %v1410
    %4646 = vmatpush1.bf16.msra.mxu0 %v1409
    %4647 = vmatprep.subr.bf16.mxu0 %v1406
    %4648 = vmatpush1.bf16.msra.mxu0 %v1405
    %4649 = vmatprep.subr.bf16.mxu0 %v1402
    %4650 = vmatpush1.bf16.msra.mxu0 %v1401
    %4651 = vmatprep.subr.bf16.mxu0 %v1398
    %4652 = vmatpush1.bf16.msra.mxu0 %v1397
    %4653 = vmatprep.subr.bf16.mxu0 %v1394
    %4654 = vmatpush1.bf16.msra.mxu0 %v1393
    %4655 = vmatprep.subr.bf16.mxu0 %v1390
    %4656 = vmatpush1.bf16.msra.mxu0 %v1389
    %4657 = vmatprep.subr.bf16.mxu0 %v1450
    %4658 = vmatpush2.bf16.msra.mxu0 %v1449
    %4659 = vmatprep.subr.bf16.mxu0 %v1446
    %4660 = vmatpush2.bf16.msra.mxu0 %v1445
    %4661 = vmatprep.subr.bf16.mxu0 %v1442
    %4662 = vmatpush2.bf16.msra.mxu0 %v1441
    %4663 = vmatprep.subr.bf16.mxu0 %v1438
    %4664 = vmatpush2.bf16.msra.mxu0 %v1437
    %4665 = vmatprep.subr.bf16.mxu0 %v1434
    %4666 = vmatpush2.bf16.msra.mxu0 %v1433
    %4667 = vmatprep.subr.bf16.mxu0 %v1430
    %4668 = vmatpush2.bf16.msra.mxu0 %v1429
    %4669 = vmatprep.subr.bf16.mxu0 %v1426
    %4670 = vmatpush2.bf16.msra.mxu0 %v1425
    %4671 = vmatprep.subr.bf16.mxu0 %v1422
    %4672 = vmatpush2.bf16.msra.mxu0 %v1421
    %4673 = vmatprep.mubr.bf16.mxu0 %v4517
    %4674 = vmatmul.mubr.bf16.gmra.mxu0 %v4516
    %v4675 = vpop.f32.mrf.mxu0
    %v4676 = vadd.f32 %v4635, %v4675
    %v4677 = vpop.f32.mrf.mxu0
    %v4678 = vadd.f32 %v4637, %v4677
    %v4679 = vpop.f32.mrf.mxu0
    %v4680 = vpop.f32.mrf.mxu0
    %4681 = vdwg.mxu0
    %v4682 = vadd.f32 %v4312, %v4594
    %v4683 = vadd.f32 %v4313, %v4596
    %v4684 = vadd.f32 %v4314, %v4676
    %v4685 = vadd.f32 %v4315, %v4678
    %vm4686 = vcmp.ge.f32.partialorder %v4682, 1.0
    %vm4687 = vcmp.ge.f32.partialorder %v4683, 1.0
    %vm4688 = vcmp.ge.f32.partialorder %v4684, 1.0
    %vm4689 = vcmp.ge.f32.partialorder %v4685, 1.0
    %v4690 = vsel %vm4686, 1, 0
    %v4691 = vsel %vm4687, 1, 0
    %v4692 = vsel %vm4688, 1, 0
    %v4693 = vsel %vm4689, 1, 0
    %v4694 = vcvt.s32.f32 %v4690
    %v4695 = vcvt.s32.f32 %v4691
    %v4696 = vcvt.s32.f32 %v4692
    %v4697 = vcvt.s32.f32 %v4693
    %v4698 = vpack.c.bf16 %v4694, %v4694
    %v4699 = vpack.c.bf16 %v4695, %v4695
    %v4700 = vpack.c.bf16 %v4696, %v4696
    %v4701 = vpack.c.bf16 %v4697, %v4697
    %4702 = vmatprep.subr.bf16.mxu0 0
    %4703 = vmatpush1.bf16.msra.mxu0 %v1973
    %4704 = vmatprep.subr.bf16.mxu0 0
    %4705 = vmatpush1.bf16.msra.mxu0 %v1972
    %4706 = vmatprep.subr.bf16.mxu0 0
    %4707 = vmatpush1.bf16.msra.mxu0 %v1971
    %4708 = vmatprep.subr.bf16.mxu0 0
    %4709 = vmatpush1.bf16.msra.mxu0 %v1970
    %4710 = vmatprep.subr.bf16.mxu0 0
    %4711 = vmatpush1.bf16.msra.mxu0 %v1969
    %4712 = vmatprep.subr.bf16.mxu0 0
    %4713 = vmatpush1.bf16.msra.mxu0 %v1968
    %4714 = vmatprep.subr.bf16.mxu0 0
    %4715 = vmatpush1.bf16.msra.mxu0 %v1967
    %4716 = vmatprep.subr.bf16.mxu0 0
    %4717 = vmatpush1.bf16.msra.mxu0 %v1966
    %4718 = vmatprep.subr.bf16.mxu0 0
    %4719 = vmatpush2.bf16.msra.mxu0 %v1981
    %4720 = vmatprep.subr.bf16.mxu0 0
    %4721 = vmatpush2.bf16.msra.mxu0 %v1980
    %4722 = vmatprep.subr.bf16.mxu0 0
    %4723 = vmatpush2.bf16.msra.mxu0 %v1979
    %4724 = vmatprep.subr.bf16.mxu0 0
    %4725 = vmatpush2.bf16.msra.mxu0 %v1978
    %4726 = vmatprep.subr.bf16.mxu0 0
    %4727 = vmatpush2.bf16.msra.mxu0 %v1977
    %4728 = vmatprep.subr.bf16.mxu0 0
    %4729 = vmatpush2.bf16.msra.mxu0 %v1976
    %4730 = vmatprep.subr.bf16.mxu0 0
    %4731 = vmatpush2.bf16.msra.mxu0 %v1975
    %4732 = vmatprep.subr.bf16.mxu0 0
    %4733 = vmatpush2.bf16.msra.mxu0 %v1974
    %4734 = vmatprep.mubr.bf16.mxu0 %v4699
    %4735 = vmatmul.mubr.bf16.gmra.mxu0 %v4698
    %v4736 = vpop.f32.mrf.mxu0
    %v4737 = vadd.f32 %v1836, %v4736
    %v4738 = vpop.f32.mrf.mxu0
    %v4739 = vpop.f32.mrf.mxu0
    %v4740 = vpop.f32.mrf.mxu0
    %4741 = vdwg.mxu0
    %4742 = vmatprep.subr.bf16.mxu0 0
    %4743 = vmatpush1.bf16.msra.mxu0 %v1989
    %4744 = vmatprep.subr.bf16.mxu0 0
    %4745 = vmatpush1.bf16.msra.mxu0 %v1988
    %4746 = vmatprep.subr.bf16.mxu0 0
    %4747 = vmatpush1.bf16.msra.mxu0 %v1987
    %4748 = vmatprep.subr.bf16.mxu0 0
    %4749 = vmatpush1.bf16.msra.mxu0 %v1986
    %4750 = vmatprep.subr.bf16.mxu0 0
    %4751 = vmatpush1.bf16.msra.mxu0 %v1985
    %4752 = vmatprep.subr.bf16.mxu0 0
    %4753 = vmatpush1.bf16.msra.mxu0 %v1984
    %4754 = vmatprep.subr.bf16.mxu0 0
    %4755 = vmatpush1.bf16.msra.mxu0 %v1983
    %4756 = vmatprep.subr.bf16.mxu0 0
    %4757 = vmatpush1.bf16.msra.mxu0 %v1982
    %4758 = vmatprep.subr.bf16.mxu0 0
    %4759 = vmatpush2.bf16.msra.mxu0 %v1997
    %4760 = vmatprep.subr.bf16.mxu0 0
    %4761 = vmatpush2.bf16.msra.mxu0 %v1996
    %4762 = vmatprep.subr.bf16.mxu0 0
    %4763 = vmatpush2.bf16.msra.mxu0 %v1995
    %4764 = vmatprep.subr.bf16.mxu0 0
    %4765 = vmatpush2.bf16.msra.mxu0 %v1994
    %4766 = vmatprep.subr.bf16.mxu0 0
    %4767 = vmatpush2.bf16.msra.mxu0 %v1993
    %4768 = vmatprep.subr.bf16.mxu0 0
    %4769 = vmatpush2.bf16.msra.mxu0 %v1992
    %4770 = vmatprep.subr.bf16.mxu0 0
    %4771 = vmatpush2.bf16.msra.mxu0 %v1991
    %4772 = vmatprep.subr.bf16.mxu0 0
    %4773 = vmatpush2.bf16.msra.mxu0 %v1990
    %4774 = vmatprep.mubr.bf16.mxu0 %v4701
    %4775 = vmatmul.mubr.bf16.gmra.mxu0 %v4700
    %v4776 = vpop.f32.mrf.mxu0
    %v4777 = vadd.f32 %v4737, %v4776
    %v4778 = vpop.f32.mrf.mxu0
    %v4779 = vpop.f32.mrf.mxu0
    %v4780 = vpop.f32.mrf.mxu0
    %4781 = vdwg.mxu0
    %v4782 = vadd.f32 %v4408, %v4777
    %v4783 = vmul.f32 %v4782, 0.125
    %4784 = vst [vmem:[#allocation11] sm:$0x3] %v4783
    // Predicated region
    $region54: #{tpu_custom_call.1} parent=1 // pred_check
      _
    $region55: #{tpu_custom_call.1} parent=1 // pred_check_branch
      %4786 = sbr.rel (0) target = $region57
    $region56: #{tpu_custom_call.1} parent=1 // pred_region
      %s4788 = ssub.s32 32, 32
      %4789 = vsyncadd [#allocation4], %s4788
      %s4791 = sshll.u32 [#allocation11], 4
      %s4792 = int_to_ptr.vmem [resolvable:$true] %s4791
      %4794 = dma.vmem_to_hbm [thread:$0]  %s4792, 32, %s8, [#allocation4]
    $region57: #{tpu_custom_call.1} parent=1 // pred_fallthru
      _
    // Predicated region
    $region58: #{tpu_custom_call.1} parent=1 // pred_check
      _
    $region59: #{tpu_custom_call.1} parent=1 // pred_check_branch
      %4796 = sbr.rel (0) target = $region61
    $region60: #{tpu_custom_call.1} parent=1 // pred_region
      %4797 = dma.done [#allocation4], 32
    $region61: #{tpu_custom_call.1} parent=1 // pred_fallthru
      _
    %4798 = vsyncpa [#allocation3], 1
    %4799 = vsyncpa [#allocation6], 1
    %4800 = vsyncpa [#allocation9], 1
    %4801 = vsyncpa [#allocation4], 1

</llo_original>
